<compile_context>
chip_gen: v7x
topology: tpu7x:2x2x1
jax: 0.10.0
libtpu: 0.0.40
codegen_flags: <defaults>
</compile_context>

<pallas_src>
import jax
import jax.numpy as jnp
from jax import lax
from jax.experimental import pallas as pl

INPUT_SIZE = 6      # action_window_col (6-axis IMU)
HIDDEN = 63
HP = 64             # hidden padded to 64 -> gate width 4*HP = 256 lanes
NUM_LAYERS = 3
NUM_CLASSES = 5
NCP = 128           # logits lane-padded to 128 (lane-dense output store)


# ---------------------------------------------------------------------------
# Fused Pallas kernel: 3 LSTM layers (wavefront-scheduled) + final Linear
# ---------------------------------------------------------------------------
def make_fused_kernel(T, Bp, Hp, n_layers):
    G = 4 * Hp                       # 256 gate lanes

    def kernel(x_ref, w_ref, b_ref, w_out_ref, b_out_ref, o_ref):
        # Lane-constant affine fixup for the unified-tanh activation:
        #   sigmoid lanes (gates i, f, o): act = 0.5 * tanh(pre/2) + 0.5
        #   tanh lanes   (gate g, lanes [2*Hp, 3*Hp)): act = tanh(pre)
        # (the 0.5 pre-scale of sigmoid lanes is baked into the packed weights)
        lane = lax.broadcasted_iota(jnp.int32, (1, G), 1)
        is_tanh = (lane >= 2 * Hp) & (lane < 3 * Hp)
        alpha = jnp.broadcast_to(jnp.where(is_tanh, 1.0, 0.5), (Bp, G))
        beta = jnp.broadcast_to(jnp.where(is_tanh, 0.0, 0.5), (Bp, G))
        # Hoisted bias broadcasts (JAX does not CSE broadcast_in_dim in loops).
        bias = [jnp.broadcast_to(b_ref[l], (Bp, G)) for l in range(n_layers)]

        h = [jnp.zeros((Bp, Hp), jnp.float32) for _ in range(n_layers)]
        c = [jnp.zeros((Bp, Hp), jnp.float32) for _ in range(n_layers)]

        # Wavefront schedule: wavefront s runs (layer l, time t = s - l) for
        # every layer with 0 <= t < T.  Cells within a wavefront are mutually
        # independent (layer l reads layer l-1's output from wavefront s-1).
        for s in range(T + n_layers - 1):
            h_prev = list(h)                      # state after wavefront s-1
            for l in range(n_layers):
                t = s - l
                if not (0 <= t < T):
                    continue
                if l == 0:
                    inp = x_ref[pl.ds(t * Bp, Bp), :]      # (Bp, Hp) padded x_t
                else:
                    inp = h_prev[l - 1]                    # prev layer's h at t
                xin = jnp.concatenate([inp, h[l]], axis=1)   # (Bp, 2*Hp)=128
                gates = jnp.dot(xin, w_ref[l],
                                preferred_element_type=jnp.float32) + bias[l]
                act = jnp.tanh(gates) * alpha + beta         # all 4 gates
                i_g = act[:, 0 * Hp:1 * Hp]
                f_g = act[:, 1 * Hp:2 * Hp]
                g_g = act[:, 2 * Hp:3 * Hp]
                o_g = act[:, 3 * Hp:4 * Hp]
                c[l] = f_g * c[l] + i_g * g_g
                h[l] = o_g * jnp.tanh(c[l])
            # TODO(synk): inter-layer dropout (p=0.5) is training-only in
            # nn.LSTM; omitted here (eval/inference semantics).

        # Final Linear on the last layer's last-step hidden state.
        logits = jnp.dot(h[-1], w_out_ref[...],
                         preferred_element_type=jnp.float32) + b_out_ref[...]
        o_ref[...] = logits                        # lane-dense (Bp, 128) store

    return kernel


# ---------------------------------------------------------------------------
# Wrapper
# ---------------------------------------------------------------------------
def action_net_lstm_forward(x_btd, params):
    """Equivalent of Action_Net_LSTM.forward (eval). x_btd: (B, T, input_size)."""
    B, T, D = x_btd.shape
    Bp = max(8, ((B + 7) // 8) * 8)                 # pad batch to sublane height

    # (B, T, D) -> time-major, zero-padded to (T, Bp, HP) -> flatten (T*Bp, HP)
    x_tm = jnp.transpose(x_btd.astype(jnp.float32), (1, 0, 2))
    x_pad = jnp.zeros((T, Bp, HP), jnp.float32).at[:, :B, :D].set(x_tm)
    x_flat = x_pad.reshape(T * Bp, HP)

    kernel = make_fused_kernel(T, Bp, HP, NUM_LAYERS)
    out = pl.pallas_call(
        kernel,
        out_shape=jax.ShapeDtypeStruct((Bp, NCP), jnp.float32),
        in_specs=[
            pl.BlockSpec((T * Bp, HP), lambda: (0, 0)),                   # x
            pl.BlockSpec((NUM_LAYERS, 2 * HP, 4 * HP), lambda: (0, 0, 0)),  # W fused
            pl.BlockSpec((NUM_LAYERS, 1, 4 * HP), lambda: (0, 0, 0)),       # bias
            pl.BlockSpec((HP, NCP), lambda: (0, 0)),                      # W_out^T
            pl.BlockSpec((1, NCP), lambda: (0, 0)),                       # b_out
        ],
        out_specs=pl.BlockSpec((Bp, NCP), lambda: (0, 0)),
    )(x_flat, params["w_fused"], params["b_fused"],
      params["w_out"], params["b_out"])

    return out[:B, :NUM_CLASSES]


# ---------------------------------------------------------------------------
# Deterministic parameter init (mimics PyTorch U(-1/sqrt(H), 1/sqrt(H))).
# Builds raw PyTorch-layout weights (for the reference) and the fused / padded
# kernel weights: per layer one (2*HP, 4*HP) weight with rows [input | hidden]
# and gate-major columns [i | f | g | o]; sigmoid gate columns (i, f, o) and
# their bias entries are pre-scaled by 0.5 for the unified-tanh activation.
# ---------------------------------------------------------------------------
def init_params(key):
    H, Hp = HIDDEN, HP
    k = float(H) ** -0.5
    keys = jax.random.split(key, NUM_LAYERS * 4 + 2)
    idx = 0

    SIG_SCALE = (0.5, 0.5, 1.0, 0.5)   # gates i, f, g, o (g is the tanh gate)

    raw_layers = []
    w_list, b_list = [], []
    for layer in range(NUM_LAYERS):
        D = INPUT_SIZE if layer == 0 else H
        w_ih = jax.random.uniform(keys[idx], (4 * H, D), jnp.float32, -k, k); idx += 1
        w_hh = jax.random.uniform(keys[idx], (4 * H, H), jnp.float32, -k, k); idx += 1
        b_ih = jax.random.uniform(keys[idx], (4 * H,), jnp.float32, -k, k); idx += 1
        b_hh = jax.random.uniform(keys[idx], (4 * H,), jnp.float32, -k, k); idx += 1
        raw_layers.append((w_ih, w_hh, b_ih, b_hh))

        # Fused, transposed, zero-padded layout. Padded rows/cols/bias are all
        # zero, so the padded hidden unit stays exactly 0 through the
        # recurrence (gate pre-act 0 -> i=f=o=0.5, g=0 -> c_pad=0.5*c_pad=0).
        wf = jnp.zeros((2 * Hp, 4 * Hp), jnp.float32)
        bf = jnp.zeros((1, 4 * Hp), jnp.float32)
        for g in range(4):
            s = SIG_SCALE[g]
            wf = wf.at[:D, g * Hp:g * Hp + H].set(s * w_ih[g * H:(g + 1) * H, :].T)
            wf = wf.at[Hp:Hp + H, g * Hp:g * Hp + H].set(s * w_hh[g * H:(g + 1) * H, :].T)
            bf = bf.at[0, g * Hp:g * Hp + H].set(
                s * (b_ih[g * H:(g + 1) * H] + b_hh[g * H:(g + 1) * H]))
        w_list.append(wf)
        b_list.append(bf)

    w_out = jax.random.uniform(keys[idx], (NUM_CLASSES, H), jnp.float32, -k, k); idx += 1
    b_out = jax.random.uniform(keys[idx], (NUM_CLASSES,), jnp.float32, -k, k); idx += 1

    w_out_p = jnp.zeros((Hp, NCP), jnp.float32).at[:H, :NUM_CLASSES].set(w_out.T)
    b_out_p = jnp.zeros((1, NCP), jnp.float32).at[0, :NUM_CLASSES].set(b_out)

    return {
        "w_fused": jnp.stack(w_list),       # (3, 2*HP, 4*HP) = (3, 128, 256)
        "b_fused": jnp.stack(b_list),       # (3, 1, 256)
        "w_out": w_out_p,                   # (HP, NCP)
        "b_out": b_out_p,                   # (1, NCP)
        "raw": {"layers": raw_layers, "w_out": w_out, "b_out": b_out},
    }


# ---------------------------------------------------------------------------
# Pure-JAX reference (PyTorch math, unpadded) for verification
# ---------------------------------------------------------------------------
def forward_ref(x_btd, params):
    H = HIDDEN
    B = x_btd.shape[0]
    h_seq = jnp.transpose(x_btd.astype(jnp.float32), (1, 0, 2))   # (T, B, D)
    for (w_ih, w_hh, b_ih, b_hh) in params["raw"]["layers"]:
        def step(carry, x_t, w_ih=w_ih, w_hh=w_hh, b_ih=b_ih, b_hh=b_hh):
            h, c = carry
            g = x_t @ w_ih.T + h @ w_hh.T + b_ih + b_hh
            i = jax.nn.sigmoid(g[:, 0 * H:1 * H])
            f = jax.nn.sigmoid(g[:, 1 * H:2 * H])
            gg = jnp.tanh(g[:, 2 * H:3 * H])
            o = jax.nn.sigmoid(g[:, 3 * H:4 * H])
            c = f * c + i * gg
            h = o * jnp.tanh(c)
            return (h, c), h

        init = (jnp.zeros((B, H), jnp.float32), jnp.zeros((B, H), jnp.float32))
        _, h_seq = lax.scan(step, init, h_seq)
    h_last = h_seq[-1]
    return h_last @ params["raw"]["w_out"].T + params["raw"]["b_out"]


# ---------------------------------------------------------------------------
if __name__ == "__main__":
    key = jax.random.PRNGKey(0)
    k_x, k_p = jax.random.split(key)

    B, T = 2, 8
    x = jax.random.normal(k_x, (B, T, INPUT_SIZE), dtype=jnp.float32)
    params = init_params(k_p)

    out = action_net_lstm_forward(x, params)
    out = jax.block_until_ready(out)
    assert out.shape == (B, NUM_CLASSES)

    ref = forward_ref(x, params)
    # Tolerance covers accumulation-order differences (fused K=128 matmul) and
    # the tanh-based sigmoid formulation; real bugs would be O(0.1) or larger.
    assert jnp.allclose(out, ref, atol=5e-4, rtol=5e-4), (out, ref)

    print("KERNEL_OK")
</pallas_src>

<mosaic_0001>
module attributes {stable_mosaic.version = 11 : i64} {
  func.func @kernel(%arg0: memref<64x64xf32, #tpu.memory_space<vmem>>, %arg1: memref<3x128x256xf32, #tpu.memory_space<vmem>>, %arg2: memref<3x1x256xf32, #tpu.memory_space<vmem>>, %arg3: memref<64x128xf32, #tpu.memory_space<vmem>>, %arg4: memref<1x128xf32, #tpu.memory_space<vmem>>, %arg5: memref<8x128xf32, #tpu.memory_space<vmem>>) attributes {dimension_semantics = [], scalar_prefetch = 0 : i64, scratch_operands = 0 : i64, tpu.core_type = #tpu.core_type<tc>} {
    %0 = tpu.iota {dimensions = array<i32: 1>} : vector<1x256xi32>
    %c128_i32 = arith.constant 128 : i32
    %1 = vector.broadcast %c128_i32 : i32 to vector<1x256xi32>
    %2 = arith.cmpi sge, %0, %1 : vector<1x256xi32>
    %c192_i32 = arith.constant 192 : i32
    %3 = vector.broadcast %c192_i32 : i32 to vector<1x256xi32>
    %4 = arith.cmpi slt, %0, %3 : vector<1x256xi32>
    %5 = arith.andi %2, %4 : vector<1x256xi1>
    %cst = arith.constant 1.000000e+00 : f32
    %cst_0 = arith.constant 5.000000e-01 : f32
    %6 = vector.broadcast %cst : f32 to vector<1x256xf32>
    %7 = vector.broadcast %cst_0 : f32 to vector<1x256xf32>
    %8 = arith.select %5, %6, %7 : vector<1x256xi1>, vector<1x256xf32>
    %9 = vector.shape_cast %8 : vector<1x256xf32> to vector<1x256xf32>
    %10 = vector.broadcast %9 : vector<1x256xf32> to vector<8x256xf32>
    %cst_1 = arith.constant 0.000000e+00 : f32
    %cst_2 = arith.constant 5.000000e-01 : f32
    %11 = vector.broadcast %cst_1 : f32 to vector<1x256xf32>
    %12 = vector.broadcast %cst_2 : f32 to vector<1x256xf32>
    %13 = arith.select %5, %11, %12 : vector<1x256xi1>, vector<1x256xf32>
    %14 = vector.shape_cast %13 : vector<1x256xf32> to vector<1x256xf32>
    %15 = vector.broadcast %14 : vector<1x256xf32> to vector<8x256xf32>
    %c0 = arith.constant 0 : index
    %c0_3 = arith.constant 0 : index
    %c0_4 = arith.constant 0 : index
    %16 = vector.load %arg2[%c0, %c0_3, %c0_4] : memref<3x1x256xf32, #tpu.memory_space<vmem>>, vector<1x1x256xf32>
    %17 = vector.shape_cast %16 : vector<1x1x256xf32> to vector<1x256xf32>
    %18 = vector.shape_cast %17 : vector<1x256xf32> to vector<1x256xf32>
    %19 = vector.broadcast %18 : vector<1x256xf32> to vector<8x256xf32>
    %c1 = arith.constant 1 : index
    %c0_5 = arith.constant 0 : index
    %c0_6 = arith.constant 0 : index
    %20 = vector.load %arg2[%c1, %c0_5, %c0_6] : memref<3x1x256xf32, #tpu.memory_space<vmem>>, vector<1x1x256xf32>
    %21 = vector.shape_cast %20 : vector<1x1x256xf32> to vector<1x256xf32>
    %22 = vector.shape_cast %21 : vector<1x256xf32> to vector<1x256xf32>
    %23 = vector.broadcast %22 : vector<1x256xf32> to vector<8x256xf32>
    %c2 = arith.constant 2 : index
    %c0_7 = arith.constant 0 : index
    %c0_8 = arith.constant 0 : index
    %24 = vector.load %arg2[%c2, %c0_7, %c0_8] : memref<3x1x256xf32, #tpu.memory_space<vmem>>, vector<1x1x256xf32>
    %25 = vector.shape_cast %24 : vector<1x1x256xf32> to vector<1x256xf32>
    %26 = vector.shape_cast %25 : vector<1x256xf32> to vector<1x256xf32>
    %27 = vector.broadcast %26 : vector<1x256xf32> to vector<8x256xf32>
    %cst_9 = arith.constant 0.000000e+00 : f32
    %28 = vector.broadcast %cst_9 : f32 to vector<8x64xf32>
    %cst_10 = arith.constant 0.000000e+00 : f32
    %29 = vector.broadcast %cst_10 : f32 to vector<8x64xf32>
    %cst_11 = arith.constant 0.000000e+00 : f32
    %30 = vector.broadcast %cst_11 : f32 to vector<8x64xf32>
    %cst_12 = arith.constant 0.000000e+00 : f32
    %31 = vector.broadcast %cst_12 : f32 to vector<8x64xf32>
    %cst_13 = arith.constant 0.000000e+00 : f32
    %32 = vector.broadcast %cst_13 : f32 to vector<8x64xf32>
    %cst_14 = arith.constant 0.000000e+00 : f32
    %33 = vector.broadcast %cst_14 : f32 to vector<8x64xf32>
    %c0_15 = arith.constant 0 : index
    %c0_16 = arith.constant 0 : index
    %34 = vector.load %arg0[%c0_15, %c0_16] : memref<64x64xf32, #tpu.memory_space<vmem>>, vector<8x64xf32>
    %35 = tpu.concatenate %34, %28 in 1 : vector<8x64xf32>, vector<8x64xf32> -> vector<8x128xf32>
    %c0_17 = arith.constant 0 : index
    %c0_18 = arith.constant 0 : index
    %c0_19 = arith.constant 0 : index
    %36 = vector.load %arg1[%c0_17, %c0_18, %c0_19] : memref<3x128x256xf32, #tpu.memory_space<vmem>>, vector<1x128x256xf32>
    %37 = vector.shape_cast %36 : vector<1x128x256xf32> to vector<128x256xf32>
    %cst_20 = arith.constant dense<0.000000e+00> : vector<8x256xf32>
    %38 = tpu.matmul %35, %37, %cst_20 {dimension_numbers = #tpu.dot_dimension_numbers<[1], [0], [0], [1], [0, 0, 1, 1], [], []>} : vector<8x128xf32>, vector<128x256xf32>, vector<8x256xf32> -> vector<8x256xf32>
    %39 = arith.addf %38, %19 : vector<8x256xf32>
    %40 = math.tanh %39 : vector<8x256xf32>
    %41 = arith.mulf %40, %10 : vector<8x256xf32>
    %42 = arith.addf %41, %15 : vector<8x256xf32>
    %43 = vector.extract_strided_slice %42 {offsets = [0, 0], sizes = [8, 64], strides = [1, 1]} : vector<8x256xf32> to vector<8x64xf32>
    %44 = vector.extract_strided_slice %42 {offsets = [0, 64], sizes = [8, 64], strides = [1, 1]} : vector<8x256xf32> to vector<8x64xf32>
    %45 = vector.extract_strided_slice %42 {offsets = [0, 128], sizes = [8, 64], strides = [1, 1]} : vector<8x256xf32> to vector<8x64xf32>
    %46 = vector.extract_strided_slice %42 {offsets = [0, 192], sizes = [8, 64], strides = [1, 1]} : vector<8x256xf32> to vector<8x64xf32>
    %47 = arith.mulf %44, %31 : vector<8x64xf32>
    %48 = arith.mulf %43, %45 : vector<8x64xf32>
    %49 = arith.addf %47, %48 : vector<8x64xf32>
    %50 = math.tanh %49 : vector<8x64xf32>
    %51 = arith.mulf %46, %50 : vector<8x64xf32>
    %c8 = arith.constant 8 : index
    %c0_21 = arith.constant 0 : index
    %52 = vector.load %arg0[%c8, %c0_21] : memref<64x64xf32, #tpu.memory_space<vmem>>, vector<8x64xf32>
    %53 = tpu.concatenate %52, %51 in 1 : vector<8x64xf32>, vector<8x64xf32> -> vector<8x128xf32>
    %c0_22 = arith.constant 0 : index
    %c0_23 = arith.constant 0 : index
    %c0_24 = arith.constant 0 : index
    %54 = vector.load %arg1[%c0_22, %c0_23, %c0_24] : memref<3x128x256xf32, #tpu.memory_space<vmem>>, vector<1x128x256xf32>
    %55 = vector.shape_cast %54 : vector<1x128x256xf32> to vector<128x256xf32>
    %cst_25 = arith.constant dense<0.000000e+00> : vector<8x256xf32>
    %56 = tpu.matmul %53, %55, %cst_25 {dimension_numbers = #tpu.dot_dimension_numbers<[1], [0], [0], [1], [0, 0, 1, 1], [], []>} : vector<8x128xf32>, vector<128x256xf32>, vector<8x256xf32> -> vector<8x256xf32>
    %57 = arith.addf %56, %19 : vector<8x256xf32>
    %58 = math.tanh %57 : vector<8x256xf32>
    %59 = arith.mulf %58, %10 : vector<8x256xf32>
    %60 = arith.addf %59, %15 : vector<8x256xf32>
    %61 = vector.extract_strided_slice %60 {offsets = [0, 0], sizes = [8, 64], strides = [1, 1]} : vector<8x256xf32> to vector<8x64xf32>
    %62 = vector.extract_strided_slice %60 {offsets = [0, 64], sizes = [8, 64], strides = [1, 1]} : vector<8x256xf32> to vector<8x64xf32>
    %63 = vector.extract_strided_slice %60 {offsets = [0, 128], sizes = [8, 64], strides = [1, 1]} : vector<8x256xf32> to vector<8x64xf32>
    %64 = vector.extract_strided_slice %60 {offsets = [0, 192], sizes = [8, 64], strides = [1, 1]} : vector<8x256xf32> to vector<8x64xf32>
    %65 = arith.mulf %62, %49 : vector<8x64xf32>
    %66 = arith.mulf %61, %63 : vector<8x64xf32>
    %67 = arith.addf %65, %66 : vector<8x64xf32>
    %68 = math.tanh %67 : vector<8x64xf32>
    %69 = arith.mulf %64, %68 : vector<8x64xf32>
    %70 = tpu.concatenate %51, %29 in 1 : vector<8x64xf32>, vector<8x64xf32> -> vector<8x128xf32>
    %c1_26 = arith.constant 1 : index
    %c0_27 = arith.constant 0 : index
    %c0_28 = arith.constant 0 : index
    %71 = vector.load %arg1[%c1_26, %c0_27, %c0_28] : memref<3x128x256xf32, #tpu.memory_space<vmem>>, vector<1x128x256xf32>
    %72 = vector.shape_cast %71 : vector<1x128x256xf32> to vector<128x256xf32>
    %cst_29 = arith.constant dense<0.000000e+00> : vector<8x256xf32>
    %73 = tpu.matmul %70, %72, %cst_29 {dimension_numbers = #tpu.dot_dimension_numbers<[1], [0], [0], [1], [0, 0, 1, 1], [], []>} : vector<8x128xf32>, vector<128x256xf32>, vector<8x256xf32> -> vector<8x256xf32>
    %74 = arith.addf %73, %23 : vector<8x256xf32>
    %75 = math.tanh %74 : vector<8x256xf32>
    %76 = arith.mulf %75, %10 : vector<8x256xf32>
    %77 = arith.addf %76, %15 : vector<8x256xf32>
    %78 = vector.extract_strided_slice %77 {offsets = [0, 0], sizes = [8, 64], strides = [1, 1]} : vector<8x256xf32> to vector<8x64xf32>
    %79 = vector.extract_strided_slice %77 {offsets = [0, 64], sizes = [8, 64], strides = [1, 1]} : vector<8x256xf32> to vector<8x64xf32>
    %80 = vector.extract_strided_slice %77 {offsets = [0, 128], sizes = [8, 64], strides = [1, 1]} : vector<8x256xf32> to vector<8x64xf32>
    %81 = vector.extract_strided_slice %77 {offsets = [0, 192], sizes = [8, 64], strides = [1, 1]} : vector<8x256xf32> to vector<8x64xf32>
    %82 = arith.mulf %79, %32 : vector<8x64xf32>
    %83 = arith.mulf %78, %80 : vector<8x64xf32>
    %84 = arith.addf %82, %83 : vector<8x64xf32>
    %85 = math.tanh %84 : vector<8x64xf32>
    %86 = arith.mulf %81, %85 : vector<8x64xf32>
    %c16 = arith.constant 16 : index
    %c0_30 = arith.constant 0 : index
    %87 = vector.load %arg0[%c16, %c0_30] : memref<64x64xf32, #tpu.memory_space<vmem>>, vector<8x64xf32>
    %88 = tpu.concatenate %87, %69 in 1 : vector<8x64xf32>, vector<8x64xf32> -> vector<8x128xf32>
    %c0_31 = arith.constant 0 : index
    %c0_32 = arith.constant 0 : index
    %c0_33 = arith.constant 0 : index
    %89 = vector.load %arg1[%c0_31, %c0_32, %c0_33] : memref<3x128x256xf32, #tpu.memory_space<vmem>>, vector<1x128x256xf32>
    %90 = vector.shape_cast %89 : vector<1x128x256xf32> to vector<128x256xf32>
    %cst_34 = arith.constant dense<0.000000e+00> : vector<8x256xf32>
    %91 = tpu.matmul %88, %90, %cst_34 {dimension_numbers = #tpu.dot_dimension_numbers<[1], [0], [0], [1], [0, 0, 1, 1], [], []>} : vector<8x128xf32>, vector<128x256xf32>, vector<8x256xf32> -> vector<8x256xf32>
    %92 = arith.addf %91, %19 : vector<8x256xf32>
    %93 = math.tanh %92 : vector<8x256xf32>
    %94 = arith.mulf %93, %10 : vector<8x256xf32>
    %95 = arith.addf %94, %15 : vector<8x256xf32>
    %96 = vector.extract_strided_slice %95 {offsets = [0, 0], sizes = [8, 64], strides = [1, 1]} : vector<8x256xf32> to vector<8x64xf32>
    %97 = vector.extract_strided_slice %95 {offsets = [0, 64], sizes = [8, 64], strides = [1, 1]} : vector<8x256xf32> to vector<8x64xf32>
    %98 = vector.extract_strided_slice %95 {offsets = [0, 128], sizes = [8, 64], strides = [1, 1]} : vector<8x256xf32> to vector<8x64xf32>
    %99 = vector.extract_strided_slice %95 {offsets = [0, 192], sizes = [8, 64], strides = [1, 1]} : vector<8x256xf32> to vector<8x64xf32>
    %100 = arith.mulf %97, %67 : vector<8x64xf32>
    %101 = arith.mulf %96, %98 : vector<8x64xf32>
    %102 = arith.addf %100, %101 : vector<8x64xf32>
    %103 = math.tanh %102 : vector<8x64xf32>
    %104 = arith.mulf %99, %103 : vector<8x64xf32>
    %105 = tpu.concatenate %69, %86 in 1 : vector<8x64xf32>, vector<8x64xf32> -> vector<8x128xf32>
    %c1_35 = arith.constant 1 : index
    %c0_36 = arith.constant 0 : index
    %c0_37 = arith.constant 0 : index
    %106 = vector.load %arg1[%c1_35, %c0_36, %c0_37] : memref<3x128x256xf32, #tpu.memory_space<vmem>>, vector<1x128x256xf32>
    %107 = vector.shape_cast %106 : vector<1x128x256xf32> to vector<128x256xf32>
    %cst_38 = arith.constant dense<0.000000e+00> : vector<8x256xf32>
    %108 = tpu.matmul %105, %107, %cst_38 {dimension_numbers = #tpu.dot_dimension_numbers<[1], [0], [0], [1], [0, 0, 1, 1], [], []>} : vector<8x128xf32>, vector<128x256xf32>, vector<8x256xf32> -> vector<8x256xf32>
    %109 = arith.addf %108, %23 : vector<8x256xf32>
    %110 = math.tanh %109 : vector<8x256xf32>
    %111 = arith.mulf %110, %10 : vector<8x256xf32>
    %112 = arith.addf %111, %15 : vector<8x256xf32>
    %113 = vector.extract_strided_slice %112 {offsets = [0, 0], sizes = [8, 64], strides = [1, 1]} : vector<8x256xf32> to vector<8x64xf32>
    %114 = vector.extract_strided_slice %112 {offsets = [0, 64], sizes = [8, 64], strides = [1, 1]} : vector<8x256xf32> to vector<8x64xf32>
    %115 = vector.extract_strided_slice %112 {offsets = [0, 128], sizes = [8, 64], strides = [1, 1]} : vector<8x256xf32> to vector<8x64xf32>
    %116 = vector.extract_strided_slice %112 {offsets = [0, 192], sizes = [8, 64], strides = [1, 1]} : vector<8x256xf32> to vector<8x64xf32>
    %117 = arith.mulf %114, %84 : vector<8x64xf32>
    %118 = arith.mulf %113, %115 : vector<8x64xf32>
    %119 = arith.addf %117, %118 : vector<8x64xf32>
    %120 = math.tanh %119 : vector<8x64xf32>
    %121 = arith.mulf %116, %120 : vector<8x64xf32>
    %122 = tpu.concatenate %86, %30 in 1 : vector<8x64xf32>, vector<8x64xf32> -> vector<8x128xf32>
    %c2_39 = arith.constant 2 : index
    %c0_40 = arith.constant 0 : index
    %c0_41 = arith.constant 0 : index
    %123 = vector.load %arg1[%c2_39, %c0_40, %c0_41] : memref<3x128x256xf32, #tpu.memory_space<vmem>>, vector<1x128x256xf32>
    %124 = vector.shape_cast %123 : vector<1x128x256xf32> to vector<128x256xf32>
    %cst_42 = arith.constant dense<0.000000e+00> : vector<8x256xf32>
    %125 = tpu.matmul %122, %124, %cst_42 {dimension_numbers = #tpu.dot_dimension_numbers<[1], [0], [0], [1], [0, 0, 1, 1], [], []>} : vector<8x128xf32>, vector<128x256xf32>, vector<8x256xf32> -> vector<8x256xf32>
    %126 = arith.addf %125, %27 : vector<8x256xf32>
    %127 = math.tanh %126 : vector<8x256xf32>
    %128 = arith.mulf %127, %10 : vector<8x256xf32>
    %129 = arith.addf %128, %15 : vector<8x256xf32>
    %130 = vector.extract_strided_slice %129 {offsets = [0, 0], sizes = [8, 64], strides = [1, 1]} : vector<8x256xf32> to vector<8x64xf32>
    %131 = vector.extract_strided_slice %129 {offsets = [0, 64], sizes = [8, 64], strides = [1, 1]} : vector<8x256xf32> to vector<8x64xf32>
    %132 = vector.extract_strided_slice %129 {offsets = [0, 128], sizes = [8, 64], strides = [1, 1]} : vector<8x256xf32> to vector<8x64xf32>
    %133 = vector.extract_strided_slice %129 {offsets = [0, 192], sizes = [8, 64], strides = [1, 1]} : vector<8x256xf32> to vector<8x64xf32>
    %134 = arith.mulf %131, %33 : vector<8x64xf32>
    %135 = arith.mulf %130, %132 : vector<8x64xf32>
    %136 = arith.addf %134, %135 : vector<8x64xf32>
    %137 = math.tanh %136 : vector<8x64xf32>
    %138 = arith.mulf %133, %137 : vector<8x64xf32>
    %c24 = arith.constant 24 : index
    %c0_43 = arith.constant 0 : index
    %139 = vector.load %arg0[%c24, %c0_43] : memref<64x64xf32, #tpu.memory_space<vmem>>, vector<8x64xf32>
    %140 = tpu.concatenate %139, %104 in 1 : vector<8x64xf32>, vector<8x64xf32> -> vector<8x128xf32>
    %c0_44 = arith.constant 0 : index
    %c0_45 = arith.constant 0 : index
    %c0_46 = arith.constant 0 : index
    %141 = vector.load %arg1[%c0_44, %c0_45, %c0_46] : memref<3x128x256xf32, #tpu.memory_space<vmem>>, vector<1x128x256xf32>
    %142 = vector.shape_cast %141 : vector<1x128x256xf32> to vector<128x256xf32>
    %cst_47 = arith.constant dense<0.000000e+00> : vector<8x256xf32>
    %143 = tpu.matmul %140, %142, %cst_47 {dimension_numbers = #tpu.dot_dimension_numbers<[1], [0], [0], [1], [0, 0, 1, 1], [], []>} : vector<8x128xf32>, vector<128x256xf32>, vector<8x256xf32> -> vector<8x256xf32>
    %144 = arith.addf %143, %19 : vector<8x256xf32>
    %145 = math.tanh %144 : vector<8x256xf32>
    %146 = arith.mulf %145, %10 : vector<8x256xf32>
    %147 = arith.addf %146, %15 : vector<8x256xf32>
    %148 = vector.extract_strided_slice %147 {offsets = [0, 0], sizes = [8, 64], strides = [1, 1]} : vector<8x256xf32> to vector<8x64xf32>
    %149 = vector.extract_strided_slice %147 {offsets = [0, 64], sizes = [8, 64], strides = [1, 1]} : vector<8x256xf32> to vector<8x64xf32>
    %150 = vector.extract_strided_slice %147 {offsets = [0, 128], sizes = [8, 64], strides = [1, 1]} : vector<8x256xf32> to vector<8x64xf32>
    %151 = vector.extract_strided_slice %147 {offsets = [0, 192], sizes = [8, 64], strides = [1, 1]} : vector<8x256xf32> to vector<8x64xf32>
    %152 = arith.mulf %149, %102 : vector<8x64xf32>
    %153 = arith.mulf %148, %150 : vector<8x64xf32>
    %154 = arith.addf %152, %153 : vector<8x64xf32>
    %155 = math.tanh %154 : vector<8x64xf32>
    %156 = arith.mulf %151, %155 : vector<8x64xf32>
    %157 = tpu.concatenate %104, %121 in 1 : vector<8x64xf32>, vector<8x64xf32> -> vector<8x128xf32>
    %c1_48 = arith.constant 1 : index
    %c0_49 = arith.constant 0 : index
    %c0_50 = arith.constant 0 : index
    %158 = vector.load %arg1[%c1_48, %c0_49, %c0_50] : memref<3x128x256xf32, #tpu.memory_space<vmem>>, vector<1x128x256xf32>
    %159 = vector.shape_cast %158 : vector<1x128x256xf32> to vector<128x256xf32>
    %cst_51 = arith.constant dense<0.000000e+00> : vector<8x256xf32>
    %160 = tpu.matmul %157, %159, %cst_51 {dimension_numbers = #tpu.dot_dimension_numbers<[1], [0], [0], [1], [0, 0, 1, 1], [], []>} : vector<8x128xf32>, vector<128x256xf32>, vector<8x256xf32> -> vector<8x256xf32>
    %161 = arith.addf %160, %23 : vector<8x256xf32>
    %162 = math.tanh %161 : vector<8x256xf32>
    %163 = arith.mulf %162, %10 : vector<8x256xf32>
    %164 = arith.addf %163, %15 : vector<8x256xf32>
    %165 = vector.extract_strided_slice %164 {offsets = [0, 0], sizes = [8, 64], strides = [1, 1]} : vector<8x256xf32> to vector<8x64xf32>
    %166 = vector.extract_strided_slice %164 {offsets = [0, 64], sizes = [8, 64], strides = [1, 1]} : vector<8x256xf32> to vector<8x64xf32>
    %167 = vector.extract_strided_slice %164 {offsets = [0, 128], sizes = [8, 64], strides = [1, 1]} : vector<8x256xf32> to vector<8x64xf32>
    %168 = vector.extract_strided_slice %164 {offsets = [0, 192], sizes = [8, 64], strides = [1, 1]} : vector<8x256xf32> to vector<8x64xf32>
    %169 = arith.mulf %166, %119 : vector<8x64xf32>
    %170 = arith.mulf %165, %167 : vector<8x64xf32>
    %171 = arith.addf %169, %170 : vector<8x64xf32>
    %172 = math.tanh %171 : vector<8x64xf32>
    %173 = arith.mulf %168, %172 : vector<8x64xf32>
    %174 = tpu.concatenate %121, %138 in 1 : vector<8x64xf32>, vector<8x64xf32> -> vector<8x128xf32>
    %c2_52 = arith.constant 2 : index
    %c0_53 = arith.constant 0 : index
    %c0_54 = arith.constant 0 : index
    %175 = vector.load %arg1[%c2_52, %c0_53, %c0_54] : memref<3x128x256xf32, #tpu.memory_space<vmem>>, vector<1x128x256xf32>
    %176 = vector.shape_cast %175 : vector<1x128x256xf32> to vector<128x256xf32>
    %cst_55 = arith.constant dense<0.000000e+00> : vector<8x256xf32>
    %177 = tpu.matmul %174, %176, %cst_55 {dimension_numbers = #tpu.dot_dimension_numbers<[1], [0], [0], [1], [0, 0, 1, 1], [], []>} : vector<8x128xf32>, vector<128x256xf32>, vector<8x256xf32> -> vector<8x256xf32>
    %178 = arith.addf %177, %27 : vector<8x256xf32>
    %179 = math.tanh %178 : vector<8x256xf32>
    %180 = arith.mulf %179, %10 : vector<8x256xf32>
    %181 = arith.addf %180, %15 : vector<8x256xf32>
    %182 = vector.extract_strided_slice %181 {offsets = [0, 0], sizes = [8, 64], strides = [1, 1]} : vector<8x256xf32> to vector<8x64xf32>
    %183 = vector.extract_strided_slice %181 {offsets = [0, 64], sizes = [8, 64], strides = [1, 1]} : vector<8x256xf32> to vector<8x64xf32>
    %184 = vector.extract_strided_slice %181 {offsets = [0, 128], sizes = [8, 64], strides = [1, 1]} : vector<8x256xf32> to vector<8x64xf32>
    %185 = vector.extract_strided_slice %181 {offsets = [0, 192], sizes = [8, 64], strides = [1, 1]} : vector<8x256xf32> to vector<8x64xf32>
    %186 = arith.mulf %183, %136 : vector<8x64xf32>
    %187 = arith.mulf %182, %184 : vector<8x64xf32>
    %188 = arith.addf %186, %187 : vector<8x64xf32>
    %189 = math.tanh %188 : vector<8x64xf32>
    %190 = arith.mulf %185, %189 : vector<8x64xf32>
    %c32 = arith.constant 32 : index
    %c0_56 = arith.constant 0 : index
    %191 = vector.load %arg0[%c32, %c0_56] : memref<64x64xf32, #tpu.memory_space<vmem>>, vector<8x64xf32>
    %192 = tpu.concatenate %191, %156 in 1 : vector<8x64xf32>, vector<8x64xf32> -> vector<8x128xf32>
    %c0_57 = arith.constant 0 : index
    %c0_58 = arith.constant 0 : index
    %c0_59 = arith.constant 0 : index
    %193 = vector.load %arg1[%c0_57, %c0_58, %c0_59] : memref<3x128x256xf32, #tpu.memory_space<vmem>>, vector<1x128x256xf32>
    %194 = vector.shape_cast %193 : vector<1x128x256xf32> to vector<128x256xf32>
    %cst_60 = arith.constant dense<0.000000e+00> : vector<8x256xf32>
    %195 = tpu.matmul %192, %194, %cst_60 {dimension_numbers = #tpu.dot_dimension_numbers<[1], [0], [0], [1], [0, 0, 1, 1], [], []>} : vector<8x128xf32>, vector<128x256xf32>, vector<8x256xf32> -> vector<8x256xf32>
    %196 = arith.addf %195, %19 : vector<8x256xf32>
    %197 = math.tanh %196 : vector<8x256xf32>
    %198 = arith.mulf %197, %10 : vector<8x256xf32>
    %199 = arith.addf %198, %15 : vector<8x256xf32>
    %200 = vector.extract_strided_slice %199 {offsets = [0, 0], sizes = [8, 64], strides = [1, 1]} : vector<8x256xf32> to vector<8x64xf32>
    %201 = vector.extract_strided_slice %199 {offsets = [0, 64], sizes = [8, 64], strides = [1, 1]} : vector<8x256xf32> to vector<8x64xf32>
    %202 = vector.extract_strided_slice %199 {offsets = [0, 128], sizes = [8, 64], strides = [1, 1]} : vector<8x256xf32> to vector<8x64xf32>
    %203 = vector.extract_strided_slice %199 {offsets = [0, 192], sizes = [8, 64], strides = [1, 1]} : vector<8x256xf32> to vector<8x64xf32>
    %204 = arith.mulf %201, %154 : vector<8x64xf32>
    %205 = arith.mulf %200, %202 : vector<8x64xf32>
    %206 = arith.addf %204, %205 : vector<8x64xf32>
    %207 = math.tanh %206 : vector<8x64xf32>
    %208 = arith.mulf %203, %207 : vector<8x64xf32>
    %209 = tpu.concatenate %156, %173 in 1 : vector<8x64xf32>, vector<8x64xf32> -> vector<8x128xf32>
    %c1_61 = arith.constant 1 : index
    %c0_62 = arith.constant 0 : index
    %c0_63 = arith.constant 0 : index
    %210 = vector.load %arg1[%c1_61, %c0_62, %c0_63] : memref<3x128x256xf32, #tpu.memory_space<vmem>>, vector<1x128x256xf32>
    %211 = vector.shape_cast %210 : vector<1x128x256xf32> to vector<128x256xf32>
    %cst_64 = arith.constant dense<0.000000e+00> : vector<8x256xf32>
    %212 = tpu.matmul %209, %211, %cst_64 {dimension_numbers = #tpu.dot_dimension_numbers<[1], [0], [0], [1], [0, 0, 1, 1], [], []>} : vector<8x128xf32>, vector<128x256xf32>, vector<8x256xf32> -> vector<8x256xf32>
    %213 = arith.addf %212, %23 : vector<8x256xf32>
    %214 = math.tanh %213 : vector<8x256xf32>
    %215 = arith.mulf %214, %10 : vector<8x256xf32>
    %216 = arith.addf %215, %15 : vector<8x256xf32>
    %217 = vector.extract_strided_slice %216 {offsets = [0, 0], sizes = [8, 64], strides = [1, 1]} : vector<8x256xf32> to vector<8x64xf32>
    %218 = vector.extract_strided_slice %216 {offsets = [0, 64], sizes = [8, 64], strides = [1, 1]} : vector<8x256xf32> to vector<8x64xf32>
    %219 = vector.extract_strided_slice %216 {offsets = [0, 128], sizes = [8, 64], strides = [1, 1]} : vector<8x256xf32> to vector<8x64xf32>
    %220 = vector.extract_strided_slice %216 {offsets = [0, 192], sizes = [8, 64], strides = [1, 1]} : vector<8x256xf32> to vector<8x64xf32>
    %221 = arith.mulf %218, %171 : vector<8x64xf32>
    %222 = arith.mulf %217, %219 : vector<8x64xf32>
    %223 = arith.addf %221, %222 : vector<8x64xf32>
    %224 = math.tanh %223 : vector<8x64xf32>
    %225 = arith.mulf %220, %224 : vector<8x64xf32>
    %226 = tpu.concatenate %173, %190 in 1 : vector<8x64xf32>, vector<8x64xf32> -> vector<8x128xf32>
    %c2_65 = arith.constant 2 : index
    %c0_66 = arith.constant 0 : index
    %c0_67 = arith.constant 0 : index
    %227 = vector.load %arg1[%c2_65, %c0_66, %c0_67] : memref<3x128x256xf32, #tpu.memory_space<vmem>>, vector<1x128x256xf32>
    %228 = vector.shape_cast %227 : vector<1x128x256xf32> to vector<128x256xf32>
    %cst_68 = arith.constant dense<0.000000e+00> : vector<8x256xf32>
    %229 = tpu.matmul %226, %228, %cst_68 {dimension_numbers = #tpu.dot_dimension_numbers<[1], [0], [0], [1], [0, 0, 1, 1], [], []>} : vector<8x128xf32>, vector<128x256xf32>, vector<8x256xf32> -> vector<8x256xf32>
    %230 = arith.addf %229, %27 : vector<8x256xf32>
    %231 = math.tanh %230 : vector<8x256xf32>
    %232 = arith.mulf %231, %10 : vector<8x256xf32>
    %233 = arith.addf %232, %15 : vector<8x256xf32>
    %234 = vector.extract_strided_slice %233 {offsets = [0, 0], sizes = [8, 64], strides = [1, 1]} : vector<8x256xf32> to vector<8x64xf32>
    %235 = vector.extract_strided_slice %233 {offsets = [0, 64], sizes = [8, 64], strides = [1, 1]} : vector<8x256xf32> to vector<8x64xf32>
    %236 = vector.extract_strided_slice %233 {offsets = [0, 128], sizes = [8, 64], strides = [1, 1]} : vector<8x256xf32> to vector<8x64xf32>
    %237 = vector.extract_strided_slice %233 {offsets = [0, 192], sizes = [8, 64], strides = [1, 1]} : vector<8x256xf32> to vector<8x64xf32>
    %238 = arith.mulf %235, %188 : vector<8x64xf32>
    %239 = arith.mulf %234, %236 : vector<8x64xf32>
    %240 = arith.addf %238, %239 : vector<8x64xf32>
    %241 = math.tanh %240 : vector<8x64xf32>
    %242 = arith.mulf %237, %241 : vector<8x64xf32>
    %c40 = arith.constant 40 : index
    %c0_69 = arith.constant 0 : index
    %243 = vector.load %arg0[%c40, %c0_69] : memref<64x64xf32, #tpu.memory_space<vmem>>, vector<8x64xf32>
    %244 = tpu.concatenate %243, %208 in 1 : vector<8x64xf32>, vector<8x64xf32> -> vector<8x128xf32>
    %c0_70 = arith.constant 0 : index
    %c0_71 = arith.constant 0 : index
    %c0_72 = arith.constant 0 : index
    %245 = vector.load %arg1[%c0_70, %c0_71, %c0_72] : memref<3x128x256xf32, #tpu.memory_space<vmem>>, vector<1x128x256xf32>
    %246 = vector.shape_cast %245 : vector<1x128x256xf32> to vector<128x256xf32>
    %cst_73 = arith.constant dense<0.000000e+00> : vector<8x256xf32>
    %247 = tpu.matmul %244, %246, %cst_73 {dimension_numbers = #tpu.dot_dimension_numbers<[1], [0], [0], [1], [0, 0, 1, 1], [], []>} : vector<8x128xf32>, vector<128x256xf32>, vector<8x256xf32> -> vector<8x256xf32>
    %248 = arith.addf %247, %19 : vector<8x256xf32>
    %249 = math.tanh %248 : vector<8x256xf32>
    %250 = arith.mulf %249, %10 : vector<8x256xf32>
    %251 = arith.addf %250, %15 : vector<8x256xf32>
    %252 = vector.extract_strided_slice %251 {offsets = [0, 0], sizes = [8, 64], strides = [1, 1]} : vector<8x256xf32> to vector<8x64xf32>
    %253 = vector.extract_strided_slice %251 {offsets = [0, 64], sizes = [8, 64], strides = [1, 1]} : vector<8x256xf32> to vector<8x64xf32>
    %254 = vector.extract_strided_slice %251 {offsets = [0, 128], sizes = [8, 64], strides = [1, 1]} : vector<8x256xf32> to vector<8x64xf32>
    %255 = vector.extract_strided_slice %251 {offsets = [0, 192], sizes = [8, 64], strides = [1, 1]} : vector<8x256xf32> to vector<8x64xf32>
    %256 = arith.mulf %253, %206 : vector<8x64xf32>
    %257 = arith.mulf %252, %254 : vector<8x64xf32>
    %258 = arith.addf %256, %257 : vector<8x64xf32>
    %259 = math.tanh %258 : vector<8x64xf32>
    %260 = arith.mulf %255, %259 : vector<8x64xf32>
    %261 = tpu.concatenate %208, %225 in 1 : vector<8x64xf32>, vector<8x64xf32> -> vector<8x128xf32>
    %c1_74 = arith.constant 1 : index
    %c0_75 = arith.constant 0 : index
    %c0_76 = arith.constant 0 : index
    %262 = vector.load %arg1[%c1_74, %c0_75, %c0_76] : memref<3x128x256xf32, #tpu.memory_space<vmem>>, vector<1x128x256xf32>
    %263 = vector.shape_cast %262 : vector<1x128x256xf32> to vector<128x256xf32>
    %cst_77 = arith.constant dense<0.000000e+00> : vector<8x256xf32>
    %264 = tpu.matmul %261, %263, %cst_77 {dimension_numbers = #tpu.dot_dimension_numbers<[1], [0], [0], [1], [0, 0, 1, 1], [], []>} : vector<8x128xf32>, vector<128x256xf32>, vector<8x256xf32> -> vector<8x256xf32>
    %265 = arith.addf %264, %23 : vector<8x256xf32>
    %266 = math.tanh %265 : vector<8x256xf32>
    %267 = arith.mulf %266, %10 : vector<8x256xf32>
    %268 = arith.addf %267, %15 : vector<8x256xf32>
    %269 = vector.extract_strided_slice %268 {offsets = [0, 0], sizes = [8, 64], strides = [1, 1]} : vector<8x256xf32> to vector<8x64xf32>
    %270 = vector.extract_strided_slice %268 {offsets = [0, 64], sizes = [8, 64], strides = [1, 1]} : vector<8x256xf32> to vector<8x64xf32>
    %271 = vector.extract_strided_slice %268 {offsets = [0, 128], sizes = [8, 64], strides = [1, 1]} : vector<8x256xf32> to vector<8x64xf32>
    %272 = vector.extract_strided_slice %268 {offsets = [0, 192], sizes = [8, 64], strides = [1, 1]} : vector<8x256xf32> to vector<8x64xf32>
    %273 = arith.mulf %270, %223 : vector<8x64xf32>
    %274 = arith.mulf %269, %271 : vector<8x64xf32>
    %275 = arith.addf %273, %274 : vector<8x64xf32>
    %276 = math.tanh %275 : vector<8x64xf32>
    %277 = arith.mulf %272, %276 : vector<8x64xf32>
    %278 = tpu.concatenate %225, %242 in 1 : vector<8x64xf32>, vector<8x64xf32> -> vector<8x128xf32>
    %c2_78 = arith.constant 2 : index
    %c0_79 = arith.constant 0 : index
    %c0_80 = arith.constant 0 : index
    %279 = vector.load %arg1[%c2_78, %c0_79, %c0_80] : memref<3x128x256xf32, #tpu.memory_space<vmem>>, vector<1x128x256xf32>
    %280 = vector.shape_cast %279 : vector<1x128x256xf32> to vector<128x256xf32>
    %cst_81 = arith.constant dense<0.000000e+00> : vector<8x256xf32>
    %281 = tpu.matmul %278, %280, %cst_81 {dimension_numbers = #tpu.dot_dimension_numbers<[1], [0], [0], [1], [0, 0, 1, 1], [], []>} : vector<8x128xf32>, vector<128x256xf32>, vector<8x256xf32> -> vector<8x256xf32>
    %282 = arith.addf %281, %27 : vector<8x256xf32>
    %283 = math.tanh %282 : vector<8x256xf32>
    %284 = arith.mulf %283, %10 : vector<8x256xf32>
    %285 = arith.addf %284, %15 : vector<8x256xf32>
    %286 = vector.extract_strided_slice %285 {offsets = [0, 0], sizes = [8, 64], strides = [1, 1]} : vector<8x256xf32> to vector<8x64xf32>
    %287 = vector.extract_strided_slice %285 {offsets = [0, 64], sizes = [8, 64], strides = [1, 1]} : vector<8x256xf32> to vector<8x64xf32>
    %288 = vector.extract_strided_slice %285 {offsets = [0, 128], sizes = [8, 64], strides = [1, 1]} : vector<8x256xf32> to vector<8x64xf32>
    %289 = vector.extract_strided_slice %285 {offsets = [0, 192], sizes = [8, 64], strides = [1, 1]} : vector<8x256xf32> to vector<8x64xf32>
    %290 = arith.mulf %287, %240 : vector<8x64xf32>
    %291 = arith.mulf %286, %288 : vector<8x64xf32>
    %292 = arith.addf %290, %291 : vector<8x64xf32>
    %293 = math.tanh %292 : vector<8x64xf32>
    %294 = arith.mulf %289, %293 : vector<8x64xf32>
    %c48 = arith.constant 48 : index
    %c0_82 = arith.constant 0 : index
    %295 = vector.load %arg0[%c48, %c0_82] : memref<64x64xf32, #tpu.memory_space<vmem>>, vector<8x64xf32>
    %296 = tpu.concatenate %295, %260 in 1 : vector<8x64xf32>, vector<8x64xf32> -> vector<8x128xf32>
    %c0_83 = arith.constant 0 : index
    %c0_84 = arith.constant 0 : index
    %c0_85 = arith.constant 0 : index
    %297 = vector.load %arg1[%c0_83, %c0_84, %c0_85] : memref<3x128x256xf32, #tpu.memory_space<vmem>>, vector<1x128x256xf32>
    %298 = vector.shape_cast %297 : vector<1x128x256xf32> to vector<128x256xf32>
    %cst_86 = arith.constant dense<0.000000e+00> : vector<8x256xf32>
    %299 = tpu.matmul %296, %298, %cst_86 {dimension_numbers = #tpu.dot_dimension_numbers<[1], [0], [0], [1], [0, 0, 1, 1], [], []>} : vector<8x128xf32>, vector<128x256xf32>, vector<8x256xf32> -> vector<8x256xf32>
    %300 = arith.addf %299, %19 : vector<8x256xf32>
    %301 = math.tanh %300 : vector<8x256xf32>
    %302 = arith.mulf %301, %10 : vector<8x256xf32>
    %303 = arith.addf %302, %15 : vector<8x256xf32>
    %304 = vector.extract_strided_slice %303 {offsets = [0, 0], sizes = [8, 64], strides = [1, 1]} : vector<8x256xf32> to vector<8x64xf32>
    %305 = vector.extract_strided_slice %303 {offsets = [0, 64], sizes = [8, 64], strides = [1, 1]} : vector<8x256xf32> to vector<8x64xf32>
    %306 = vector.extract_strided_slice %303 {offsets = [0, 128], sizes = [8, 64], strides = [1, 1]} : vector<8x256xf32> to vector<8x64xf32>
    %307 = vector.extract_strided_slice %303 {offsets = [0, 192], sizes = [8, 64], strides = [1, 1]} : vector<8x256xf32> to vector<8x64xf32>
    %308 = arith.mulf %305, %258 : vector<8x64xf32>
    %309 = arith.mulf %304, %306 : vector<8x64xf32>
    %310 = arith.addf %308, %309 : vector<8x64xf32>
    %311 = math.tanh %310 : vector<8x64xf32>
    %312 = arith.mulf %307, %311 : vector<8x64xf32>
    %313 = tpu.concatenate %260, %277 in 1 : vector<8x64xf32>, vector<8x64xf32> -> vector<8x128xf32>
    %c1_87 = arith.constant 1 : index
    %c0_88 = arith.constant 0 : index
    %c0_89 = arith.constant 0 : index
    %314 = vector.load %arg1[%c1_87, %c0_88, %c0_89] : memref<3x128x256xf32, #tpu.memory_space<vmem>>, vector<1x128x256xf32>
    %315 = vector.shape_cast %314 : vector<1x128x256xf32> to vector<128x256xf32>
    %cst_90 = arith.constant dense<0.000000e+00> : vector<8x256xf32>
    %316 = tpu.matmul %313, %315, %cst_90 {dimension_numbers = #tpu.dot_dimension_numbers<[1], [0], [0], [1], [0, 0, 1, 1], [], []>} : vector<8x128xf32>, vector<128x256xf32>, vector<8x256xf32> -> vector<8x256xf32>
    %317 = arith.addf %316, %23 : vector<8x256xf32>
    %318 = math.tanh %317 : vector<8x256xf32>
    %319 = arith.mulf %318, %10 : vector<8x256xf32>
    %320 = arith.addf %319, %15 : vector<8x256xf32>
    %321 = vector.extract_strided_slice %320 {offsets = [0, 0], sizes = [8, 64], strides = [1, 1]} : vector<8x256xf32> to vector<8x64xf32>
    %322 = vector.extract_strided_slice %320 {offsets = [0, 64], sizes = [8, 64], strides = [1, 1]} : vector<8x256xf32> to vector<8x64xf32>
    %323 = vector.extract_strided_slice %320 {offsets = [0, 128], sizes = [8, 64], strides = [1, 1]} : vector<8x256xf32> to vector<8x64xf32>
    %324 = vector.extract_strided_slice %320 {offsets = [0, 192], sizes = [8, 64], strides = [1, 1]} : vector<8x256xf32> to vector<8x64xf32>
    %325 = arith.mulf %322, %275 : vector<8x64xf32>
    %326 = arith.mulf %321, %323 : vector<8x64xf32>
    %327 = arith.addf %325, %326 : vector<8x64xf32>
    %328 = math.tanh %327 : vector<8x64xf32>
    %329 = arith.mulf %324, %328 : vector<8x64xf32>
    %330 = tpu.concatenate %277, %294 in 1 : vector<8x64xf32>, vector<8x64xf32> -> vector<8x128xf32>
    %c2_91 = arith.constant 2 : index
    %c0_92 = arith.constant 0 : index
    %c0_93 = arith.constant 0 : index
    %331 = vector.load %arg1[%c2_91, %c0_92, %c0_93] : memref<3x128x256xf32, #tpu.memory_space<vmem>>, vector<1x128x256xf32>
    %332 = vector.shape_cast %331 : vector<1x128x256xf32> to vector<128x256xf32>
    %cst_94 = arith.constant dense<0.000000e+00> : vector<8x256xf32>
    %333 = tpu.matmul %330, %332, %cst_94 {dimension_numbers = #tpu.dot_dimension_numbers<[1], [0], [0], [1], [0, 0, 1, 1], [], []>} : vector<8x128xf32>, vector<128x256xf32>, vector<8x256xf32> -> vector<8x256xf32>
    %334 = arith.addf %333, %27 : vector<8x256xf32>
    %335 = math.tanh %334 : vector<8x256xf32>
    %336 = arith.mulf %335, %10 : vector<8x256xf32>
    %337 = arith.addf %336, %15 : vector<8x256xf32>
    %338 = vector.extract_strided_slice %337 {offsets = [0, 0], sizes = [8, 64], strides = [1, 1]} : vector<8x256xf32> to vector<8x64xf32>
    %339 = vector.extract_strided_slice %337 {offsets = [0, 64], sizes = [8, 64], strides = [1, 1]} : vector<8x256xf32> to vector<8x64xf32>
    %340 = vector.extract_strided_slice %337 {offsets = [0, 128], sizes = [8, 64], strides = [1, 1]} : vector<8x256xf32> to vector<8x64xf32>
    %341 = vector.extract_strided_slice %337 {offsets = [0, 192], sizes = [8, 64], strides = [1, 1]} : vector<8x256xf32> to vector<8x64xf32>
    %342 = arith.mulf %339, %292 : vector<8x64xf32>
    %343 = arith.mulf %338, %340 : vector<8x64xf32>
    %344 = arith.addf %342, %343 : vector<8x64xf32>
    %345 = math.tanh %344 : vector<8x64xf32>
    %346 = arith.mulf %341, %345 : vector<8x64xf32>
    %c56 = arith.constant 56 : index
    %c0_95 = arith.constant 0 : index
    %347 = vector.load %arg0[%c56, %c0_95] : memref<64x64xf32, #tpu.memory_space<vmem>>, vector<8x64xf32>
    %348 = tpu.concatenate %347, %312 in 1 : vector<8x64xf32>, vector<8x64xf32> -> vector<8x128xf32>
    %c0_96 = arith.constant 0 : index
    %c0_97 = arith.constant 0 : index
    %c0_98 = arith.constant 0 : index
    %349 = vector.load %arg1[%c0_96, %c0_97, %c0_98] : memref<3x128x256xf32, #tpu.memory_space<vmem>>, vector<1x128x256xf32>
    %350 = vector.shape_cast %349 : vector<1x128x256xf32> to vector<128x256xf32>
    %cst_99 = arith.constant dense<0.000000e+00> : vector<8x256xf32>
    %351 = tpu.matmul %348, %350, %cst_99 {dimension_numbers = #tpu.dot_dimension_numbers<[1], [0], [0], [1], [0, 0, 1, 1], [], []>} : vector<8x128xf32>, vector<128x256xf32>, vector<8x256xf32> -> vector<8x256xf32>
    %352 = arith.addf %351, %19 : vector<8x256xf32>
    %353 = math.tanh %352 : vector<8x256xf32>
    %354 = arith.mulf %353, %10 : vector<8x256xf32>
    %355 = arith.addf %354, %15 : vector<8x256xf32>
    %356 = vector.extract_strided_slice %355 {offsets = [0, 0], sizes = [8, 64], strides = [1, 1]} : vector<8x256xf32> to vector<8x64xf32>
    %357 = vector.extract_strided_slice %355 {offsets = [0, 64], sizes = [8, 64], strides = [1, 1]} : vector<8x256xf32> to vector<8x64xf32>
    %358 = vector.extract_strided_slice %355 {offsets = [0, 128], sizes = [8, 64], strides = [1, 1]} : vector<8x256xf32> to vector<8x64xf32>
    %359 = vector.extract_strided_slice %355 {offsets = [0, 192], sizes = [8, 64], strides = [1, 1]} : vector<8x256xf32> to vector<8x64xf32>
    %360 = arith.mulf %357, %310 : vector<8x64xf32>
    %361 = arith.mulf %356, %358 : vector<8x64xf32>
    %362 = arith.addf %360, %361 : vector<8x64xf32>
    %363 = math.tanh %362 : vector<8x64xf32>
    %364 = arith.mulf %359, %363 : vector<8x64xf32>
    %365 = tpu.concatenate %312, %329 in 1 : vector<8x64xf32>, vector<8x64xf32> -> vector<8x128xf32>
    %c1_100 = arith.constant 1 : index
    %c0_101 = arith.constant 0 : index
    %c0_102 = arith.constant 0 : index
    %366 = vector.load %arg1[%c1_100, %c0_101, %c0_102] : memref<3x128x256xf32, #tpu.memory_space<vmem>>, vector<1x128x256xf32>
    %367 = vector.shape_cast %366 : vector<1x128x256xf32> to vector<128x256xf32>
    %cst_103 = arith.constant dense<0.000000e+00> : vector<8x256xf32>
    %368 = tpu.matmul %365, %367, %cst_103 {dimension_numbers = #tpu.dot_dimension_numbers<[1], [0], [0], [1], [0, 0, 1, 1], [], []>} : vector<8x128xf32>, vector<128x256xf32>, vector<8x256xf32> -> vector<8x256xf32>
    %369 = arith.addf %368, %23 : vector<8x256xf32>
    %370 = math.tanh %369 : vector<8x256xf32>
    %371 = arith.mulf %370, %10 : vector<8x256xf32>
    %372 = arith.addf %371, %15 : vector<8x256xf32>
    %373 = vector.extract_strided_slice %372 {offsets = [0, 0], sizes = [8, 64], strides = [1, 1]} : vector<8x256xf32> to vector<8x64xf32>
    %374 = vector.extract_strided_slice %372 {offsets = [0, 64], sizes = [8, 64], strides = [1, 1]} : vector<8x256xf32> to vector<8x64xf32>
    %375 = vector.extract_strided_slice %372 {offsets = [0, 128], sizes = [8, 64], strides = [1, 1]} : vector<8x256xf32> to vector<8x64xf32>
    %376 = vector.extract_strided_slice %372 {offsets = [0, 192], sizes = [8, 64], strides = [1, 1]} : vector<8x256xf32> to vector<8x64xf32>
    %377 = arith.mulf %374, %327 : vector<8x64xf32>
    %378 = arith.mulf %373, %375 : vector<8x64xf32>
    %379 = arith.addf %377, %378 : vector<8x64xf32>
    %380 = math.tanh %379 : vector<8x64xf32>
    %381 = arith.mulf %376, %380 : vector<8x64xf32>
    %382 = tpu.concatenate %329, %346 in 1 : vector<8x64xf32>, vector<8x64xf32> -> vector<8x128xf32>
    %c2_104 = arith.constant 2 : index
    %c0_105 = arith.constant 0 : index
    %c0_106 = arith.constant 0 : index
    %383 = vector.load %arg1[%c2_104, %c0_105, %c0_106] : memref<3x128x256xf32, #tpu.memory_space<vmem>>, vector<1x128x256xf32>
    %384 = vector.shape_cast %383 : vector<1x128x256xf32> to vector<128x256xf32>
    %cst_107 = arith.constant dense<0.000000e+00> : vector<8x256xf32>
    %385 = tpu.matmul %382, %384, %cst_107 {dimension_numbers = #tpu.dot_dimension_numbers<[1], [0], [0], [1], [0, 0, 1, 1], [], []>} : vector<8x128xf32>, vector<128x256xf32>, vector<8x256xf32> -> vector<8x256xf32>
    %386 = arith.addf %385, %27 : vector<8x256xf32>
    %387 = math.tanh %386 : vector<8x256xf32>
    %388 = arith.mulf %387, %10 : vector<8x256xf32>
    %389 = arith.addf %388, %15 : vector<8x256xf32>
    %390 = vector.extract_strided_slice %389 {offsets = [0, 0], sizes = [8, 64], strides = [1, 1]} : vector<8x256xf32> to vector<8x64xf32>
    %391 = vector.extract_strided_slice %389 {offsets = [0, 64], sizes = [8, 64], strides = [1, 1]} : vector<8x256xf32> to vector<8x64xf32>
    %392 = vector.extract_strided_slice %389 {offsets = [0, 128], sizes = [8, 64], strides = [1, 1]} : vector<8x256xf32> to vector<8x64xf32>
    %393 = vector.extract_strided_slice %389 {offsets = [0, 192], sizes = [8, 64], strides = [1, 1]} : vector<8x256xf32> to vector<8x64xf32>
    %394 = arith.mulf %391, %344 : vector<8x64xf32>
    %395 = arith.mulf %390, %392 : vector<8x64xf32>
    %396 = arith.addf %394, %395 : vector<8x64xf32>
    %397 = math.tanh %396 : vector<8x64xf32>
    %398 = arith.mulf %393, %397 : vector<8x64xf32>
    %399 = tpu.concatenate %364, %381 in 1 : vector<8x64xf32>, vector<8x64xf32> -> vector<8x128xf32>
    %c1_108 = arith.constant 1 : index
    %c0_109 = arith.constant 0 : index
    %c0_110 = arith.constant 0 : index
    %400 = vector.load %arg1[%c1_108, %c0_109, %c0_110] : memref<3x128x256xf32, #tpu.memory_space<vmem>>, vector<1x128x256xf32>
    %401 = vector.shape_cast %400 : vector<1x128x256xf32> to vector<128x256xf32>
    %cst_111 = arith.constant dense<0.000000e+00> : vector<8x256xf32>
    %402 = tpu.matmul %399, %401, %cst_111 {dimension_numbers = #tpu.dot_dimension_numbers<[1], [0], [0], [1], [0, 0, 1, 1], [], []>} : vector<8x128xf32>, vector<128x256xf32>, vector<8x256xf32> -> vector<8x256xf32>
    %403 = arith.addf %402, %23 : vector<8x256xf32>
    %404 = math.tanh %403 : vector<8x256xf32>
    %405 = arith.mulf %404, %10 : vector<8x256xf32>
    %406 = arith.addf %405, %15 : vector<8x256xf32>
    %407 = vector.extract_strided_slice %406 {offsets = [0, 0], sizes = [8, 64], strides = [1, 1]} : vector<8x256xf32> to vector<8x64xf32>
    %408 = vector.extract_strided_slice %406 {offsets = [0, 64], sizes = [8, 64], strides = [1, 1]} : vector<8x256xf32> to vector<8x64xf32>
    %409 = vector.extract_strided_slice %406 {offsets = [0, 128], sizes = [8, 64], strides = [1, 1]} : vector<8x256xf32> to vector<8x64xf32>
    %410 = vector.extract_strided_slice %406 {offsets = [0, 192], sizes = [8, 64], strides = [1, 1]} : vector<8x256xf32> to vector<8x64xf32>
    %411 = arith.mulf %408, %379 : vector<8x64xf32>
    %412 = arith.mulf %407, %409 : vector<8x64xf32>
    %413 = arith.addf %411, %412 : vector<8x64xf32>
    %414 = math.tanh %413 : vector<8x64xf32>
    %415 = arith.mulf %410, %414 : vector<8x64xf32>
    %416 = tpu.concatenate %381, %398 in 1 : vector<8x64xf32>, vector<8x64xf32> -> vector<8x128xf32>
    %c2_112 = arith.constant 2 : index
    %c0_113 = arith.constant 0 : index
    %c0_114 = arith.constant 0 : index
    %417 = vector.load %arg1[%c2_112, %c0_113, %c0_114] : memref<3x128x256xf32, #tpu.memory_space<vmem>>, vector<1x128x256xf32>
    %418 = vector.shape_cast %417 : vector<1x128x256xf32> to vector<128x256xf32>
    %cst_115 = arith.constant dense<0.000000e+00> : vector<8x256xf32>
    %419 = tpu.matmul %416, %418, %cst_115 {dimension_numbers = #tpu.dot_dimension_numbers<[1], [0], [0], [1], [0, 0, 1, 1], [], []>} : vector<8x128xf32>, vector<128x256xf32>, vector<8x256xf32> -> vector<8x256xf32>
    %420 = arith.addf %419, %27 : vector<8x256xf32>
    %421 = math.tanh %420 : vector<8x256xf32>
    %422 = arith.mulf %421, %10 : vector<8x256xf32>
    %423 = arith.addf %422, %15 : vector<8x256xf32>
    %424 = vector.extract_strided_slice %423 {offsets = [0, 0], sizes = [8, 64], strides = [1, 1]} : vector<8x256xf32> to vector<8x64xf32>
    %425 = vector.extract_strided_slice %423 {offsets = [0, 64], sizes = [8, 64], strides = [1, 1]} : vector<8x256xf32> to vector<8x64xf32>
    %426 = vector.extract_strided_slice %423 {offsets = [0, 128], sizes = [8, 64], strides = [1, 1]} : vector<8x256xf32> to vector<8x64xf32>
    %427 = vector.extract_strided_slice %423 {offsets = [0, 192], sizes = [8, 64], strides = [1, 1]} : vector<8x256xf32> to vector<8x64xf32>
    %428 = arith.mulf %425, %396 : vector<8x64xf32>
    %429 = arith.mulf %424, %426 : vector<8x64xf32>
    %430 = arith.addf %428, %429 : vector<8x64xf32>
    %431 = math.tanh %430 : vector<8x64xf32>
    %432 = arith.mulf %427, %431 : vector<8x64xf32>
    %433 = tpu.concatenate %415, %432 in 1 : vector<8x64xf32>, vector<8x64xf32> -> vector<8x128xf32>
    %c2_116 = arith.constant 2 : index
    %c0_117 = arith.constant 0 : index
    %c0_118 = arith.constant 0 : index
    %434 = vector.load %arg1[%c2_116, %c0_117, %c0_118] : memref<3x128x256xf32, #tpu.memory_space<vmem>>, vector<1x128x256xf32>
    %435 = vector.shape_cast %434 : vector<1x128x256xf32> to vector<128x256xf32>
    %cst_119 = arith.constant dense<0.000000e+00> : vector<8x256xf32>
    %436 = tpu.matmul %433, %435, %cst_119 {dimension_numbers = #tpu.dot_dimension_numbers<[1], [0], [0], [1], [0, 0, 1, 1], [], []>} : vector<8x128xf32>, vector<128x256xf32>, vector<8x256xf32> -> vector<8x256xf32>
    %437 = arith.addf %436, %27 : vector<8x256xf32>
    %438 = math.tanh %437 : vector<8x256xf32>
    %439 = arith.mulf %438, %10 : vector<8x256xf32>
    %440 = arith.addf %439, %15 : vector<8x256xf32>
    %441 = vector.extract_strided_slice %440 {offsets = [0, 0], sizes = [8, 64], strides = [1, 1]} : vector<8x256xf32> to vector<8x64xf32>
    %442 = vector.extract_strided_slice %440 {offsets = [0, 64], sizes = [8, 64], strides = [1, 1]} : vector<8x256xf32> to vector<8x64xf32>
    %443 = vector.extract_strided_slice %440 {offsets = [0, 128], sizes = [8, 64], strides = [1, 1]} : vector<8x256xf32> to vector<8x64xf32>
    %444 = vector.extract_strided_slice %440 {offsets = [0, 192], sizes = [8, 64], strides = [1, 1]} : vector<8x256xf32> to vector<8x64xf32>
    %445 = arith.mulf %442, %430 : vector<8x64xf32>
    %446 = arith.mulf %441, %443 : vector<8x64xf32>
    %447 = arith.addf %445, %446 : vector<8x64xf32>
    %448 = math.tanh %447 : vector<8x64xf32>
    %449 = arith.mulf %444, %448 : vector<8x64xf32>
    %c0_120 = arith.constant 0 : index
    %c0_121 = arith.constant 0 : index
    %450 = vector.load %arg3[%c0_120, %c0_121] : memref<64x128xf32, #tpu.memory_space<vmem>>, vector<64x128xf32>
    %cst_122 = arith.constant dense<0.000000e+00> : vector<8x128xf32>
    %451 = tpu.matmul %449, %450, %cst_122 {dimension_numbers = #tpu.dot_dimension_numbers<[1], [0], [0], [1], [0, 0, 1, 1], [], []>} : vector<8x64xf32>, vector<64x128xf32>, vector<8x128xf32> -> vector<8x128xf32>
    %c0_123 = arith.constant 0 : index
    %c0_124 = arith.constant 0 : index
    %452 = vector.load %arg4[%c0_123, %c0_124] : memref<1x128xf32, #tpu.memory_space<vmem>>, vector<1x128xf32>
    %453 = vector.broadcast %452 : vector<1x128xf32> to vector<8x128xf32>
    %454 = arith.addf %451, %453 : vector<8x128xf32>
    %c0_125 = arith.constant 0 : index
    %c0_126 = arith.constant 0 : index
    %455 = vector.load %arg5[%c0_125, %c0_126] : memref<8x128xf32, #tpu.memory_space<vmem>>, vector<8x128xf32>
    tpu.vector_store %arg5[%c0_125, %c0_126], %454 {strides = array<i32>} : memref<8x128xf32, #tpu.memory_space<vmem>>, vector<8x128xf32>,
    return
  }
}

</mosaic_0001>

<llo_original>
// kernel: tpu_custom_call.1
$region0: #{tpu_custom_call.1}
  #allocation0 [shape = 'u32[]', space=smem, size = 0x4, offset = 0x4, fixed_abs, tag = 'smem constant byte address 0x4 - core index']
  #allocation1 [shape = 'u32[144,128]{1,0:T(1,128)}', space=vmem, size = 0x12000, scoped, tag = 'internal scratch']
  %s0 = inlined_call_operand.hbm [shape: f32[64,64], index: 0, kind: input, shape index: {}]
  %s1 = inlined_call_operand.hbm [shape: f32[3,128,256], index: 1, kind: input, shape index: {}]
  %s2 = inlined_call_operand.vmem [shape: f32[3,1,256], index: 2, kind: input, shape index: {}]
  %s3 = inlined_call_operand.hbm [shape: f32[64,128], index: 3, kind: input, shape index: {}]
  %s4 = inlined_call_operand.vmem [shape: f32[1,128], index: 4, kind: input, shape index: {}]
  %s5 = inlined_call_operand.hbm [shape: f32[8,128], index: 5, kind: output, shape index: {}]
  %s6 = sld [smem:[#allocation0]]
  $region42: #{tpu_custom_call.1} parent=0
    _
  %s8 = ssub.s32 1, %s6
  %s9 = scalar_select 0, %s8, %s6
  $region1: #{tpu_custom_call.1} parent=0
    #allocation2 [shape = 'u8[32768]{0}', space=vmem, size = 0x8000, scoped, tag = 'input window, operand 0, single buffered']
    #allocation3 [shape = 's32[1]{0}', space=sflag, size = 0x4, scoped, tag = 'scoped memory for tpu_custom_call.1']
    #allocation4 [shape = 's32[1]{0}', space=sflag, size = 0x4, scoped, tag = 'scoped memory for tpu_custom_call.1']
    #allocation5 [shape = 'u8[393216]{0}', space=vmem, size = 0x60000, scoped, tag = 'input window, operand 1, single buffered']
    #allocation6 [shape = 's32[1]{0}', space=sflag, size = 0x4, scoped, tag = 'scoped memory for tpu_custom_call.1']
    #allocation7 [shape = 'u8[32768]{0}', space=vmem, size = 0x8000, scoped, tag = 'input window, operand 3, single buffered']
    #allocation8 [shape = 'u8[4096]{0}', space=vmem, size = 0x1000, scoped, tag = 'output window, operand 0, single buffered']
    %10 = vsyncpa [#allocation3], 0
    %11 = vsyncpa [#allocation6], 0
    %12 = vsyncpa [#allocation4], 0
    // Predicated region
    $region2: #{tpu_custom_call.1} parent=1 // pred_check
      _
    $region3: #{tpu_custom_call.1} parent=1 // pred_check_branch
      %14 = sbr.rel (0) target = $region5
    $region4: #{tpu_custom_call.1} parent=1 // pred_region
      %s16 = ssub.s32 1024, 1024
      %17 = vsyncadd [#allocation3], %s16
      %s18 = sshll.u32 [#allocation2], 4
      %s19 = int_to_ptr.vmem [resolvable:$true] %s18
      %24 = dma.hbm_to_vmem [thread:$0]  %s0, 1024, %s19, [#allocation3], 128, 128, 8
    $region5: #{tpu_custom_call.1} parent=1 // pred_fallthru
      _
    // Predicated region
    $region6: #{tpu_custom_call.1} parent=1 // pred_check
      _
    $region7: #{tpu_custom_call.1} parent=1 // pred_check_branch
      %26 = sbr.rel (0) target = $region9
    $region8: #{tpu_custom_call.1} parent=1 // pred_region
      %s28 = ssub.s32 12288, 12288
      %29 = vsyncadd [#allocation6], %s28
      %s30 = sshll.u32 [#allocation5], 4
      %s31 = int_to_ptr.vmem [resolvable:$true] %s30
      %36 = dma.hbm_to_vmem [thread:$0]  %s1, 12288, %s31, [#allocation6], 256, 256, 16
    $region9: #{tpu_custom_call.1} parent=1 // pred_fallthru
      _
    // Predicated region
    $region10: #{tpu_custom_call.1} parent=1 // pred_check
      _
    $region11: #{tpu_custom_call.1} parent=1 // pred_check_branch
      %38 = sbr.rel (0) target = $region13
    $region12: #{tpu_custom_call.1} parent=1 // pred_region
      _
    $region13: #{tpu_custom_call.1} parent=1 // pred_fallthru
      _
    // Predicated region
    $region14: #{tpu_custom_call.1} parent=1 // pred_check
      _
    $region15: #{tpu_custom_call.1} parent=1 // pred_check_branch
      %40 = sbr.rel (0) target = $region17
    $region16: #{tpu_custom_call.1} parent=1 // pred_region
      %s42 = ssub.s32 1024, 1024
      %43 = vsyncadd [#allocation6], %s42
      %s44 = sshll.u32 [#allocation7], 4
      %s45 = int_to_ptr.vmem [resolvable:$true] %s44
      %50 = dma.hbm_to_vmem [thread:$0]  %s3, 1024, %s45, [#allocation6], 128, 128, 8
    $region17: #{tpu_custom_call.1} parent=1 // pred_fallthru
      _
    // Predicated region
    $region18: #{tpu_custom_call.1} parent=1 // pred_check
      _
    $region19: #{tpu_custom_call.1} parent=1 // pred_check_branch
      %52 = sbr.rel (0) target = $region21
    $region20: #{tpu_custom_call.1} parent=1 // pred_region
      _
    $region21: #{tpu_custom_call.1} parent=1 // pred_fallthru
      _
    // Predicated region
    $region22: #{tpu_custom_call.1} parent=1 // pred_check
      _
    $region23: #{tpu_custom_call.1} parent=1 // pred_check_branch
      %54 = sbr.rel (0) target = $region25
    $region24: #{tpu_custom_call.1} parent=1 // pred_region
      %55 = dma.done [#allocation3], 1024
    $region25: #{tpu_custom_call.1} parent=1 // pred_fallthru
      _
    // Predicated region
    $region26: #{tpu_custom_call.1} parent=1 // pred_check
      _
    $region27: #{tpu_custom_call.1} parent=1 // pred_check_branch
      %57 = sbr.rel (0) target = $region29
    $region28: #{tpu_custom_call.1} parent=1 // pred_region
      %58 = dma.done [#allocation6], 12288
    $region29: #{tpu_custom_call.1} parent=1 // pred_fallthru
      _
    // Predicated region
    $region30: #{tpu_custom_call.1} parent=1 // pred_check
      _
    $region31: #{tpu_custom_call.1} parent=1 // pred_check_branch
      %60 = sbr.rel (0) target = $region33
    $region32: #{tpu_custom_call.1} parent=1 // pred_region
      %61 = dma.done [#allocation6], 1024
    $region33: #{tpu_custom_call.1} parent=1 // pred_fallthru
      _
    %v62 = vlaneseq
    %v63 = vand.u32 %v62, 127
    %v64 = vadd.s32 %v63, 128
    %vm65 = vcmp.ge.s32.totalorder %v63, 128
    %vm66 = vcmp.ge.s32.totalorder %v64, 128
    %vm67 = vcmp.lt.s32.totalorder %v63, 192
    %vm68 = vcmp.lt.s32.totalorder %v64, 192
    %vm69 = vmand %vm65, %vm67
    %vm70 = vmand %vm66, %vm68
    %v71 = vsel %vm69, 1.0, 0.5
    %v72 = vsel %vm70, 1.0, 0.5
    %v73 = vsel %vm69, 0.0, 0.5
    %v74 = vsel %vm70, 0.0, 0.5
    %v75 = vld [vmem:[%s2] sm:$0x3]
    %v77 = vlaneseq
    %v78 = vshrl.u32 %v77, 7
    %v79 = vsub.s32 0, %v78
    %v80 = vrot.slane %v75, %v79
    %v81 = vlaneseq
    %v82 = vshrl.u32 %v81, 7
    %v83 = vsub.s32 1, %v82
    %v84 = vrot.slane %v75, %v83
    %s87 = scalar_lea.vmem %s2, 2
    %v88 = vld [vmem:[%s87] sm:$0x3]
    %v90 = vlaneseq
    %v91 = vshrl.u32 %v90, 7
    %v92 = vsub.s32 0, %v91
    %v93 = vrot.slane %v88, %v92
    %v94 = vlaneseq
    %v95 = vshrl.u32 %v94, 7
    %v96 = vsub.s32 1, %v95
    %v97 = vrot.slane %v88, %v96
    %s100 = scalar_lea.vmem %s2, 4
    %v101 = vld [vmem:[%s100] sm:$0x3]
    %v103 = vlaneseq
    %v104 = vshrl.u32 %v103, 7
    %v105 = vsub.s32 0, %v104
    %v106 = vrot.slane %v101, %v105
    %v107 = vlaneseq
    %v108 = vshrl.u32 %v107, 7
    %v109 = vsub.s32 1, %v108
    %v110 = vrot.slane %v101, %v109
    %v113 = vld [vmem:[#allocation2] sm:$0xff]
    %vm114 = vcmask 523264
    %v115 = vsel %vm114, %v113, 0.0
    %v116 = vld [vmem:[#allocation5] sm:$0xff]
    %v117 = vld [vmem:[#allocation5 + $0x8] sm:$0xff]
    %v118 = vld [vmem:[#allocation5 + $0x10] sm:$0xff]
    %v119 = vld [vmem:[#allocation5 + $0x18] sm:$0xff]
    %v120 = vld [vmem:[#allocation5 + $0x20] sm:$0xff]
    %v121 = vld [vmem:[#allocation5 + $0x28] sm:$0xff]
    %v122 = vld [vmem:[#allocation5 + $0x30] sm:$0xff]
    %v123 = vld [vmem:[#allocation5 + $0x38] sm:$0xff]
    %v124 = vld [vmem:[#allocation5 + $0x40] sm:$0xff]
    %v125 = vld [vmem:[#allocation5 + $0x48] sm:$0xff]
    %v126 = vld [vmem:[#allocation5 + $0x50] sm:$0xff]
    %v127 = vld [vmem:[#allocation5 + $0x58] sm:$0xff]
    %v128 = vld [vmem:[#allocation5 + $0x60] sm:$0xff]
    %v129 = vld [vmem:[#allocation5 + $0x68] sm:$0xff]
    %v130 = vld [vmem:[#allocation5 + $0x70] sm:$0xff]
    %v131 = vld [vmem:[#allocation5 + $0x78] sm:$0xff]
    %v132 = vld [vmem:[#allocation5 + $0x80] sm:$0xff]
    %v133 = vld [vmem:[#allocation5 + $0x88] sm:$0xff]
    %v134 = vld [vmem:[#allocation5 + $0x90] sm:$0xff]
    %v135 = vld [vmem:[#allocation5 + $0x98] sm:$0xff]
    %v136 = vld [vmem:[#allocation5 + $0xa0] sm:$0xff]
    %v137 = vld [vmem:[#allocation5 + $0xa8] sm:$0xff]
    %v138 = vld [vmem:[#allocation5 + $0xb0] sm:$0xff]
    %v139 = vld [vmem:[#allocation5 + $0xb8] sm:$0xff]
    %v140 = vld [vmem:[#allocation5 + $0xc0] sm:$0xff]
    %v141 = vld [vmem:[#allocation5 + $0xc8] sm:$0xff]
    %v142 = vld [vmem:[#allocation5 + $0xd0] sm:$0xff]
    %v143 = vld [vmem:[#allocation5 + $0xd8] sm:$0xff]
    %v144 = vld [vmem:[#allocation5 + $0xe0] sm:$0xff]
    %v145 = vld [vmem:[#allocation5 + $0xe8] sm:$0xff]
    %v146 = vld [vmem:[#allocation5 + $0xf0] sm:$0xff]
    %v147 = vld [vmem:[#allocation5 + $0xf8] sm:$0xff]
    %148 = vmatprep.subr.mxu0 %v117
    %149 = vmatpush1.msra.mxu0 %v116
    %150 = vmatprep.subr.mxu0 %v119
    %151 = vmatpush1.msra.mxu0 %v118
    %152 = vmatprep.subr.mxu0 %v121
    %153 = vmatpush1.msra.mxu0 %v120
    %154 = vmatprep.subr.mxu0 %v123
    %155 = vmatpush1.msra.mxu0 %v122
    %156 = vmatprep.subr.mxu0 %v125
    %157 = vmatpush1.msra.mxu0 %v124
    %158 = vmatprep.subr.mxu0 %v127
    %159 = vmatpush1.msra.mxu0 %v126
    %160 = vmatprep.subr.mxu0 %v129
    %161 = vmatpush1.msra.mxu0 %v128
    %162 = vmatprep.subr.mxu0 %v131
    %163 = vmatpush1.msra.mxu0 %v130
    %164 = vmatprep.subr.mxu0 %v133
    %165 = vmatpush1.msra.mxu0 %v132
    %166 = vmatprep.subr.mxu0 %v135
    %167 = vmatpush1.msra.mxu0 %v134
    %168 = vmatprep.subr.mxu0 %v137
    %169 = vmatpush1.msra.mxu0 %v136
    %170 = vmatprep.subr.mxu0 %v139
    %171 = vmatpush1.msra.mxu0 %v138
    %172 = vmatprep.subr.mxu0 %v141
    %173 = vmatpush1.msra.mxu0 %v140
    %174 = vmatprep.subr.mxu0 %v143
    %175 = vmatpush1.msra.mxu0 %v142
    %176 = vmatprep.subr.mxu0 %v145
    %177 = vmatpush1.msra.mxu0 %v144
    %178 = vmatprep.subr.mxu0 %v147
    %179 = vmatpush1.msra.mxu0 %v146
    %180 = vmatprep.subr.mxu0 0.0
    %181 = vmatpush1.msra.mxu0 0.0
    %182 = vmatprep.subr.mxu0 0.0
    %183 = vmatpush1.msra.mxu0 0.0
    %184 = vmatprep.subr.mxu0 0.0
    %185 = vmatpush1.msra.mxu0 0.0
    %186 = vmatprep.subr.mxu0 0.0
    %187 = vmatpush1.msra.mxu0 0.0
    %188 = vmatprep.subr.mxu0 0.0
    %189 = vmatpush1.msra.mxu0 0.0
    %190 = vmatprep.subr.mxu0 0.0
    %191 = vmatpush1.msra.mxu0 0.0
    %192 = vmatprep.subr.mxu0 0.0
    %193 = vmatpush1.msra.mxu0 0.0
    %194 = vmatprep.subr.mxu0 0.0
    %195 = vmatpush1.msra.mxu0 0.0
    %196 = vmatprep.subr.mxu0 0.0
    %197 = vmatpush1.msra.mxu0 0.0
    %198 = vmatprep.subr.mxu0 0.0
    %199 = vmatpush1.msra.mxu0 0.0
    %200 = vmatprep.subr.mxu0 0.0
    %201 = vmatpush1.msra.mxu0 0.0
    %202 = vmatprep.subr.mxu0 0.0
    %203 = vmatpush1.msra.mxu0 0.0
    %204 = vmatprep.subr.mxu0 0.0
    %205 = vmatpush1.msra.mxu0 0.0
    %206 = vmatprep.subr.mxu0 0.0
    %207 = vmatpush1.msra.mxu0 0.0
    %208 = vmatprep.subr.mxu0 0.0
    %209 = vmatpush1.msra.mxu0 0.0
    %210 = vmatprep.subr.mxu0 0.0
    %211 = vmatpush1.msra.mxu0 0.0
    %212 = vmatprep.mubr.f32.mxu0 0.0
    %213 = vmatmul.mubr.f32.gmra.mrb[0].mxu0 %v115
    %v214 = vpop.f32.mrb[0].mxu0
    %v215 = vadd.f32 %v80, %v214
    %v216 = vpop.f32.mrb[0].mxu0
    %v217 = vadd.f32 %v84, %v216
    %218 = vdwg.mxu0
    %v219 = vtanh.pop %v215
    %v220 = vtanh.pop %v217
    %v221 = vmul.f32 %v219, %v71
    %v222 = vmul.f32 %v220, %v72
    %v223 = vadd.f32 %v221, %v73
    %v224 = vadd.f32 %v222, %v74
    %v225 = vmul.f32 %v223, 0.0
    %v226 = vmul.f32 %v223, %v224
    %228 = vrot.lane.b32.xlu0 %v226, 64
    %v229 = vpop.permute.xlu0 %228
    %v231 = vadd.f32 %v225, %v229
    %v232 = vtanh.pop %v231
    %v233 = vmul.f32 %v224, %v232
    %v234 = vld [vmem:[#allocation2 + $0x8] sm:$0xff]
    %v235 = vsel %vm114, %v234, %v233
    %236 = vmatprep.subr.mxu0 %v117
    %237 = vmatpush1.msra.mxu0 %v116
    %238 = vmatprep.subr.mxu0 %v119
    %239 = vmatpush1.msra.mxu0 %v118
    %240 = vmatprep.subr.mxu0 %v121
    %241 = vmatpush1.msra.mxu0 %v120
    %242 = vmatprep.subr.mxu0 %v123
    %243 = vmatpush1.msra.mxu0 %v122
    %244 = vmatprep.subr.mxu0 %v125
    %245 = vmatpush1.msra.mxu0 %v124
    %246 = vmatprep.subr.mxu0 %v127
    %247 = vmatpush1.msra.mxu0 %v126
    %248 = vmatprep.subr.mxu0 %v129
    %249 = vmatpush1.msra.mxu0 %v128
    %250 = vmatprep.subr.mxu0 %v131
    %251 = vmatpush1.msra.mxu0 %v130
    %252 = vmatprep.subr.mxu0 %v133
    %253 = vmatpush1.msra.mxu0 %v132
    %254 = vmatprep.subr.mxu0 %v135
    %255 = vmatpush1.msra.mxu0 %v134
    %256 = vmatprep.subr.mxu0 %v137
    %257 = vmatpush1.msra.mxu0 %v136
    %258 = vmatprep.subr.mxu0 %v139
    %259 = vmatpush1.msra.mxu0 %v138
    %260 = vmatprep.subr.mxu0 %v141
    %261 = vmatpush1.msra.mxu0 %v140
    %262 = vmatprep.subr.mxu0 %v143
    %263 = vmatpush1.msra.mxu0 %v142
    %264 = vmatprep.subr.mxu0 %v145
    %265 = vmatpush1.msra.mxu0 %v144
    %266 = vmatprep.subr.mxu0 %v147
    %267 = vmatpush1.msra.mxu0 %v146
    %268 = vmatprep.subr.mxu0 0.0
    %269 = vmatpush1.msra.mxu0 0.0
    %270 = vmatprep.subr.mxu0 0.0
    %271 = vmatpush1.msra.mxu0 0.0
    %272 = vmatprep.subr.mxu0 0.0
    %273 = vmatpush1.msra.mxu0 0.0
    %274 = vmatprep.subr.mxu0 0.0
    %275 = vmatpush1.msra.mxu0 0.0
    %276 = vmatprep.subr.mxu0 0.0
    %277 = vmatpush1.msra.mxu0 0.0
    %278 = vmatprep.subr.mxu0 0.0
    %279 = vmatpush1.msra.mxu0 0.0
    %280 = vmatprep.subr.mxu0 0.0
    %281 = vmatpush1.msra.mxu0 0.0
    %282 = vmatprep.subr.mxu0 0.0
    %283 = vmatpush1.msra.mxu0 0.0
    %284 = vmatprep.subr.mxu0 0.0
    %285 = vmatpush1.msra.mxu0 0.0
    %286 = vmatprep.subr.mxu0 0.0
    %287 = vmatpush1.msra.mxu0 0.0
    %288 = vmatprep.subr.mxu0 0.0
    %289 = vmatpush1.msra.mxu0 0.0
    %290 = vmatprep.subr.mxu0 0.0
    %291 = vmatpush1.msra.mxu0 0.0
    %292 = vmatprep.subr.mxu0 0.0
    %293 = vmatpush1.msra.mxu0 0.0
    %294 = vmatprep.subr.mxu0 0.0
    %295 = vmatpush1.msra.mxu0 0.0
    %296 = vmatprep.subr.mxu0 0.0
    %297 = vmatpush1.msra.mxu0 0.0
    %298 = vmatprep.subr.mxu0 0.0
    %299 = vmatpush1.msra.mxu0 0.0
    %300 = vmatprep.mubr.f32.mxu0 0.0
    %301 = vmatmul.mubr.f32.gmra.mrb[0].mxu0 %v235
    %v302 = vpop.f32.mrb[0].mxu0
    %v303 = vadd.f32 %v80, %v302
    %v304 = vpop.f32.mrb[0].mxu0
    %v305 = vadd.f32 %v84, %v304
    %306 = vdwg.mxu0
    %v307 = vtanh.pop %v303
    %v308 = vtanh.pop %v305
    %v309 = vmul.f32 %v307, %v71
    %v310 = vmul.f32 %v308, %v72
    %v311 = vadd.f32 %v309, %v73
    %v312 = vadd.f32 %v310, %v74
    %v313 = vmul.f32 %v311, %v231
    %v314 = vmul.f32 %v311, %v312
    %316 = vrot.lane.b32.xlu0 %v314, 64
    %v317 = vpop.permute.xlu0 %316
    %v319 = vadd.f32 %v313, %v317
    %v320 = vtanh.pop %v319
    %v321 = vmul.f32 %v312, %v320
    %323 = vrot.lane.b32.xlu0 %v233, 64
    %v324 = vpop.permute.xlu0 %323
    %v326 = vsel %vm114, %v324, 0.0
    %s327 = scalar_lea.vmem [#allocation5], 256
    %v328 = vld [vmem:[%s327] sm:$0xff]
    %v329 = vld [vmem:[%s327 + $0x8] sm:$0xff]
    %v330 = vld [vmem:[%s327 + $0x10] sm:$0xff]
    %v331 = vld [vmem:[%s327 + $0x18] sm:$0xff]
    %v332 = vld [vmem:[%s327 + $0x20] sm:$0xff]
    %v333 = vld [vmem:[%s327 + $0x28] sm:$0xff]
    %v334 = vld [vmem:[%s327 + $0x30] sm:$0xff]
    %v335 = vld [vmem:[%s327 + $0x38] sm:$0xff]
    %v336 = vld [vmem:[%s327 + $0x40] sm:$0xff]
    %v337 = vld [vmem:[%s327 + $0x48] sm:$0xff]
    %v338 = vld [vmem:[%s327 + $0x50] sm:$0xff]
    %v339 = vld [vmem:[%s327 + $0x58] sm:$0xff]
    %v340 = vld [vmem:[%s327 + $0x60] sm:$0xff]
    %v341 = vld [vmem:[%s327 + $0x68] sm:$0xff]
    %v342 = vld [vmem:[%s327 + $0x70] sm:$0xff]
    %v343 = vld [vmem:[%s327 + $0x78] sm:$0xff]
    %v344 = vld [vmem:[%s327 + $0x80] sm:$0xff]
    %v345 = vld [vmem:[%s327 + $0x88] sm:$0xff]
    %v346 = vld [vmem:[%s327 + $0x90] sm:$0xff]
    %v347 = vld [vmem:[%s327 + $0x98] sm:$0xff]
    %v348 = vld [vmem:[%s327 + $0xa0] sm:$0xff]
    %v349 = vld [vmem:[%s327 + $0xa8] sm:$0xff]
    %v350 = vld [vmem:[%s327 + $0xb0] sm:$0xff]
    %v351 = vld [vmem:[%s327 + $0xb8] sm:$0xff]
    %v352 = vld [vmem:[%s327 + $0xc0] sm:$0xff]
    %v353 = vld [vmem:[%s327 + $0xc8] sm:$0xff]
    %v354 = vld [vmem:[%s327 + $0xd0] sm:$0xff]
    %v355 = vld [vmem:[%s327 + $0xd8] sm:$0xff]
    %v356 = vld [vmem:[%s327 + $0xe0] sm:$0xff]
    %v357 = vld [vmem:[%s327 + $0xe8] sm:$0xff]
    %v358 = vld [vmem:[%s327 + $0xf0] sm:$0xff]
    %v359 = vld [vmem:[%s327 + $0xf8] sm:$0xff]
    %360 = vmatprep.subr.mxu0 %v329
    %361 = vmatpush1.msra.mxu0 %v328
    %362 = vmatprep.subr.mxu0 %v331
    %363 = vmatpush1.msra.mxu0 %v330
    %364 = vmatprep.subr.mxu0 %v333
    %365 = vmatpush1.msra.mxu0 %v332
    %366 = vmatprep.subr.mxu0 %v335
    %367 = vmatpush1.msra.mxu0 %v334
    %368 = vmatprep.subr.mxu0 %v337
    %369 = vmatpush1.msra.mxu0 %v336
    %370 = vmatprep.subr.mxu0 %v339
    %371 = vmatpush1.msra.mxu0 %v338
    %372 = vmatprep.subr.mxu0 %v341
    %373 = vmatpush1.msra.mxu0 %v340
    %374 = vmatprep.subr.mxu0 %v343
    %375 = vmatpush1.msra.mxu0 %v342
    %376 = vmatprep.subr.mxu0 %v345
    %377 = vmatpush1.msra.mxu0 %v344
    %378 = vmatprep.subr.mxu0 %v347
    %379 = vmatpush1.msra.mxu0 %v346
    %380 = vmatprep.subr.mxu0 %v349
    %381 = vmatpush1.msra.mxu0 %v348
    %382 = vmatprep.subr.mxu0 %v351
    %383 = vmatpush1.msra.mxu0 %v350
    %384 = vmatprep.subr.mxu0 %v353
    %385 = vmatpush1.msra.mxu0 %v352
    %386 = vmatprep.subr.mxu0 %v355
    %387 = vmatpush1.msra.mxu0 %v354
    %388 = vmatprep.subr.mxu0 %v357
    %389 = vmatpush1.msra.mxu0 %v356
    %390 = vmatprep.subr.mxu0 %v359
    %391 = vmatpush1.msra.mxu0 %v358
    %392 = vmatprep.subr.mxu0 0.0
    %393 = vmatpush1.msra.mxu0 0.0
    %394 = vmatprep.subr.mxu0 0.0
    %395 = vmatpush1.msra.mxu0 0.0
    %396 = vmatprep.subr.mxu0 0.0
    %397 = vmatpush1.msra.mxu0 0.0
    %398 = vmatprep.subr.mxu0 0.0
    %399 = vmatpush1.msra.mxu0 0.0
    %400 = vmatprep.subr.mxu0 0.0
    %401 = vmatpush1.msra.mxu0 0.0
    %402 = vmatprep.subr.mxu0 0.0
    %403 = vmatpush1.msra.mxu0 0.0
    %404 = vmatprep.subr.mxu0 0.0
    %405 = vmatpush1.msra.mxu0 0.0
    %406 = vmatprep.subr.mxu0 0.0
    %407 = vmatpush1.msra.mxu0 0.0
    %408 = vmatprep.subr.mxu0 0.0
    %409 = vmatpush1.msra.mxu0 0.0
    %410 = vmatprep.subr.mxu0 0.0
    %411 = vmatpush1.msra.mxu0 0.0
    %412 = vmatprep.subr.mxu0 0.0
    %413 = vmatpush1.msra.mxu0 0.0
    %414 = vmatprep.subr.mxu0 0.0
    %415 = vmatpush1.msra.mxu0 0.0
    %416 = vmatprep.subr.mxu0 0.0
    %417 = vmatpush1.msra.mxu0 0.0
    %418 = vmatprep.subr.mxu0 0.0
    %419 = vmatpush1.msra.mxu0 0.0
    %420 = vmatprep.subr.mxu0 0.0
    %421 = vmatpush1.msra.mxu0 0.0
    %422 = vmatprep.subr.mxu0 0.0
    %423 = vmatpush1.msra.mxu0 0.0
    %424 = vmatprep.mubr.f32.mxu0 0.0
    %425 = vmatmul.mubr.f32.gmra.mrb[0].mxu0 %v326
    %v426 = vpop.f32.mrb[0].mxu0
    %v427 = vadd.f32 %v93, %v426
    %v428 = vpop.f32.mrb[0].mxu0
    %v429 = vadd.f32 %v97, %v428
    %430 = vdwg.mxu0
    %v431 = vtanh.pop %v427
    %v432 = vtanh.pop %v429
    %v433 = vmul.f32 %v431, %v71
    %v434 = vmul.f32 %v432, %v72
    %v435 = vadd.f32 %v433, %v73
    %v436 = vadd.f32 %v434, %v74
    %v437 = vmul.f32 %v435, 0.0
    %v438 = vmul.f32 %v435, %v436
    %440 = vrot.lane.b32.xlu0 %v438, 64
    %v441 = vpop.permute.xlu0 %440
    %v443 = vadd.f32 %v437, %v441
    %v444 = vtanh.pop %v443
    %v445 = vmul.f32 %v436, %v444
    %v446 = vld [vmem:[#allocation2 + $0x10] sm:$0xff]
    %v447 = vsel %vm114, %v446, %v321
    %448 = vmatprep.subr.mxu0 %v117
    %449 = vmatpush1.msra.mxu0 %v116
    %450 = vmatprep.subr.mxu0 %v119
    %451 = vmatpush1.msra.mxu0 %v118
    %452 = vmatprep.subr.mxu0 %v121
    %453 = vmatpush1.msra.mxu0 %v120
    %454 = vmatprep.subr.mxu0 %v123
    %455 = vmatpush1.msra.mxu0 %v122
    %456 = vmatprep.subr.mxu0 %v125
    %457 = vmatpush1.msra.mxu0 %v124
    %458 = vmatprep.subr.mxu0 %v127
    %459 = vmatpush1.msra.mxu0 %v126
    %460 = vmatprep.subr.mxu0 %v129
    %461 = vmatpush1.msra.mxu0 %v128
    %462 = vmatprep.subr.mxu0 %v131
    %463 = vmatpush1.msra.mxu0 %v130
    %464 = vmatprep.subr.mxu0 %v133
    %465 = vmatpush1.msra.mxu0 %v132
    %466 = vmatprep.subr.mxu0 %v135
    %467 = vmatpush1.msra.mxu0 %v134
    %468 = vmatprep.subr.mxu0 %v137
    %469 = vmatpush1.msra.mxu0 %v136
    %470 = vmatprep.subr.mxu0 %v139
    %471 = vmatpush1.msra.mxu0 %v138
    %472 = vmatprep.subr.mxu0 %v141
    %473 = vmatpush1.msra.mxu0 %v140
    %474 = vmatprep.subr.mxu0 %v143
    %475 = vmatpush1.msra.mxu0 %v142
    %476 = vmatprep.subr.mxu0 %v145
    %477 = vmatpush1.msra.mxu0 %v144
    %478 = vmatprep.subr.mxu0 %v147
    %479 = vmatpush1.msra.mxu0 %v146
    %480 = vmatprep.subr.mxu0 0.0
    %481 = vmatpush1.msra.mxu0 0.0
    %482 = vmatprep.subr.mxu0 0.0
    %483 = vmatpush1.msra.mxu0 0.0
    %484 = vmatprep.subr.mxu0 0.0
    %485 = vmatpush1.msra.mxu0 0.0
    %486 = vmatprep.subr.mxu0 0.0
    %487 = vmatpush1.msra.mxu0 0.0
    %488 = vmatprep.subr.mxu0 0.0
    %489 = vmatpush1.msra.mxu0 0.0
    %490 = vmatprep.subr.mxu0 0.0
    %491 = vmatpush1.msra.mxu0 0.0
    %492 = vmatprep.subr.mxu0 0.0
    %493 = vmatpush1.msra.mxu0 0.0
    %494 = vmatprep.subr.mxu0 0.0
    %495 = vmatpush1.msra.mxu0 0.0
    %496 = vmatprep.subr.mxu0 0.0
    %497 = vmatpush1.msra.mxu0 0.0
    %498 = vmatprep.subr.mxu0 0.0
    %499 = vmatpush1.msra.mxu0 0.0
    %500 = vmatprep.subr.mxu0 0.0
    %501 = vmatpush1.msra.mxu0 0.0
    %502 = vmatprep.subr.mxu0 0.0
    %503 = vmatpush1.msra.mxu0 0.0
    %504 = vmatprep.subr.mxu0 0.0
    %505 = vmatpush1.msra.mxu0 0.0
    %506 = vmatprep.subr.mxu0 0.0
    %507 = vmatpush1.msra.mxu0 0.0
    %508 = vmatprep.subr.mxu0 0.0
    %509 = vmatpush1.msra.mxu0 0.0
    %510 = vmatprep.subr.mxu0 0.0
    %511 = vmatpush1.msra.mxu0 0.0
    %512 = vmatprep.mubr.f32.mxu0 0.0
    %513 = vmatmul.mubr.f32.gmra.mrb[0].mxu0 %v447
    %v514 = vpop.f32.mrb[0].mxu0
    %v515 = vadd.f32 %v80, %v514
    %v516 = vpop.f32.mrb[0].mxu0
    %v517 = vadd.f32 %v84, %v516
    %518 = vdwg.mxu0
    %v519 = vtanh.pop %v515
    %v520 = vtanh.pop %v517
    %v521 = vmul.f32 %v519, %v71
    %v522 = vmul.f32 %v520, %v72
    %v523 = vadd.f32 %v521, %v73
    %v524 = vadd.f32 %v522, %v74
    %v525 = vmul.f32 %v523, %v319
    %v526 = vmul.f32 %v523, %v524
    %528 = vrot.lane.b32.xlu0 %v526, 64
    %v529 = vpop.permute.xlu0 %528
    %v531 = vadd.f32 %v525, %v529
    %v532 = vtanh.pop %v531
    %v533 = vmul.f32 %v524, %v532
    %535 = vrot.lane.b32.xlu0 %v321, 64
    %v536 = vpop.permute.xlu0 %535
    %v538 = vsel %vm114, %v536, %v445
    %539 = vmatprep.subr.mxu0 %v329
    %540 = vmatpush1.msra.mxu0 %v328
    %541 = vmatprep.subr.mxu0 %v331
    %542 = vmatpush1.msra.mxu0 %v330
    %543 = vmatprep.subr.mxu0 %v333
    %544 = vmatpush1.msra.mxu0 %v332
    %545 = vmatprep.subr.mxu0 %v335
    %546 = vmatpush1.msra.mxu0 %v334
    %547 = vmatprep.subr.mxu0 %v337
    %548 = vmatpush1.msra.mxu0 %v336
    %549 = vmatprep.subr.mxu0 %v339
    %550 = vmatpush1.msra.mxu0 %v338
    %551 = vmatprep.subr.mxu0 %v341
    %552 = vmatpush1.msra.mxu0 %v340
    %553 = vmatprep.subr.mxu0 %v343
    %554 = vmatpush1.msra.mxu0 %v342
    %555 = vmatprep.subr.mxu0 %v345
    %556 = vmatpush1.msra.mxu0 %v344
    %557 = vmatprep.subr.mxu0 %v347
    %558 = vmatpush1.msra.mxu0 %v346
    %559 = vmatprep.subr.mxu0 %v349
    %560 = vmatpush1.msra.mxu0 %v348
    %561 = vmatprep.subr.mxu0 %v351
    %562 = vmatpush1.msra.mxu0 %v350
    %563 = vmatprep.subr.mxu0 %v353
    %564 = vmatpush1.msra.mxu0 %v352
    %565 = vmatprep.subr.mxu0 %v355
    %566 = vmatpush1.msra.mxu0 %v354
    %567 = vmatprep.subr.mxu0 %v357
    %568 = vmatpush1.msra.mxu0 %v356
    %569 = vmatprep.subr.mxu0 %v359
    %570 = vmatpush1.msra.mxu0 %v358
    %571 = vmatprep.subr.mxu0 0.0
    %572 = vmatpush1.msra.mxu0 0.0
    %573 = vmatprep.subr.mxu0 0.0
    %574 = vmatpush1.msra.mxu0 0.0
    %575 = vmatprep.subr.mxu0 0.0
    %576 = vmatpush1.msra.mxu0 0.0
    %577 = vmatprep.subr.mxu0 0.0
    %578 = vmatpush1.msra.mxu0 0.0
    %579 = vmatprep.subr.mxu0 0.0
    %580 = vmatpush1.msra.mxu0 0.0
    %581 = vmatprep.subr.mxu0 0.0
    %582 = vmatpush1.msra.mxu0 0.0
    %583 = vmatprep.subr.mxu0 0.0
    %584 = vmatpush1.msra.mxu0 0.0
    %585 = vmatprep.subr.mxu0 0.0
    %586 = vmatpush1.msra.mxu0 0.0
    %587 = vmatprep.subr.mxu0 0.0
    %588 = vmatpush1.msra.mxu0 0.0
    %589 = vmatprep.subr.mxu0 0.0
    %590 = vmatpush1.msra.mxu0 0.0
    %591 = vmatprep.subr.mxu0 0.0
    %592 = vmatpush1.msra.mxu0 0.0
    %593 = vmatprep.subr.mxu0 0.0
    %594 = vmatpush1.msra.mxu0 0.0
    %595 = vmatprep.subr.mxu0 0.0
    %596 = vmatpush1.msra.mxu0 0.0
    %597 = vmatprep.subr.mxu0 0.0
    %598 = vmatpush1.msra.mxu0 0.0
    %599 = vmatprep.subr.mxu0 0.0
    %600 = vmatpush1.msra.mxu0 0.0
    %601 = vmatprep.subr.mxu0 0.0
    %602 = vmatpush1.msra.mxu0 0.0
    %603 = vmatprep.mubr.f32.mxu0 0.0
    %604 = vmatmul.mubr.f32.gmra.mrb[0].mxu0 %v538
    %v605 = vpop.f32.mrb[0].mxu0
    %v606 = vadd.f32 %v93, %v605
    %v607 = vpop.f32.mrb[0].mxu0
    %v608 = vadd.f32 %v97, %v607
    %609 = vdwg.mxu0
    %v610 = vtanh.pop %v606
    %v611 = vtanh.pop %v608
    %v612 = vmul.f32 %v610, %v71
    %v613 = vmul.f32 %v611, %v72
    %v614 = vadd.f32 %v612, %v73
    %v615 = vadd.f32 %v613, %v74
    %v616 = vmul.f32 %v614, %v443
    %v617 = vmul.f32 %v614, %v615
    %619 = vrot.lane.b32.xlu0 %v617, 64
    %v620 = vpop.permute.xlu0 %619
    %v622 = vadd.f32 %v616, %v620
    %v623 = vtanh.pop %v622
    %v624 = vmul.f32 %v615, %v623
    %626 = vrot.lane.b32.xlu0 %v445, 64
    %v627 = vpop.permute.xlu0 %626
    %v629 = vsel %vm114, %v627, 0.0
    %s630 = scalar_lea.vmem [#allocation5], 512
    %v631 = vld [vmem:[%s630] sm:$0xff]
    %v632 = vld [vmem:[%s630 + $0x8] sm:$0xff]
    %v633 = vld [vmem:[%s630 + $0x10] sm:$0xff]
    %v634 = vld [vmem:[%s630 + $0x18] sm:$0xff]
    %v635 = vld [vmem:[%s630 + $0x20] sm:$0xff]
    %v636 = vld [vmem:[%s630 + $0x28] sm:$0xff]
    %v637 = vld [vmem:[%s630 + $0x30] sm:$0xff]
    %v638 = vld [vmem:[%s630 + $0x38] sm:$0xff]
    %v639 = vld [vmem:[%s630 + $0x40] sm:$0xff]
    %v640 = vld [vmem:[%s630 + $0x48] sm:$0xff]
    %v641 = vld [vmem:[%s630 + $0x50] sm:$0xff]
    %v642 = vld [vmem:[%s630 + $0x58] sm:$0xff]
    %v643 = vld [vmem:[%s630 + $0x60] sm:$0xff]
    %v644 = vld [vmem:[%s630 + $0x68] sm:$0xff]
    %v645 = vld [vmem:[%s630 + $0x70] sm:$0xff]
    %v646 = vld [vmem:[%s630 + $0x78] sm:$0xff]
    %v647 = vld [vmem:[%s630 + $0x80] sm:$0xff]
    %v648 = vld [vmem:[%s630 + $0x88] sm:$0xff]
    %v649 = vld [vmem:[%s630 + $0x90] sm:$0xff]
    %v650 = vld [vmem:[%s630 + $0x98] sm:$0xff]
    %v651 = vld [vmem:[%s630 + $0xa0] sm:$0xff]
    %v652 = vld [vmem:[%s630 + $0xa8] sm:$0xff]
    %v653 = vld [vmem:[%s630 + $0xb0] sm:$0xff]
    %v654 = vld [vmem:[%s630 + $0xb8] sm:$0xff]
    %v655 = vld [vmem:[%s630 + $0xc0] sm:$0xff]
    %v656 = vld [vmem:[%s630 + $0xc8] sm:$0xff]
    %v657 = vld [vmem:[%s630 + $0xd0] sm:$0xff]
    %v658 = vld [vmem:[%s630 + $0xd8] sm:$0xff]
    %v659 = vld [vmem:[%s630 + $0xe0] sm:$0xff]
    %v660 = vld [vmem:[%s630 + $0xe8] sm:$0xff]
    %v661 = vld [vmem:[%s630 + $0xf0] sm:$0xff]
    %v662 = vld [vmem:[%s630 + $0xf8] sm:$0xff]
    %663 = vmatprep.subr.mxu0 %v632
    %664 = vmatpush1.msra.mxu0 %v631
    %665 = vmatprep.subr.mxu0 %v634
    %666 = vmatpush1.msra.mxu0 %v633
    %667 = vmatprep.subr.mxu0 %v636
    %668 = vmatpush1.msra.mxu0 %v635
    %669 = vmatprep.subr.mxu0 %v638
    %670 = vmatpush1.msra.mxu0 %v637
    %671 = vmatprep.subr.mxu0 %v640
    %672 = vmatpush1.msra.mxu0 %v639
    %673 = vmatprep.subr.mxu0 %v642
    %674 = vmatpush1.msra.mxu0 %v641
    %675 = vmatprep.subr.mxu0 %v644
    %676 = vmatpush1.msra.mxu0 %v643
    %677 = vmatprep.subr.mxu0 %v646
    %678 = vmatpush1.msra.mxu0 %v645
    %679 = vmatprep.subr.mxu0 %v648
    %680 = vmatpush1.msra.mxu0 %v647
    %681 = vmatprep.subr.mxu0 %v650
    %682 = vmatpush1.msra.mxu0 %v649
    %683 = vmatprep.subr.mxu0 %v652
    %684 = vmatpush1.msra.mxu0 %v651
    %685 = vmatprep.subr.mxu0 %v654
    %686 = vmatpush1.msra.mxu0 %v653
    %687 = vmatprep.subr.mxu0 %v656
    %688 = vmatpush1.msra.mxu0 %v655
    %689 = vmatprep.subr.mxu0 %v658
    %690 = vmatpush1.msra.mxu0 %v657
    %691 = vmatprep.subr.mxu0 %v660
    %692 = vmatpush1.msra.mxu0 %v659
    %693 = vmatprep.subr.mxu0 %v662
    %694 = vmatpush1.msra.mxu0 %v661
    %695 = vmatprep.subr.mxu0 0.0
    %696 = vmatpush1.msra.mxu0 0.0
    %697 = vmatprep.subr.mxu0 0.0
    %698 = vmatpush1.msra.mxu0 0.0
    %699 = vmatprep.subr.mxu0 0.0
    %700 = vmatpush1.msra.mxu0 0.0
    %701 = vmatprep.subr.mxu0 0.0
    %702 = vmatpush1.msra.mxu0 0.0
    %703 = vmatprep.subr.mxu0 0.0
    %704 = vmatpush1.msra.mxu0 0.0
    %705 = vmatprep.subr.mxu0 0.0
    %706 = vmatpush1.msra.mxu0 0.0
    %707 = vmatprep.subr.mxu0 0.0
    %708 = vmatpush1.msra.mxu0 0.0
    %709 = vmatprep.subr.mxu0 0.0
    %710 = vmatpush1.msra.mxu0 0.0
    %711 = vmatprep.subr.mxu0 0.0
    %712 = vmatpush1.msra.mxu0 0.0
    %713 = vmatprep.subr.mxu0 0.0
    %714 = vmatpush1.msra.mxu0 0.0
    %715 = vmatprep.subr.mxu0 0.0
    %716 = vmatpush1.msra.mxu0 0.0
    %717 = vmatprep.subr.mxu0 0.0
    %718 = vmatpush1.msra.mxu0 0.0
    %719 = vmatprep.subr.mxu0 0.0
    %720 = vmatpush1.msra.mxu0 0.0
    %721 = vmatprep.subr.mxu0 0.0
    %722 = vmatpush1.msra.mxu0 0.0
    %723 = vmatprep.subr.mxu0 0.0
    %724 = vmatpush1.msra.mxu0 0.0
    %725 = vmatprep.subr.mxu0 0.0
    %726 = vmatpush1.msra.mxu0 0.0
    %727 = vmatprep.mubr.f32.mxu0 0.0
    %728 = vmatmul.mubr.f32.gmra.mrb[0].mxu0 %v629
    %v729 = vpop.f32.mrb[0].mxu0
    %v730 = vadd.f32 %v106, %v729
    %v731 = vpop.f32.mrb[0].mxu0
    %v732 = vadd.f32 %v110, %v731
    %733 = vdwg.mxu0
    %v734 = vtanh.pop %v730
    %v735 = vtanh.pop %v732
    %v736 = vmul.f32 %v734, %v71
    %v737 = vmul.f32 %v735, %v72
    %v738 = vadd.f32 %v736, %v73
    %v739 = vadd.f32 %v737, %v74
    %v740 = vmul.f32 %v738, 0.0
    %v741 = vmul.f32 %v738, %v739
    %743 = vrot.lane.b32.xlu0 %v741, 64
    %v744 = vpop.permute.xlu0 %743
    %v746 = vadd.f32 %v740, %v744
    %v747 = vtanh.pop %v746
    %v748 = vmul.f32 %v739, %v747
    %v749 = vld [vmem:[#allocation2 + $0x18] sm:$0xff]
    %v750 = vsel %vm114, %v749, %v533
    %751 = vmatprep.subr.mxu0 %v117
    %752 = vmatpush1.msra.mxu0 %v116
    %753 = vmatprep.subr.mxu0 %v119
    %754 = vmatpush1.msra.mxu0 %v118
    %755 = vmatprep.subr.mxu0 %v121
    %756 = vmatpush1.msra.mxu0 %v120
    %757 = vmatprep.subr.mxu0 %v123
    %758 = vmatpush1.msra.mxu0 %v122
    %759 = vmatprep.subr.mxu0 %v125
    %760 = vmatpush1.msra.mxu0 %v124
    %761 = vmatprep.subr.mxu0 %v127
    %762 = vmatpush1.msra.mxu0 %v126
    %763 = vmatprep.subr.mxu0 %v129
    %764 = vmatpush1.msra.mxu0 %v128
    %765 = vmatprep.subr.mxu0 %v131
    %766 = vmatpush1.msra.mxu0 %v130
    %767 = vmatprep.subr.mxu0 %v133
    %768 = vmatpush1.msra.mxu0 %v132
    %769 = vmatprep.subr.mxu0 %v135
    %770 = vmatpush1.msra.mxu0 %v134
    %771 = vmatprep.subr.mxu0 %v137
    %772 = vmatpush1.msra.mxu0 %v136
    %773 = vmatprep.subr.mxu0 %v139
    %774 = vmatpush1.msra.mxu0 %v138
    %775 = vmatprep.subr.mxu0 %v141
    %776 = vmatpush1.msra.mxu0 %v140
    %777 = vmatprep.subr.mxu0 %v143
    %778 = vmatpush1.msra.mxu0 %v142
    %779 = vmatprep.subr.mxu0 %v145
    %780 = vmatpush1.msra.mxu0 %v144
    %781 = vmatprep.subr.mxu0 %v147
    %782 = vmatpush1.msra.mxu0 %v146
    %783 = vmatprep.subr.mxu0 0.0
    %784 = vmatpush1.msra.mxu0 0.0
    %785 = vmatprep.subr.mxu0 0.0
    %786 = vmatpush1.msra.mxu0 0.0
    %787 = vmatprep.subr.mxu0 0.0
    %788 = vmatpush1.msra.mxu0 0.0
    %789 = vmatprep.subr.mxu0 0.0
    %790 = vmatpush1.msra.mxu0 0.0
    %791 = vmatprep.subr.mxu0 0.0
    %792 = vmatpush1.msra.mxu0 0.0
    %793 = vmatprep.subr.mxu0 0.0
    %794 = vmatpush1.msra.mxu0 0.0
    %795 = vmatprep.subr.mxu0 0.0
    %796 = vmatpush1.msra.mxu0 0.0
    %797 = vmatprep.subr.mxu0 0.0
    %798 = vmatpush1.msra.mxu0 0.0
    %799 = vmatprep.subr.mxu0 0.0
    %800 = vmatpush1.msra.mxu0 0.0
    %801 = vmatprep.subr.mxu0 0.0
    %802 = vmatpush1.msra.mxu0 0.0
    %803 = vmatprep.subr.mxu0 0.0
    %804 = vmatpush1.msra.mxu0 0.0
    %805 = vmatprep.subr.mxu0 0.0
    %806 = vmatpush1.msra.mxu0 0.0
    %807 = vmatprep.subr.mxu0 0.0
    %808 = vmatpush1.msra.mxu0 0.0
    %809 = vmatprep.subr.mxu0 0.0
    %810 = vmatpush1.msra.mxu0 0.0
    %811 = vmatprep.subr.mxu0 0.0
    %812 = vmatpush1.msra.mxu0 0.0
    %813 = vmatprep.subr.mxu0 0.0
    %814 = vmatpush1.msra.mxu0 0.0
    %815 = vmatprep.mubr.f32.mxu0 0.0
    %816 = vmatmul.mubr.f32.gmra.mrb[0].mxu0 %v750
    %v817 = vpop.f32.mrb[0].mxu0
    %v818 = vadd.f32 %v80, %v817
    %v819 = vpop.f32.mrb[0].mxu0
    %v820 = vadd.f32 %v84, %v819
    %821 = vdwg.mxu0
    %v822 = vtanh.pop %v818
    %v823 = vtanh.pop %v820
    %v824 = vmul.f32 %v822, %v71
    %v825 = vmul.f32 %v823, %v72
    %v826 = vadd.f32 %v824, %v73
    %v827 = vadd.f32 %v825, %v74
    %v828 = vmul.f32 %v826, %v531
    %v829 = vmul.f32 %v826, %v827
    %831 = vrot.lane.b32.xlu0 %v829, 64
    %v832 = vpop.permute.xlu0 %831
    %v834 = vadd.f32 %v828, %v832
    %v835 = vtanh.pop %v834
    %v836 = vmul.f32 %v827, %v835
    %838 = vrot.lane.b32.xlu0 %v533, 64
    %v839 = vpop.permute.xlu0 %838
    %v841 = vsel %vm114, %v839, %v624
    %842 = vmatprep.subr.mxu0 %v329
    %843 = vmatpush1.msra.mxu0 %v328
    %844 = vmatprep.subr.mxu0 %v331
    %845 = vmatpush1.msra.mxu0 %v330
    %846 = vmatprep.subr.mxu0 %v333
    %847 = vmatpush1.msra.mxu0 %v332
    %848 = vmatprep.subr.mxu0 %v335
    %849 = vmatpush1.msra.mxu0 %v334
    %850 = vmatprep.subr.mxu0 %v337
    %851 = vmatpush1.msra.mxu0 %v336
    %852 = vmatprep.subr.mxu0 %v339
    %853 = vmatpush1.msra.mxu0 %v338
    %854 = vmatprep.subr.mxu0 %v341
    %855 = vmatpush1.msra.mxu0 %v340
    %856 = vmatprep.subr.mxu0 %v343
    %857 = vmatpush1.msra.mxu0 %v342
    %858 = vmatprep.subr.mxu0 %v345
    %859 = vmatpush1.msra.mxu0 %v344
    %860 = vmatprep.subr.mxu0 %v347
    %861 = vmatpush1.msra.mxu0 %v346
    %862 = vmatprep.subr.mxu0 %v349
    %863 = vmatpush1.msra.mxu0 %v348
    %864 = vmatprep.subr.mxu0 %v351
    %865 = vmatpush1.msra.mxu0 %v350
    %866 = vmatprep.subr.mxu0 %v353
    %867 = vmatpush1.msra.mxu0 %v352
    %868 = vmatprep.subr.mxu0 %v355
    %869 = vmatpush1.msra.mxu0 %v354
    %870 = vmatprep.subr.mxu0 %v357
    %871 = vmatpush1.msra.mxu0 %v356
    %872 = vmatprep.subr.mxu0 %v359
    %873 = vmatpush1.msra.mxu0 %v358
    %874 = vmatprep.subr.mxu0 0.0
    %875 = vmatpush1.msra.mxu0 0.0
    %876 = vmatprep.subr.mxu0 0.0
    %877 = vmatpush1.msra.mxu0 0.0
    %878 = vmatprep.subr.mxu0 0.0
    %879 = vmatpush1.msra.mxu0 0.0
    %880 = vmatprep.subr.mxu0 0.0
    %881 = vmatpush1.msra.mxu0 0.0
    %882 = vmatprep.subr.mxu0 0.0
    %883 = vmatpush1.msra.mxu0 0.0
    %884 = vmatprep.subr.mxu0 0.0
    %885 = vmatpush1.msra.mxu0 0.0
    %886 = vmatprep.subr.mxu0 0.0
    %887 = vmatpush1.msra.mxu0 0.0
    %888 = vmatprep.subr.mxu0 0.0
    %889 = vmatpush1.msra.mxu0 0.0
    %890 = vmatprep.subr.mxu0 0.0
    %891 = vmatpush1.msra.mxu0 0.0
    %892 = vmatprep.subr.mxu0 0.0
    %893 = vmatpush1.msra.mxu0 0.0
    %894 = vmatprep.subr.mxu0 0.0
    %895 = vmatpush1.msra.mxu0 0.0
    %896 = vmatprep.subr.mxu0 0.0
    %897 = vmatpush1.msra.mxu0 0.0
    %898 = vmatprep.subr.mxu0 0.0
    %899 = vmatpush1.msra.mxu0 0.0
    %900 = vmatprep.subr.mxu0 0.0
    %901 = vmatpush1.msra.mxu0 0.0
    %902 = vmatprep.subr.mxu0 0.0
    %903 = vmatpush1.msra.mxu0 0.0
    %904 = vmatprep.subr.mxu0 0.0
    %905 = vmatpush1.msra.mxu0 0.0
    %906 = vmatprep.mubr.f32.mxu0 0.0
    %907 = vmatmul.mubr.f32.gmra.mrb[0].mxu0 %v841
    %v908 = vpop.f32.mrb[0].mxu0
    %v909 = vadd.f32 %v93, %v908
    %v910 = vpop.f32.mrb[0].mxu0
    %v911 = vadd.f32 %v97, %v910
    %912 = vdwg.mxu0
    %v913 = vtanh.pop %v909
    %v914 = vtanh.pop %v911
    %v915 = vmul.f32 %v913, %v71
    %v916 = vmul.f32 %v914, %v72
    %v917 = vadd.f32 %v915, %v73
    %v918 = vadd.f32 %v916, %v74
    %v919 = vmul.f32 %v917, %v622
    %v920 = vmul.f32 %v917, %v918
    %922 = vrot.lane.b32.xlu0 %v920, 64
    %v923 = vpop.permute.xlu0 %922
    %v925 = vadd.f32 %v919, %v923
    %v926 = vtanh.pop %v925
    %v927 = vmul.f32 %v918, %v926
    %929 = vrot.lane.b32.xlu0 %v624, 64
    %v930 = vpop.permute.xlu0 %929
    %v932 = vsel %vm114, %v930, %v748
    %933 = vmatprep.subr.mxu0 %v632
    %934 = vmatpush1.msra.mxu0 %v631
    %935 = vmatprep.subr.mxu0 %v634
    %936 = vmatpush1.msra.mxu0 %v633
    %937 = vmatprep.subr.mxu0 %v636
    %938 = vmatpush1.msra.mxu0 %v635
    %939 = vmatprep.subr.mxu0 %v638
    %940 = vmatpush1.msra.mxu0 %v637
    %941 = vmatprep.subr.mxu0 %v640
    %942 = vmatpush1.msra.mxu0 %v639
    %943 = vmatprep.subr.mxu0 %v642
    %944 = vmatpush1.msra.mxu0 %v641
    %945 = vmatprep.subr.mxu0 %v644
    %946 = vmatpush1.msra.mxu0 %v643
    %947 = vmatprep.subr.mxu0 %v646
    %948 = vmatpush1.msra.mxu0 %v645
    %949 = vmatprep.subr.mxu0 %v648
    %950 = vmatpush1.msra.mxu0 %v647
    %951 = vmatprep.subr.mxu0 %v650
    %952 = vmatpush1.msra.mxu0 %v649
    %953 = vmatprep.subr.mxu0 %v652
    %954 = vmatpush1.msra.mxu0 %v651
    %955 = vmatprep.subr.mxu0 %v654
    %956 = vmatpush1.msra.mxu0 %v653
    %957 = vmatprep.subr.mxu0 %v656
    %958 = vmatpush1.msra.mxu0 %v655
    %959 = vmatprep.subr.mxu0 %v658
    %960 = vmatpush1.msra.mxu0 %v657
    %961 = vmatprep.subr.mxu0 %v660
    %962 = vmatpush1.msra.mxu0 %v659
    %963 = vmatprep.subr.mxu0 %v662
    %964 = vmatpush1.msra.mxu0 %v661
    %965 = vmatprep.subr.mxu0 0.0
    %966 = vmatpush1.msra.mxu0 0.0
    %967 = vmatprep.subr.mxu0 0.0
    %968 = vmatpush1.msra.mxu0 0.0
    %969 = vmatprep.subr.mxu0 0.0
    %970 = vmatpush1.msra.mxu0 0.0
    %971 = vmatprep.subr.mxu0 0.0
    %972 = vmatpush1.msra.mxu0 0.0
    %973 = vmatprep.subr.mxu0 0.0
    %974 = vmatpush1.msra.mxu0 0.0
    %975 = vmatprep.subr.mxu0 0.0
    %976 = vmatpush1.msra.mxu0 0.0
    %977 = vmatprep.subr.mxu0 0.0
    %978 = vmatpush1.msra.mxu0 0.0
    %979 = vmatprep.subr.mxu0 0.0
    %980 = vmatpush1.msra.mxu0 0.0
    %981 = vmatprep.subr.mxu0 0.0
    %982 = vmatpush1.msra.mxu0 0.0
    %983 = vmatprep.subr.mxu0 0.0
    %984 = vmatpush1.msra.mxu0 0.0
    %985 = vmatprep.subr.mxu0 0.0
    %986 = vmatpush1.msra.mxu0 0.0
    %987 = vmatprep.subr.mxu0 0.0
    %988 = vmatpush1.msra.mxu0 0.0
    %989 = vmatprep.subr.mxu0 0.0
    %990 = vmatpush1.msra.mxu0 0.0
    %991 = vmatprep.subr.mxu0 0.0
    %992 = vmatpush1.msra.mxu0 0.0
    %993 = vmatprep.subr.mxu0 0.0
    %994 = vmatpush1.msra.mxu0 0.0
    %995 = vmatprep.subr.mxu0 0.0
    %996 = vmatpush1.msra.mxu0 0.0
    %997 = vmatprep.mubr.f32.mxu0 0.0
    %998 = vmatmul.mubr.f32.gmra.mrb[0].mxu0 %v932
    %v999 = vpop.f32.mrb[0].mxu0
    %v1000 = vadd.f32 %v106, %v999
    %v1001 = vpop.f32.mrb[0].mxu0
    %v1002 = vadd.f32 %v110, %v1001
    %1003 = vdwg.mxu0
    %v1004 = vtanh.pop %v1000
    %v1005 = vtanh.pop %v1002
    %v1006 = vmul.f32 %v1004, %v71
    %v1007 = vmul.f32 %v1005, %v72
    %v1008 = vadd.f32 %v1006, %v73
    %v1009 = vadd.f32 %v1007, %v74
    %v1010 = vmul.f32 %v1008, %v746
    %v1011 = vmul.f32 %v1008, %v1009
    %1013 = vrot.lane.b32.xlu0 %v1011, 64
    %v1014 = vpop.permute.xlu0 %1013
    %v1016 = vadd.f32 %v1010, %v1014
    %v1017 = vtanh.pop %v1016
    %v1018 = vmul.f32 %v1009, %v1017
    %v1019 = vld [vmem:[#allocation2 + $0x20] sm:$0xff]
    %v1020 = vsel %vm114, %v1019, %v836
    %1021 = vmatprep.subr.mxu0 %v117
    %1022 = vmatpush1.msra.mxu0 %v116
    %1023 = vmatprep.subr.mxu0 %v119
    %1024 = vmatpush1.msra.mxu0 %v118
    %1025 = vmatprep.subr.mxu0 %v121
    %1026 = vmatpush1.msra.mxu0 %v120
    %1027 = vmatprep.subr.mxu0 %v123
    %1028 = vmatpush1.msra.mxu0 %v122
    %1029 = vmatprep.subr.mxu0 %v125
    %1030 = vmatpush1.msra.mxu0 %v124
    %1031 = vmatprep.subr.mxu0 %v127
    %1032 = vmatpush1.msra.mxu0 %v126
    %1033 = vmatprep.subr.mxu0 %v129
    %1034 = vmatpush1.msra.mxu0 %v128
    %1035 = vmatprep.subr.mxu0 %v131
    %1036 = vmatpush1.msra.mxu0 %v130
    %1037 = vmatprep.subr.mxu0 %v133
    %1038 = vmatpush1.msra.mxu0 %v132
    %1039 = vmatprep.subr.mxu0 %v135
    %1040 = vmatpush1.msra.mxu0 %v134
    %1041 = vmatprep.subr.mxu0 %v137
    %1042 = vmatpush1.msra.mxu0 %v136
    %1043 = vmatprep.subr.mxu0 %v139
    %1044 = vmatpush1.msra.mxu0 %v138
    %1045 = vmatprep.subr.mxu0 %v141
    %1046 = vmatpush1.msra.mxu0 %v140
    %1047 = vmatprep.subr.mxu0 %v143
    %1048 = vmatpush1.msra.mxu0 %v142
    %1049 = vmatprep.subr.mxu0 %v145
    %1050 = vmatpush1.msra.mxu0 %v144
    %1051 = vmatprep.subr.mxu0 %v147
    %1052 = vmatpush1.msra.mxu0 %v146
    %1053 = vmatprep.subr.mxu0 0.0
    %1054 = vmatpush1.msra.mxu0 0.0
    %1055 = vmatprep.subr.mxu0 0.0
    %1056 = vmatpush1.msra.mxu0 0.0
    %1057 = vmatprep.subr.mxu0 0.0
    %1058 = vmatpush1.msra.mxu0 0.0
    %1059 = vmatprep.subr.mxu0 0.0
    %1060 = vmatpush1.msra.mxu0 0.0
    %1061 = vmatprep.subr.mxu0 0.0
    %1062 = vmatpush1.msra.mxu0 0.0
    %1063 = vmatprep.subr.mxu0 0.0
    %1064 = vmatpush1.msra.mxu0 0.0
    %1065 = vmatprep.subr.mxu0 0.0
    %1066 = vmatpush1.msra.mxu0 0.0
    %1067 = vmatprep.subr.mxu0 0.0
    %1068 = vmatpush1.msra.mxu0 0.0
    %1069 = vmatprep.subr.mxu0 0.0
    %1070 = vmatpush1.msra.mxu0 0.0
    %1071 = vmatprep.subr.mxu0 0.0
    %1072 = vmatpush1.msra.mxu0 0.0
    %1073 = vmatprep.subr.mxu0 0.0
    %1074 = vmatpush1.msra.mxu0 0.0
    %1075 = vmatprep.subr.mxu0 0.0
    %1076 = vmatpush1.msra.mxu0 0.0
    %1077 = vmatprep.subr.mxu0 0.0
    %1078 = vmatpush1.msra.mxu0 0.0
    %1079 = vmatprep.subr.mxu0 0.0
    %1080 = vmatpush1.msra.mxu0 0.0
    %1081 = vmatprep.subr.mxu0 0.0
    %1082 = vmatpush1.msra.mxu0 0.0
    %1083 = vmatprep.subr.mxu0 0.0
    %1084 = vmatpush1.msra.mxu0 0.0
    %1085 = vmatprep.mubr.f32.mxu0 0.0
    %1086 = vmatmul.mubr.f32.gmra.mrb[0].mxu0 %v1020
    %v1087 = vpop.f32.mrb[0].mxu0
    %v1088 = vadd.f32 %v80, %v1087
    %v1089 = vpop.f32.mrb[0].mxu0
    %v1090 = vadd.f32 %v84, %v1089
    %1091 = vdwg.mxu0
    %v1092 = vtanh.pop %v1088
    %v1093 = vtanh.pop %v1090
    %v1094 = vmul.f32 %v1092, %v71
    %v1095 = vmul.f32 %v1093, %v72
    %v1096 = vadd.f32 %v1094, %v73
    %v1097 = vadd.f32 %v1095, %v74
    %v1098 = vmul.f32 %v1096, %v834
    %v1099 = vmul.f32 %v1096, %v1097
    %1101 = vrot.lane.b32.xlu0 %v1099, 64
    %v1102 = vpop.permute.xlu0 %1101
    %v1104 = vadd.f32 %v1098, %v1102
    %v1105 = vtanh.pop %v1104
    %v1106 = vmul.f32 %v1097, %v1105
    %1108 = vrot.lane.b32.xlu0 %v836, 64
    %v1109 = vpop.permute.xlu0 %1108
    %v1111 = vsel %vm114, %v1109, %v927
    %1112 = vmatprep.subr.mxu0 %v329
    %1113 = vmatpush1.msra.mxu0 %v328
    %1114 = vmatprep.subr.mxu0 %v331
    %1115 = vmatpush1.msra.mxu0 %v330
    %1116 = vmatprep.subr.mxu0 %v333
    %1117 = vmatpush1.msra.mxu0 %v332
    %1118 = vmatprep.subr.mxu0 %v335
    %1119 = vmatpush1.msra.mxu0 %v334
    %1120 = vmatprep.subr.mxu0 %v337
    %1121 = vmatpush1.msra.mxu0 %v336
    %1122 = vmatprep.subr.mxu0 %v339
    %1123 = vmatpush1.msra.mxu0 %v338
    %1124 = vmatprep.subr.mxu0 %v341
    %1125 = vmatpush1.msra.mxu0 %v340
    %1126 = vmatprep.subr.mxu0 %v343
    %1127 = vmatpush1.msra.mxu0 %v342
    %1128 = vmatprep.subr.mxu0 %v345
    %1129 = vmatpush1.msra.mxu0 %v344
    %1130 = vmatprep.subr.mxu0 %v347
    %1131 = vmatpush1.msra.mxu0 %v346
    %1132 = vmatprep.subr.mxu0 %v349
    %1133 = vmatpush1.msra.mxu0 %v348
    %1134 = vmatprep.subr.mxu0 %v351
    %1135 = vmatpush1.msra.mxu0 %v350
    %1136 = vmatprep.subr.mxu0 %v353
    %1137 = vmatpush1.msra.mxu0 %v352
    %1138 = vmatprep.subr.mxu0 %v355
    %1139 = vmatpush1.msra.mxu0 %v354
    %1140 = vmatprep.subr.mxu0 %v357
    %1141 = vmatpush1.msra.mxu0 %v356
    %1142 = vmatprep.subr.mxu0 %v359
    %1143 = vmatpush1.msra.mxu0 %v358
    %1144 = vmatprep.subr.mxu0 0.0
    %1145 = vmatpush1.msra.mxu0 0.0
    %1146 = vmatprep.subr.mxu0 0.0
    %1147 = vmatpush1.msra.mxu0 0.0
    %1148 = vmatprep.subr.mxu0 0.0
    %1149 = vmatpush1.msra.mxu0 0.0
    %1150 = vmatprep.subr.mxu0 0.0
    %1151 = vmatpush1.msra.mxu0 0.0
    %1152 = vmatprep.subr.mxu0 0.0
    %1153 = vmatpush1.msra.mxu0 0.0
    %1154 = vmatprep.subr.mxu0 0.0
    %1155 = vmatpush1.msra.mxu0 0.0
    %1156 = vmatprep.subr.mxu0 0.0
    %1157 = vmatpush1.msra.mxu0 0.0
    %1158 = vmatprep.subr.mxu0 0.0
    %1159 = vmatpush1.msra.mxu0 0.0
    %1160 = vmatprep.subr.mxu0 0.0
    %1161 = vmatpush1.msra.mxu0 0.0
    %1162 = vmatprep.subr.mxu0 0.0
    %1163 = vmatpush1.msra.mxu0 0.0
    %1164 = vmatprep.subr.mxu0 0.0
    %1165 = vmatpush1.msra.mxu0 0.0
    %1166 = vmatprep.subr.mxu0 0.0
    %1167 = vmatpush1.msra.mxu0 0.0
    %1168 = vmatprep.subr.mxu0 0.0
    %1169 = vmatpush1.msra.mxu0 0.0
    %1170 = vmatprep.subr.mxu0 0.0
    %1171 = vmatpush1.msra.mxu0 0.0
    %1172 = vmatprep.subr.mxu0 0.0
    %1173 = vmatpush1.msra.mxu0 0.0
    %1174 = vmatprep.subr.mxu0 0.0
    %1175 = vmatpush1.msra.mxu0 0.0
    %1176 = vmatprep.mubr.f32.mxu0 0.0
    %1177 = vmatmul.mubr.f32.gmra.mrb[0].mxu0 %v1111
    %v1178 = vpop.f32.mrb[0].mxu0
    %v1179 = vadd.f32 %v93, %v1178
    %v1180 = vpop.f32.mrb[0].mxu0
    %v1181 = vadd.f32 %v97, %v1180
    %1182 = vdwg.mxu0
    %v1183 = vtanh.pop %v1179
    %v1184 = vtanh.pop %v1181
    %v1185 = vmul.f32 %v1183, %v71
    %v1186 = vmul.f32 %v1184, %v72
    %v1187 = vadd.f32 %v1185, %v73
    %v1188 = vadd.f32 %v1186, %v74
    %v1189 = vmul.f32 %v1187, %v925
    %v1190 = vmul.f32 %v1187, %v1188
    %1192 = vrot.lane.b32.xlu0 %v1190, 64
    %v1193 = vpop.permute.xlu0 %1192
    %v1195 = vadd.f32 %v1189, %v1193
    %v1196 = vtanh.pop %v1195
    %v1197 = vmul.f32 %v1188, %v1196
    %1199 = vrot.lane.b32.xlu0 %v927, 64
    %v1200 = vpop.permute.xlu0 %1199
    %v1202 = vsel %vm114, %v1200, %v1018
    %1203 = vmatprep.subr.mxu0 %v632
    %1204 = vmatpush1.msra.mxu0 %v631
    %1205 = vmatprep.subr.mxu0 %v634
    %1206 = vmatpush1.msra.mxu0 %v633
    %1207 = vmatprep.subr.mxu0 %v636
    %1208 = vmatpush1.msra.mxu0 %v635
    %1209 = vmatprep.subr.mxu0 %v638
    %1210 = vmatpush1.msra.mxu0 %v637
    %1211 = vmatprep.subr.mxu0 %v640
    %1212 = vmatpush1.msra.mxu0 %v639
    %1213 = vmatprep.subr.mxu0 %v642
    %1214 = vmatpush1.msra.mxu0 %v641
    %1215 = vmatprep.subr.mxu0 %v644
    %1216 = vmatpush1.msra.mxu0 %v643
    %1217 = vmatprep.subr.mxu0 %v646
    %1218 = vmatpush1.msra.mxu0 %v645
    %1219 = vmatprep.subr.mxu0 %v648
    %1220 = vmatpush1.msra.mxu0 %v647
    %1221 = vmatprep.subr.mxu0 %v650
    %1222 = vmatpush1.msra.mxu0 %v649
    %1223 = vmatprep.subr.mxu0 %v652
    %1224 = vmatpush1.msra.mxu0 %v651
    %1225 = vmatprep.subr.mxu0 %v654
    %1226 = vmatpush1.msra.mxu0 %v653
    %1227 = vmatprep.subr.mxu0 %v656
    %1228 = vmatpush1.msra.mxu0 %v655
    %1229 = vmatprep.subr.mxu0 %v658
    %1230 = vmatpush1.msra.mxu0 %v657
    %1231 = vmatprep.subr.mxu0 %v660
    %1232 = vmatpush1.msra.mxu0 %v659
    %1233 = vmatprep.subr.mxu0 %v662
    %1234 = vmatpush1.msra.mxu0 %v661
    %1235 = vmatprep.subr.mxu0 0.0
    %1236 = vmatpush1.msra.mxu0 0.0
    %1237 = vmatprep.subr.mxu0 0.0
    %1238 = vmatpush1.msra.mxu0 0.0
    %1239 = vmatprep.subr.mxu0 0.0
    %1240 = vmatpush1.msra.mxu0 0.0
    %1241 = vmatprep.subr.mxu0 0.0
    %1242 = vmatpush1.msra.mxu0 0.0
    %1243 = vmatprep.subr.mxu0 0.0
    %1244 = vmatpush1.msra.mxu0 0.0
    %1245 = vmatprep.subr.mxu0 0.0
    %1246 = vmatpush1.msra.mxu0 0.0
    %1247 = vmatprep.subr.mxu0 0.0
    %1248 = vmatpush1.msra.mxu0 0.0
    %1249 = vmatprep.subr.mxu0 0.0
    %1250 = vmatpush1.msra.mxu0 0.0
    %1251 = vmatprep.subr.mxu0 0.0
    %1252 = vmatpush1.msra.mxu0 0.0
    %1253 = vmatprep.subr.mxu0 0.0
    %1254 = vmatpush1.msra.mxu0 0.0
    %1255 = vmatprep.subr.mxu0 0.0
    %1256 = vmatpush1.msra.mxu0 0.0
    %1257 = vmatprep.subr.mxu0 0.0
    %1258 = vmatpush1.msra.mxu0 0.0
    %1259 = vmatprep.subr.mxu0 0.0
    %1260 = vmatpush1.msra.mxu0 0.0
    %1261 = vmatprep.subr.mxu0 0.0
    %1262 = vmatpush1.msra.mxu0 0.0
    %1263 = vmatprep.subr.mxu0 0.0
    %1264 = vmatpush1.msra.mxu0 0.0
    %1265 = vmatprep.subr.mxu0 0.0
    %1266 = vmatpush1.msra.mxu0 0.0
    %1267 = vmatprep.mubr.f32.mxu0 0.0
    %1268 = vmatmul.mubr.f32.gmra.mrb[0].mxu0 %v1202
    %v1269 = vpop.f32.mrb[0].mxu0
    %v1270 = vadd.f32 %v106, %v1269
    %v1271 = vpop.f32.mrb[0].mxu0
    %v1272 = vadd.f32 %v110, %v1271
    %1273 = vdwg.mxu0
    %v1274 = vtanh.pop %v1270
    %v1275 = vtanh.pop %v1272
    %v1276 = vmul.f32 %v1274, %v71
    %v1277 = vmul.f32 %v1275, %v72
    %v1278 = vadd.f32 %v1276, %v73
    %v1279 = vadd.f32 %v1277, %v74
    %v1280 = vmul.f32 %v1278, %v1016
    %v1281 = vmul.f32 %v1278, %v1279
    %1283 = vrot.lane.b32.xlu0 %v1281, 64
    %v1284 = vpop.permute.xlu0 %1283
    %v1286 = vadd.f32 %v1280, %v1284
    %v1287 = vtanh.pop %v1286
    %v1288 = vmul.f32 %v1279, %v1287
    %v1289 = vld [vmem:[#allocation2 + $0x28] sm:$0xff]
    %v1290 = vsel %vm114, %v1289, %v1106
    %1291 = vmatprep.subr.mxu0 %v117
    %1292 = vmatpush1.msra.mxu0 %v116
    %1293 = vmatprep.subr.mxu0 %v119
    %1294 = vmatpush1.msra.mxu0 %v118
    %1295 = vmatprep.subr.mxu0 %v121
    %1296 = vmatpush1.msra.mxu0 %v120
    %1297 = vmatprep.subr.mxu0 %v123
    %1298 = vmatpush1.msra.mxu0 %v122
    %1299 = vmatprep.subr.mxu0 %v125
    %1300 = vmatpush1.msra.mxu0 %v124
    %1301 = vmatprep.subr.mxu0 %v127
    %1302 = vmatpush1.msra.mxu0 %v126
    %1303 = vmatprep.subr.mxu0 %v129
    %1304 = vmatpush1.msra.mxu0 %v128
    %1305 = vmatprep.subr.mxu0 %v131
    %1306 = vmatpush1.msra.mxu0 %v130
    %1307 = vmatprep.subr.mxu0 %v133
    %1308 = vmatpush1.msra.mxu0 %v132
    %1309 = vmatprep.subr.mxu0 %v135
    %1310 = vmatpush1.msra.mxu0 %v134
    %1311 = vmatprep.subr.mxu0 %v137
    %1312 = vmatpush1.msra.mxu0 %v136
    %1313 = vmatprep.subr.mxu0 %v139
    %1314 = vmatpush1.msra.mxu0 %v138
    %1315 = vmatprep.subr.mxu0 %v141
    %1316 = vmatpush1.msra.mxu0 %v140
    %1317 = vmatprep.subr.mxu0 %v143
    %1318 = vmatpush1.msra.mxu0 %v142
    %1319 = vmatprep.subr.mxu0 %v145
    %1320 = vmatpush1.msra.mxu0 %v144
    %1321 = vmatprep.subr.mxu0 %v147
    %1322 = vmatpush1.msra.mxu0 %v146
    %1323 = vmatprep.subr.mxu0 0.0
    %1324 = vmatpush1.msra.mxu0 0.0
    %1325 = vmatprep.subr.mxu0 0.0
    %1326 = vmatpush1.msra.mxu0 0.0
    %1327 = vmatprep.subr.mxu0 0.0
    %1328 = vmatpush1.msra.mxu0 0.0
    %1329 = vmatprep.subr.mxu0 0.0
    %1330 = vmatpush1.msra.mxu0 0.0
    %1331 = vmatprep.subr.mxu0 0.0
    %1332 = vmatpush1.msra.mxu0 0.0
    %1333 = vmatprep.subr.mxu0 0.0
    %1334 = vmatpush1.msra.mxu0 0.0
    %1335 = vmatprep.subr.mxu0 0.0
    %1336 = vmatpush1.msra.mxu0 0.0
    %1337 = vmatprep.subr.mxu0 0.0
    %1338 = vmatpush1.msra.mxu0 0.0
    %1339 = vmatprep.subr.mxu0 0.0
    %1340 = vmatpush1.msra.mxu0 0.0
    %1341 = vmatprep.subr.mxu0 0.0
    %1342 = vmatpush1.msra.mxu0 0.0
    %1343 = vmatprep.subr.mxu0 0.0
    %1344 = vmatpush1.msra.mxu0 0.0
    %1345 = vmatprep.subr.mxu0 0.0
    %1346 = vmatpush1.msra.mxu0 0.0
    %1347 = vmatprep.subr.mxu0 0.0
    %1348 = vmatpush1.msra.mxu0 0.0
    %1349 = vmatprep.subr.mxu0 0.0
    %1350 = vmatpush1.msra.mxu0 0.0
    %1351 = vmatprep.subr.mxu0 0.0
    %1352 = vmatpush1.msra.mxu0 0.0
    %1353 = vmatprep.subr.mxu0 0.0
    %1354 = vmatpush1.msra.mxu0 0.0
    %1355 = vmatprep.mubr.f32.mxu0 0.0
    %1356 = vmatmul.mubr.f32.gmra.mrb[0].mxu0 %v1290
    %v1357 = vpop.f32.mrb[0].mxu0
    %v1358 = vadd.f32 %v80, %v1357
    %v1359 = vpop.f32.mrb[0].mxu0
    %v1360 = vadd.f32 %v84, %v1359
    %1361 = vdwg.mxu0
    %v1362 = vtanh.pop %v1358
    %v1363 = vtanh.pop %v1360
    %v1364 = vmul.f32 %v1362, %v71
    %v1365 = vmul.f32 %v1363, %v72
    %v1366 = vadd.f32 %v1364, %v73
    %v1367 = vadd.f32 %v1365, %v74
    %v1368 = vmul.f32 %v1366, %v1104
    %v1369 = vmul.f32 %v1366, %v1367
    %1371 = vrot.lane.b32.xlu0 %v1369, 64
    %v1372 = vpop.permute.xlu0 %1371
    %v1374 = vadd.f32 %v1368, %v1372
    %v1375 = vtanh.pop %v1374
    %v1376 = vmul.f32 %v1367, %v1375
    %1378 = vrot.lane.b32.xlu0 %v1106, 64
    %v1379 = vpop.permute.xlu0 %1378
    %v1381 = vsel %vm114, %v1379, %v1197
    %1382 = vmatprep.subr.mxu0 %v329
    %1383 = vmatpush1.msra.mxu0 %v328
    %1384 = vmatprep.subr.mxu0 %v331
    %1385 = vmatpush1.msra.mxu0 %v330
    %1386 = vmatprep.subr.mxu0 %v333
    %1387 = vmatpush1.msra.mxu0 %v332
    %1388 = vmatprep.subr.mxu0 %v335
    %1389 = vmatpush1.msra.mxu0 %v334
    %1390 = vmatprep.subr.mxu0 %v337
    %1391 = vmatpush1.msra.mxu0 %v336
    %1392 = vmatprep.subr.mxu0 %v339
    %1393 = vmatpush1.msra.mxu0 %v338
    %1394 = vmatprep.subr.mxu0 %v341
    %1395 = vmatpush1.msra.mxu0 %v340
    %1396 = vmatprep.subr.mxu0 %v343
    %1397 = vmatpush1.msra.mxu0 %v342
    %1398 = vmatprep.subr.mxu0 %v345
    %1399 = vmatpush1.msra.mxu0 %v344
    %1400 = vmatprep.subr.mxu0 %v347
    %1401 = vmatpush1.msra.mxu0 %v346
    %1402 = vmatprep.subr.mxu0 %v349
    %1403 = vmatpush1.msra.mxu0 %v348
    %1404 = vmatprep.subr.mxu0 %v351
    %1405 = vmatpush1.msra.mxu0 %v350
    %1406 = vmatprep.subr.mxu0 %v353
    %1407 = vmatpush1.msra.mxu0 %v352
    %1408 = vmatprep.subr.mxu0 %v355
    %1409 = vmatpush1.msra.mxu0 %v354
    %1410 = vmatprep.subr.mxu0 %v357
    %1411 = vmatpush1.msra.mxu0 %v356
    %1412 = vmatprep.subr.mxu0 %v359
    %1413 = vmatpush1.msra.mxu0 %v358
    %1414 = vmatprep.subr.mxu0 0.0
    %1415 = vmatpush1.msra.mxu0 0.0
    %1416 = vmatprep.subr.mxu0 0.0
    %1417 = vmatpush1.msra.mxu0 0.0
    %1418 = vmatprep.subr.mxu0 0.0
    %1419 = vmatpush1.msra.mxu0 0.0
    %1420 = vmatprep.subr.mxu0 0.0
    %1421 = vmatpush1.msra.mxu0 0.0
    %1422 = vmatprep.subr.mxu0 0.0
    %1423 = vmatpush1.msra.mxu0 0.0
    %1424 = vmatprep.subr.mxu0 0.0
    %1425 = vmatpush1.msra.mxu0 0.0
    %1426 = vmatprep.subr.mxu0 0.0
    %1427 = vmatpush1.msra.mxu0 0.0
    %1428 = vmatprep.subr.mxu0 0.0
    %1429 = vmatpush1.msra.mxu0 0.0
    %1430 = vmatprep.subr.mxu0 0.0
    %1431 = vmatpush1.msra.mxu0 0.0
    %1432 = vmatprep.subr.mxu0 0.0
    %1433 = vmatpush1.msra.mxu0 0.0
    %1434 = vmatprep.subr.mxu0 0.0
    %1435 = vmatpush1.msra.mxu0 0.0
    %1436 = vmatprep.subr.mxu0 0.0
    %1437 = vmatpush1.msra.mxu0 0.0
    %1438 = vmatprep.subr.mxu0 0.0
    %1439 = vmatpush1.msra.mxu0 0.0
    %1440 = vmatprep.subr.mxu0 0.0
    %1441 = vmatpush1.msra.mxu0 0.0
    %1442 = vmatprep.subr.mxu0 0.0
    %1443 = vmatpush1.msra.mxu0 0.0
    %1444 = vmatprep.subr.mxu0 0.0
    %1445 = vmatpush1.msra.mxu0 0.0
    %1446 = vmatprep.mubr.f32.mxu0 0.0
    %1447 = vmatmul.mubr.f32.gmra.mrb[0].mxu0 %v1381
    %v1448 = vpop.f32.mrb[0].mxu0
    %v1449 = vadd.f32 %v93, %v1448
    %v1450 = vpop.f32.mrb[0].mxu0
    %v1451 = vadd.f32 %v97, %v1450
    %1452 = vdwg.mxu0
    %v1453 = vtanh.pop %v1449
    %v1454 = vtanh.pop %v1451
    %v1455 = vmul.f32 %v1453, %v71
    %v1456 = vmul.f32 %v1454, %v72
    %v1457 = vadd.f32 %v1455, %v73
    %v1458 = vadd.f32 %v1456, %v74
    %v1459 = vmul.f32 %v1457, %v1195
    %v1460 = vmul.f32 %v1457, %v1458
    %1462 = vrot.lane.b32.xlu0 %v1460, 64
    %v1463 = vpop.permute.xlu0 %1462
    %v1465 = vadd.f32 %v1459, %v1463
    %v1466 = vtanh.pop %v1465
    %v1467 = vmul.f32 %v1458, %v1466
    %1469 = vrot.lane.b32.xlu0 %v1197, 64
    %v1470 = vpop.permute.xlu0 %1469
    %v1472 = vsel %vm114, %v1470, %v1288
    %1473 = vmatprep.subr.mxu0 %v632
    %1474 = vmatpush1.msra.mxu0 %v631
    %1475 = vmatprep.subr.mxu0 %v634
    %1476 = vmatpush1.msra.mxu0 %v633
    %1477 = vmatprep.subr.mxu0 %v636
    %1478 = vmatpush1.msra.mxu0 %v635
    %1479 = vmatprep.subr.mxu0 %v638
    %1480 = vmatpush1.msra.mxu0 %v637
    %1481 = vmatprep.subr.mxu0 %v640
    %1482 = vmatpush1.msra.mxu0 %v639
    %1483 = vmatprep.subr.mxu0 %v642
    %1484 = vmatpush1.msra.mxu0 %v641
    %1485 = vmatprep.subr.mxu0 %v644
    %1486 = vmatpush1.msra.mxu0 %v643
    %1487 = vmatprep.subr.mxu0 %v646
    %1488 = vmatpush1.msra.mxu0 %v645
    %1489 = vmatprep.subr.mxu0 %v648
    %1490 = vmatpush1.msra.mxu0 %v647
    %1491 = vmatprep.subr.mxu0 %v650
    %1492 = vmatpush1.msra.mxu0 %v649
    %1493 = vmatprep.subr.mxu0 %v652
    %1494 = vmatpush1.msra.mxu0 %v651
    %1495 = vmatprep.subr.mxu0 %v654
    %1496 = vmatpush1.msra.mxu0 %v653
    %1497 = vmatprep.subr.mxu0 %v656
    %1498 = vmatpush1.msra.mxu0 %v655
    %1499 = vmatprep.subr.mxu0 %v658
    %1500 = vmatpush1.msra.mxu0 %v657
    %1501 = vmatprep.subr.mxu0 %v660
    %1502 = vmatpush1.msra.mxu0 %v659
    %1503 = vmatprep.subr.mxu0 %v662
    %1504 = vmatpush1.msra.mxu0 %v661
    %1505 = vmatprep.subr.mxu0 0.0
    %1506 = vmatpush1.msra.mxu0 0.0
    %1507 = vmatprep.subr.mxu0 0.0
    %1508 = vmatpush1.msra.mxu0 0.0
    %1509 = vmatprep.subr.mxu0 0.0
    %1510 = vmatpush1.msra.mxu0 0.0
    %1511 = vmatprep.subr.mxu0 0.0
    %1512 = vmatpush1.msra.mxu0 0.0
    %1513 = vmatprep.subr.mxu0 0.0
    %1514 = vmatpush1.msra.mxu0 0.0
    %1515 = vmatprep.subr.mxu0 0.0
    %1516 = vmatpush1.msra.mxu0 0.0
    %1517 = vmatprep.subr.mxu0 0.0
    %1518 = vmatpush1.msra.mxu0 0.0
    %1519 = vmatprep.subr.mxu0 0.0
    %1520 = vmatpush1.msra.mxu0 0.0
    %1521 = vmatprep.subr.mxu0 0.0
    %1522 = vmatpush1.msra.mxu0 0.0
    %1523 = vmatprep.subr.mxu0 0.0
    %1524 = vmatpush1.msra.mxu0 0.0
    %1525 = vmatprep.subr.mxu0 0.0
    %1526 = vmatpush1.msra.mxu0 0.0
    %1527 = vmatprep.subr.mxu0 0.0
    %1528 = vmatpush1.msra.mxu0 0.0
    %1529 = vmatprep.subr.mxu0 0.0
    %1530 = vmatpush1.msra.mxu0 0.0
    %1531 = vmatprep.subr.mxu0 0.0
    %1532 = vmatpush1.msra.mxu0 0.0
    %1533 = vmatprep.subr.mxu0 0.0
    %1534 = vmatpush1.msra.mxu0 0.0
    %1535 = vmatprep.subr.mxu0 0.0
    %1536 = vmatpush1.msra.mxu0 0.0
    %1537 = vmatprep.mubr.f32.mxu0 0.0
    %1538 = vmatmul.mubr.f32.gmra.mrb[0].mxu0 %v1472
    %v1539 = vpop.f32.mrb[0].mxu0
    %v1540 = vadd.f32 %v106, %v1539
    %v1541 = vpop.f32.mrb[0].mxu0
    %v1542 = vadd.f32 %v110, %v1541
    %1543 = vdwg.mxu0
    %v1544 = vtanh.pop %v1540
    %v1545 = vtanh.pop %v1542
    %v1546 = vmul.f32 %v1544, %v71
    %v1547 = vmul.f32 %v1545, %v72
    %v1548 = vadd.f32 %v1546, %v73
    %v1549 = vadd.f32 %v1547, %v74
    %v1550 = vmul.f32 %v1548, %v1286
    %v1551 = vmul.f32 %v1548, %v1549
    %1553 = vrot.lane.b32.xlu0 %v1551, 64
    %v1554 = vpop.permute.xlu0 %1553
    %v1556 = vadd.f32 %v1550, %v1554
    %v1557 = vtanh.pop %v1556
    %v1558 = vmul.f32 %v1549, %v1557
    %v1559 = vld [vmem:[#allocation2 + $0x30] sm:$0xff]
    %v1560 = vsel %vm114, %v1559, %v1376
    %1561 = vmatprep.subr.mxu0 %v117
    %1562 = vmatpush1.msra.mxu0 %v116
    %1563 = vmatprep.subr.mxu0 %v119
    %1564 = vmatpush1.msra.mxu0 %v118
    %1565 = vmatprep.subr.mxu0 %v121
    %1566 = vmatpush1.msra.mxu0 %v120
    %1567 = vmatprep.subr.mxu0 %v123
    %1568 = vmatpush1.msra.mxu0 %v122
    %1569 = vmatprep.subr.mxu0 %v125
    %1570 = vmatpush1.msra.mxu0 %v124
    %1571 = vmatprep.subr.mxu0 %v127
    %1572 = vmatpush1.msra.mxu0 %v126
    %1573 = vmatprep.subr.mxu0 %v129
    %1574 = vmatpush1.msra.mxu0 %v128
    %1575 = vmatprep.subr.mxu0 %v131
    %1576 = vmatpush1.msra.mxu0 %v130
    %1577 = vmatprep.subr.mxu0 %v133
    %1578 = vmatpush1.msra.mxu0 %v132
    %1579 = vmatprep.subr.mxu0 %v135
    %1580 = vmatpush1.msra.mxu0 %v134
    %1581 = vmatprep.subr.mxu0 %v137
    %1582 = vmatpush1.msra.mxu0 %v136
    %1583 = vmatprep.subr.mxu0 %v139
    %1584 = vmatpush1.msra.mxu0 %v138
    %1585 = vmatprep.subr.mxu0 %v141
    %1586 = vmatpush1.msra.mxu0 %v140
    %1587 = vmatprep.subr.mxu0 %v143
    %1588 = vmatpush1.msra.mxu0 %v142
    %1589 = vmatprep.subr.mxu0 %v145
    %1590 = vmatpush1.msra.mxu0 %v144
    %1591 = vmatprep.subr.mxu0 %v147
    %1592 = vmatpush1.msra.mxu0 %v146
    %1593 = vmatprep.subr.mxu0 0.0
    %1594 = vmatpush1.msra.mxu0 0.0
    %1595 = vmatprep.subr.mxu0 0.0
    %1596 = vmatpush1.msra.mxu0 0.0
    %1597 = vmatprep.subr.mxu0 0.0
    %1598 = vmatpush1.msra.mxu0 0.0
    %1599 = vmatprep.subr.mxu0 0.0
    %1600 = vmatpush1.msra.mxu0 0.0
    %1601 = vmatprep.subr.mxu0 0.0
    %1602 = vmatpush1.msra.mxu0 0.0
    %1603 = vmatprep.subr.mxu0 0.0
    %1604 = vmatpush1.msra.mxu0 0.0
    %1605 = vmatprep.subr.mxu0 0.0
    %1606 = vmatpush1.msra.mxu0 0.0
    %1607 = vmatprep.subr.mxu0 0.0
    %1608 = vmatpush1.msra.mxu0 0.0
    %1609 = vmatprep.subr.mxu0 0.0
    %1610 = vmatpush1.msra.mxu0 0.0
    %1611 = vmatprep.subr.mxu0 0.0
    %1612 = vmatpush1.msra.mxu0 0.0
    %1613 = vmatprep.subr.mxu0 0.0
    %1614 = vmatpush1.msra.mxu0 0.0
    %1615 = vmatprep.subr.mxu0 0.0
    %1616 = vmatpush1.msra.mxu0 0.0
    %1617 = vmatprep.subr.mxu0 0.0
    %1618 = vmatpush1.msra.mxu0 0.0
    %1619 = vmatprep.subr.mxu0 0.0
    %1620 = vmatpush1.msra.mxu0 0.0
    %1621 = vmatprep.subr.mxu0 0.0
    %1622 = vmatpush1.msra.mxu0 0.0
    %1623 = vmatprep.subr.mxu0 0.0
    %1624 = vmatpush1.msra.mxu0 0.0
    %1625 = vmatprep.mubr.f32.mxu0 0.0
    %1626 = vmatmul.mubr.f32.gmra.mrb[0].mxu0 %v1560
    %v1627 = vpop.f32.mrb[0].mxu0
    %v1628 = vadd.f32 %v80, %v1627
    %v1629 = vpop.f32.mrb[0].mxu0
    %v1630 = vadd.f32 %v84, %v1629
    %1631 = vdwg.mxu0
    %v1632 = vtanh.pop %v1628
    %v1633 = vtanh.pop %v1630
    %v1634 = vmul.f32 %v1632, %v71
    %v1635 = vmul.f32 %v1633, %v72
    %v1636 = vadd.f32 %v1634, %v73
    %v1637 = vadd.f32 %v1635, %v74
    %v1638 = vmul.f32 %v1636, %v1374
    %v1639 = vmul.f32 %v1636, %v1637
    %1641 = vrot.lane.b32.xlu0 %v1639, 64
    %v1642 = vpop.permute.xlu0 %1641
    %v1644 = vadd.f32 %v1638, %v1642
    %v1645 = vtanh.pop %v1644
    %v1646 = vmul.f32 %v1637, %v1645
    %1648 = vrot.lane.b32.xlu0 %v1376, 64
    %v1649 = vpop.permute.xlu0 %1648
    %v1651 = vsel %vm114, %v1649, %v1467
    %1652 = vmatprep.subr.mxu0 %v329
    %1653 = vmatpush1.msra.mxu0 %v328
    %1654 = vmatprep.subr.mxu0 %v331
    %1655 = vmatpush1.msra.mxu0 %v330
    %1656 = vmatprep.subr.mxu0 %v333
    %1657 = vmatpush1.msra.mxu0 %v332
    %1658 = vmatprep.subr.mxu0 %v335
    %1659 = vmatpush1.msra.mxu0 %v334
    %1660 = vmatprep.subr.mxu0 %v337
    %1661 = vmatpush1.msra.mxu0 %v336
    %1662 = vmatprep.subr.mxu0 %v339
    %1663 = vmatpush1.msra.mxu0 %v338
    %1664 = vmatprep.subr.mxu0 %v341
    %1665 = vmatpush1.msra.mxu0 %v340
    %1666 = vmatprep.subr.mxu0 %v343
    %1667 = vmatpush1.msra.mxu0 %v342
    %1668 = vmatprep.subr.mxu0 %v345
    %1669 = vmatpush1.msra.mxu0 %v344
    %1670 = vmatprep.subr.mxu0 %v347
    %1671 = vmatpush1.msra.mxu0 %v346
    %1672 = vmatprep.subr.mxu0 %v349
    %1673 = vmatpush1.msra.mxu0 %v348
    %1674 = vmatprep.subr.mxu0 %v351
    %1675 = vmatpush1.msra.mxu0 %v350
    %1676 = vmatprep.subr.mxu0 %v353
    %1677 = vmatpush1.msra.mxu0 %v352
    %1678 = vmatprep.subr.mxu0 %v355
    %1679 = vmatpush1.msra.mxu0 %v354
    %1680 = vmatprep.subr.mxu0 %v357
    %1681 = vmatpush1.msra.mxu0 %v356
    %1682 = vmatprep.subr.mxu0 %v359
    %1683 = vmatpush1.msra.mxu0 %v358
    %1684 = vmatprep.subr.mxu0 0.0
    %1685 = vmatpush1.msra.mxu0 0.0
    %1686 = vmatprep.subr.mxu0 0.0
    %1687 = vmatpush1.msra.mxu0 0.0
    %1688 = vmatprep.subr.mxu0 0.0
    %1689 = vmatpush1.msra.mxu0 0.0
    %1690 = vmatprep.subr.mxu0 0.0
    %1691 = vmatpush1.msra.mxu0 0.0
    %1692 = vmatprep.subr.mxu0 0.0
    %1693 = vmatpush1.msra.mxu0 0.0
    %1694 = vmatprep.subr.mxu0 0.0
    %1695 = vmatpush1.msra.mxu0 0.0
    %1696 = vmatprep.subr.mxu0 0.0
    %1697 = vmatpush1.msra.mxu0 0.0
    %1698 = vmatprep.subr.mxu0 0.0
    %1699 = vmatpush1.msra.mxu0 0.0
    %1700 = vmatprep.subr.mxu0 0.0
    %1701 = vmatpush1.msra.mxu0 0.0
    %1702 = vmatprep.subr.mxu0 0.0
    %1703 = vmatpush1.msra.mxu0 0.0
    %1704 = vmatprep.subr.mxu0 0.0
    %1705 = vmatpush1.msra.mxu0 0.0
    %1706 = vmatprep.subr.mxu0 0.0
    %1707 = vmatpush1.msra.mxu0 0.0
    %1708 = vmatprep.subr.mxu0 0.0
    %1709 = vmatpush1.msra.mxu0 0.0
    %1710 = vmatprep.subr.mxu0 0.0
    %1711 = vmatpush1.msra.mxu0 0.0
    %1712 = vmatprep.subr.mxu0 0.0
    %1713 = vmatpush1.msra.mxu0 0.0
    %1714 = vmatprep.subr.mxu0 0.0
    %1715 = vmatpush1.msra.mxu0 0.0
    %1716 = vmatprep.mubr.f32.mxu0 0.0
    %1717 = vmatmul.mubr.f32.gmra.mrb[0].mxu0 %v1651
    %v1718 = vpop.f32.mrb[0].mxu0
    %v1719 = vadd.f32 %v93, %v1718
    %v1720 = vpop.f32.mrb[0].mxu0
    %v1721 = vadd.f32 %v97, %v1720
    %1722 = vdwg.mxu0
    %v1723 = vtanh.pop %v1719
    %v1724 = vtanh.pop %v1721
    %v1725 = vmul.f32 %v1723, %v71
    %v1726 = vmul.f32 %v1724, %v72
    %v1727 = vadd.f32 %v1725, %v73
    %v1728 = vadd.f32 %v1726, %v74
    %v1729 = vmul.f32 %v1727, %v1465
    %v1730 = vmul.f32 %v1727, %v1728
    %1732 = vrot.lane.b32.xlu0 %v1730, 64
    %v1733 = vpop.permute.xlu0 %1732
    %v1735 = vadd.f32 %v1729, %v1733
    %v1736 = vtanh.pop %v1735
    %v1737 = vmul.f32 %v1728, %v1736
    %1739 = vrot.lane.b32.xlu0 %v1467, 64
    %v1740 = vpop.permute.xlu0 %1739
    %v1742 = vsel %vm114, %v1740, %v1558
    %1743 = vmatprep.subr.mxu0 %v632
    %1744 = vmatpush1.msra.mxu0 %v631
    %1745 = vmatprep.subr.mxu0 %v634
    %1746 = vmatpush1.msra.mxu0 %v633
    %1747 = vmatprep.subr.mxu0 %v636
    %1748 = vmatpush1.msra.mxu0 %v635
    %1749 = vmatprep.subr.mxu0 %v638
    %1750 = vmatpush1.msra.mxu0 %v637
    %1751 = vmatprep.subr.mxu0 %v640
    %1752 = vmatpush1.msra.mxu0 %v639
    %1753 = vmatprep.subr.mxu0 %v642
    %1754 = vmatpush1.msra.mxu0 %v641
    %1755 = vmatprep.subr.mxu0 %v644
    %1756 = vmatpush1.msra.mxu0 %v643
    %1757 = vmatprep.subr.mxu0 %v646
    %1758 = vmatpush1.msra.mxu0 %v645
    %1759 = vmatprep.subr.mxu0 %v648
    %1760 = vmatpush1.msra.mxu0 %v647
    %1761 = vmatprep.subr.mxu0 %v650
    %1762 = vmatpush1.msra.mxu0 %v649
    %1763 = vmatprep.subr.mxu0 %v652
    %1764 = vmatpush1.msra.mxu0 %v651
    %1765 = vmatprep.subr.mxu0 %v654
    %1766 = vmatpush1.msra.mxu0 %v653
    %1767 = vmatprep.subr.mxu0 %v656
    %1768 = vmatpush1.msra.mxu0 %v655
    %1769 = vmatprep.subr.mxu0 %v658
    %1770 = vmatpush1.msra.mxu0 %v657
    %1771 = vmatprep.subr.mxu0 %v660
    %1772 = vmatpush1.msra.mxu0 %v659
    %1773 = vmatprep.subr.mxu0 %v662
    %1774 = vmatpush1.msra.mxu0 %v661
    %1775 = vmatprep.subr.mxu0 0.0
    %1776 = vmatpush1.msra.mxu0 0.0
    %1777 = vmatprep.subr.mxu0 0.0
    %1778 = vmatpush1.msra.mxu0 0.0
    %1779 = vmatprep.subr.mxu0 0.0
    %1780 = vmatpush1.msra.mxu0 0.0
    %1781 = vmatprep.subr.mxu0 0.0
    %1782 = vmatpush1.msra.mxu0 0.0
    %1783 = vmatprep.subr.mxu0 0.0
    %1784 = vmatpush1.msra.mxu0 0.0
    %1785 = vmatprep.subr.mxu0 0.0
    %1786 = vmatpush1.msra.mxu0 0.0
    %1787 = vmatprep.subr.mxu0 0.0
    %1788 = vmatpush1.msra.mxu0 0.0
    %1789 = vmatprep.subr.mxu0 0.0
    %1790 = vmatpush1.msra.mxu0 0.0
    %1791 = vmatprep.subr.mxu0 0.0
    %1792 = vmatpush1.msra.mxu0 0.0
    %1793 = vmatprep.subr.mxu0 0.0
    %1794 = vmatpush1.msra.mxu0 0.0
    %1795 = vmatprep.subr.mxu0 0.0
    %1796 = vmatpush1.msra.mxu0 0.0
    %1797 = vmatprep.subr.mxu0 0.0
    %1798 = vmatpush1.msra.mxu0 0.0
    %1799 = vmatprep.subr.mxu0 0.0
    %1800 = vmatpush1.msra.mxu0 0.0
    %1801 = vmatprep.subr.mxu0 0.0
    %1802 = vmatpush1.msra.mxu0 0.0
    %1803 = vmatprep.subr.mxu0 0.0
    %1804 = vmatpush1.msra.mxu0 0.0
    %1805 = vmatprep.subr.mxu0 0.0
    %1806 = vmatpush1.msra.mxu0 0.0
    %1807 = vmatprep.mubr.f32.mxu0 0.0
    %1808 = vmatmul.mubr.f32.gmra.mrb[0].mxu0 %v1742
    %v1809 = vpop.f32.mrb[0].mxu0
    %v1810 = vadd.f32 %v106, %v1809
    %v1811 = vpop.f32.mrb[0].mxu0
    %v1812 = vadd.f32 %v110, %v1811
    %1813 = vdwg.mxu0
    %v1814 = vtanh.pop %v1810
    %v1815 = vtanh.pop %v1812
    %v1816 = vmul.f32 %v1814, %v71
    %v1817 = vmul.f32 %v1815, %v72
    %v1818 = vadd.f32 %v1816, %v73
    %v1819 = vadd.f32 %v1817, %v74
    %v1820 = vmul.f32 %v1818, %v1556
    %v1821 = vmul.f32 %v1818, %v1819
    %1823 = vrot.lane.b32.xlu0 %v1821, 64
    %v1824 = vpop.permute.xlu0 %1823
    %v1826 = vadd.f32 %v1820, %v1824
    %v1827 = vtanh.pop %v1826
    %v1828 = vmul.f32 %v1819, %v1827
    %v1829 = vld [vmem:[#allocation2 + $0x38] sm:$0xff]
    %v1830 = vsel %vm114, %v1829, %v1646
    %1831 = vmatprep.subr.mxu0 %v117
    %1832 = vmatpush1.msra.mxu0 %v116
    %1833 = vmatprep.subr.mxu0 %v119
    %1834 = vmatpush1.msra.mxu0 %v118
    %1835 = vmatprep.subr.mxu0 %v121
    %1836 = vmatpush1.msra.mxu0 %v120
    %1837 = vmatprep.subr.mxu0 %v123
    %1838 = vmatpush1.msra.mxu0 %v122
    %1839 = vmatprep.subr.mxu0 %v125
    %1840 = vmatpush1.msra.mxu0 %v124
    %1841 = vmatprep.subr.mxu0 %v127
    %1842 = vmatpush1.msra.mxu0 %v126
    %1843 = vmatprep.subr.mxu0 %v129
    %1844 = vmatpush1.msra.mxu0 %v128
    %1845 = vmatprep.subr.mxu0 %v131
    %1846 = vmatpush1.msra.mxu0 %v130
    %1847 = vmatprep.subr.mxu0 %v133
    %1848 = vmatpush1.msra.mxu0 %v132
    %1849 = vmatprep.subr.mxu0 %v135
    %1850 = vmatpush1.msra.mxu0 %v134
    %1851 = vmatprep.subr.mxu0 %v137
    %1852 = vmatpush1.msra.mxu0 %v136
    %1853 = vmatprep.subr.mxu0 %v139
    %1854 = vmatpush1.msra.mxu0 %v138
    %1855 = vmatprep.subr.mxu0 %v141
    %1856 = vmatpush1.msra.mxu0 %v140
    %1857 = vmatprep.subr.mxu0 %v143
    %1858 = vmatpush1.msra.mxu0 %v142
    %1859 = vmatprep.subr.mxu0 %v145
    %1860 = vmatpush1.msra.mxu0 %v144
    %1861 = vmatprep.subr.mxu0 %v147
    %1862 = vmatpush1.msra.mxu0 %v146
    %1863 = vmatprep.subr.mxu0 0.0
    %1864 = vmatpush1.msra.mxu0 0.0
    %1865 = vmatprep.subr.mxu0 0.0
    %1866 = vmatpush1.msra.mxu0 0.0
    %1867 = vmatprep.subr.mxu0 0.0
    %1868 = vmatpush1.msra.mxu0 0.0
    %1869 = vmatprep.subr.mxu0 0.0
    %1870 = vmatpush1.msra.mxu0 0.0
    %1871 = vmatprep.subr.mxu0 0.0
    %1872 = vmatpush1.msra.mxu0 0.0
    %1873 = vmatprep.subr.mxu0 0.0
    %1874 = vmatpush1.msra.mxu0 0.0
    %1875 = vmatprep.subr.mxu0 0.0
    %1876 = vmatpush1.msra.mxu0 0.0
    %1877 = vmatprep.subr.mxu0 0.0
    %1878 = vmatpush1.msra.mxu0 0.0
    %1879 = vmatprep.subr.mxu0 0.0
    %1880 = vmatpush1.msra.mxu0 0.0
    %1881 = vmatprep.subr.mxu0 0.0
    %1882 = vmatpush1.msra.mxu0 0.0
    %1883 = vmatprep.subr.mxu0 0.0
    %1884 = vmatpush1.msra.mxu0 0.0
    %1885 = vmatprep.subr.mxu0 0.0
    %1886 = vmatpush1.msra.mxu0 0.0
    %1887 = vmatprep.subr.mxu0 0.0
    %1888 = vmatpush1.msra.mxu0 0.0
    %1889 = vmatprep.subr.mxu0 0.0
    %1890 = vmatpush1.msra.mxu0 0.0
    %1891 = vmatprep.subr.mxu0 0.0
    %1892 = vmatpush1.msra.mxu0 0.0
    %1893 = vmatprep.subr.mxu0 0.0
    %1894 = vmatpush1.msra.mxu0 0.0
    %1895 = vmatprep.mubr.f32.mxu0 0.0
    %1896 = vmatmul.mubr.f32.gmra.mrb[0].mxu0 %v1830
    %v1897 = vpop.f32.mrb[0].mxu0
    %v1898 = vadd.f32 %v80, %v1897
    %v1899 = vpop.f32.mrb[0].mxu0
    %v1900 = vadd.f32 %v84, %v1899
    %1901 = vdwg.mxu0
    %v1902 = vtanh.pop %v1898
    %v1903 = vtanh.pop %v1900
    %v1904 = vmul.f32 %v1902, %v71
    %v1905 = vmul.f32 %v1903, %v72
    %v1906 = vadd.f32 %v1904, %v73
    %v1907 = vadd.f32 %v1905, %v74
    %v1908 = vmul.f32 %v1906, %v1644
    %v1909 = vmul.f32 %v1906, %v1907
    %1911 = vrot.lane.b32.xlu0 %v1909, 64
    %v1912 = vpop.permute.xlu0 %1911
    %v1914 = vadd.f32 %v1908, %v1912
    %v1915 = vtanh.pop %v1914
    %v1916 = vmul.f32 %v1907, %v1915
    %1918 = vrot.lane.b32.xlu0 %v1646, 64
    %v1919 = vpop.permute.xlu0 %1918
    %v1921 = vsel %vm114, %v1919, %v1737
    %1922 = vmatprep.subr.mxu0 %v329
    %1923 = vmatpush1.msra.mxu0 %v328
    %1924 = vmatprep.subr.mxu0 %v331
    %1925 = vmatpush1.msra.mxu0 %v330
    %1926 = vmatprep.subr.mxu0 %v333
    %1927 = vmatpush1.msra.mxu0 %v332
    %1928 = vmatprep.subr.mxu0 %v335
    %1929 = vmatpush1.msra.mxu0 %v334
    %1930 = vmatprep.subr.mxu0 %v337
    %1931 = vmatpush1.msra.mxu0 %v336
    %1932 = vmatprep.subr.mxu0 %v339
    %1933 = vmatpush1.msra.mxu0 %v338
    %1934 = vmatprep.subr.mxu0 %v341
    %1935 = vmatpush1.msra.mxu0 %v340
    %1936 = vmatprep.subr.mxu0 %v343
    %1937 = vmatpush1.msra.mxu0 %v342
    %1938 = vmatprep.subr.mxu0 %v345
    %1939 = vmatpush1.msra.mxu0 %v344
    %1940 = vmatprep.subr.mxu0 %v347
    %1941 = vmatpush1.msra.mxu0 %v346
    %1942 = vmatprep.subr.mxu0 %v349
    %1943 = vmatpush1.msra.mxu0 %v348
    %1944 = vmatprep.subr.mxu0 %v351
    %1945 = vmatpush1.msra.mxu0 %v350
    %1946 = vmatprep.subr.mxu0 %v353
    %1947 = vmatpush1.msra.mxu0 %v352
    %1948 = vmatprep.subr.mxu0 %v355
    %1949 = vmatpush1.msra.mxu0 %v354
    %1950 = vmatprep.subr.mxu0 %v357
    %1951 = vmatpush1.msra.mxu0 %v356
    %1952 = vmatprep.subr.mxu0 %v359
    %1953 = vmatpush1.msra.mxu0 %v358
    %1954 = vmatprep.subr.mxu0 0.0
    %1955 = vmatpush1.msra.mxu0 0.0
    %1956 = vmatprep.subr.mxu0 0.0
    %1957 = vmatpush1.msra.mxu0 0.0
    %1958 = vmatprep.subr.mxu0 0.0
    %1959 = vmatpush1.msra.mxu0 0.0
    %1960 = vmatprep.subr.mxu0 0.0
    %1961 = vmatpush1.msra.mxu0 0.0
    %1962 = vmatprep.subr.mxu0 0.0
    %1963 = vmatpush1.msra.mxu0 0.0
    %1964 = vmatprep.subr.mxu0 0.0
    %1965 = vmatpush1.msra.mxu0 0.0
    %1966 = vmatprep.subr.mxu0 0.0
    %1967 = vmatpush1.msra.mxu0 0.0
    %1968 = vmatprep.subr.mxu0 0.0
    %1969 = vmatpush1.msra.mxu0 0.0
    %1970 = vmatprep.subr.mxu0 0.0
    %1971 = vmatpush1.msra.mxu0 0.0
    %1972 = vmatprep.subr.mxu0 0.0
    %1973 = vmatpush1.msra.mxu0 0.0
    %1974 = vmatprep.subr.mxu0 0.0
    %1975 = vmatpush1.msra.mxu0 0.0
    %1976 = vmatprep.subr.mxu0 0.0
    %1977 = vmatpush1.msra.mxu0 0.0
    %1978 = vmatprep.subr.mxu0 0.0
    %1979 = vmatpush1.msra.mxu0 0.0
    %1980 = vmatprep.subr.mxu0 0.0
    %1981 = vmatpush1.msra.mxu0 0.0
    %1982 = vmatprep.subr.mxu0 0.0
    %1983 = vmatpush1.msra.mxu0 0.0
    %1984 = vmatprep.subr.mxu0 0.0
    %1985 = vmatpush1.msra.mxu0 0.0
    %1986 = vmatprep.mubr.f32.mxu0 0.0
    %1987 = vmatmul.mubr.f32.gmra.mrb[0].mxu0 %v1921
    %v1988 = vpop.f32.mrb[0].mxu0
    %v1989 = vadd.f32 %v93, %v1988
    %v1990 = vpop.f32.mrb[0].mxu0
    %v1991 = vadd.f32 %v97, %v1990
    %1992 = vdwg.mxu0
    %v1993 = vtanh.pop %v1989
    %v1994 = vtanh.pop %v1991
    %v1995 = vmul.f32 %v1993, %v71
    %v1996 = vmul.f32 %v1994, %v72
    %v1997 = vadd.f32 %v1995, %v73
    %v1998 = vadd.f32 %v1996, %v74
    %v1999 = vmul.f32 %v1997, %v1735
    %v2000 = vmul.f32 %v1997, %v1998
    %2002 = vrot.lane.b32.xlu0 %v2000, 64
    %v2003 = vpop.permute.xlu0 %2002
    %v2005 = vadd.f32 %v1999, %v2003
    %v2006 = vtanh.pop %v2005
    %v2007 = vmul.f32 %v1998, %v2006
    %2009 = vrot.lane.b32.xlu0 %v1737, 64
    %v2010 = vpop.permute.xlu0 %2009
    %v2012 = vsel %vm114, %v2010, %v1828
    %2013 = vmatprep.subr.mxu0 %v632
    %2014 = vmatpush1.msra.mxu0 %v631
    %2015 = vmatprep.subr.mxu0 %v634
    %2016 = vmatpush1.msra.mxu0 %v633
    %2017 = vmatprep.subr.mxu0 %v636
    %2018 = vmatpush1.msra.mxu0 %v635
    %2019 = vmatprep.subr.mxu0 %v638
    %2020 = vmatpush1.msra.mxu0 %v637
    %2021 = vmatprep.subr.mxu0 %v640
    %2022 = vmatpush1.msra.mxu0 %v639
    %2023 = vmatprep.subr.mxu0 %v642
    %2024 = vmatpush1.msra.mxu0 %v641
    %2025 = vmatprep.subr.mxu0 %v644
    %2026 = vmatpush1.msra.mxu0 %v643
    %2027 = vmatprep.subr.mxu0 %v646
    %2028 = vmatpush1.msra.mxu0 %v645
    %2029 = vmatprep.subr.mxu0 %v648
    %2030 = vmatpush1.msra.mxu0 %v647
    %2031 = vmatprep.subr.mxu0 %v650
    %2032 = vmatpush1.msra.mxu0 %v649
    %2033 = vmatprep.subr.mxu0 %v652
    %2034 = vmatpush1.msra.mxu0 %v651
    %2035 = vmatprep.subr.mxu0 %v654
    %2036 = vmatpush1.msra.mxu0 %v653
    %2037 = vmatprep.subr.mxu0 %v656
    %2038 = vmatpush1.msra.mxu0 %v655
    %2039 = vmatprep.subr.mxu0 %v658
    %2040 = vmatpush1.msra.mxu0 %v657
    %2041 = vmatprep.subr.mxu0 %v660
    %2042 = vmatpush1.msra.mxu0 %v659
    %2043 = vmatprep.subr.mxu0 %v662
    %2044 = vmatpush1.msra.mxu0 %v661
    %2045 = vmatprep.subr.mxu0 0.0
    %2046 = vmatpush1.msra.mxu0 0.0
    %2047 = vmatprep.subr.mxu0 0.0
    %2048 = vmatpush1.msra.mxu0 0.0
    %2049 = vmatprep.subr.mxu0 0.0
    %2050 = vmatpush1.msra.mxu0 0.0
    %2051 = vmatprep.subr.mxu0 0.0
    %2052 = vmatpush1.msra.mxu0 0.0
    %2053 = vmatprep.subr.mxu0 0.0
    %2054 = vmatpush1.msra.mxu0 0.0
    %2055 = vmatprep.subr.mxu0 0.0
    %2056 = vmatpush1.msra.mxu0 0.0
    %2057 = vmatprep.subr.mxu0 0.0
    %2058 = vmatpush1.msra.mxu0 0.0
    %2059 = vmatprep.subr.mxu0 0.0
    %2060 = vmatpush1.msra.mxu0 0.0
    %2061 = vmatprep.subr.mxu0 0.0
    %2062 = vmatpush1.msra.mxu0 0.0
    %2063 = vmatprep.subr.mxu0 0.0
    %2064 = vmatpush1.msra.mxu0 0.0
    %2065 = vmatprep.subr.mxu0 0.0
    %2066 = vmatpush1.msra.mxu0 0.0
    %2067 = vmatprep.subr.mxu0 0.0
    %2068 = vmatpush1.msra.mxu0 0.0
    %2069 = vmatprep.subr.mxu0 0.0
    %2070 = vmatpush1.msra.mxu0 0.0
    %2071 = vmatprep.subr.mxu0 0.0
    %2072 = vmatpush1.msra.mxu0 0.0
    %2073 = vmatprep.subr.mxu0 0.0
    %2074 = vmatpush1.msra.mxu0 0.0
    %2075 = vmatprep.subr.mxu0 0.0
    %2076 = vmatpush1.msra.mxu0 0.0
    %2077 = vmatprep.mubr.f32.mxu0 0.0
    %2078 = vmatmul.mubr.f32.gmra.mrb[0].mxu0 %v2012
    %v2079 = vpop.f32.mrb[0].mxu0
    %v2080 = vadd.f32 %v106, %v2079
    %v2081 = vpop.f32.mrb[0].mxu0
    %v2082 = vadd.f32 %v110, %v2081
    %2083 = vdwg.mxu0
    %v2084 = vtanh.pop %v2080
    %v2085 = vtanh.pop %v2082
    %v2086 = vmul.f32 %v2084, %v71
    %v2087 = vmul.f32 %v2085, %v72
    %v2088 = vadd.f32 %v2086, %v73
    %v2089 = vadd.f32 %v2087, %v74
    %v2090 = vmul.f32 %v2088, %v1826
    %v2091 = vmul.f32 %v2088, %v2089
    %2093 = vrot.lane.b32.xlu0 %v2091, 64
    %v2094 = vpop.permute.xlu0 %2093
    %v2096 = vadd.f32 %v2090, %v2094
    %v2097 = vtanh.pop %v2096
    %v2098 = vmul.f32 %v2089, %v2097
    %2100 = vrot.lane.b32.xlu0 %v1916, 64
    %v2101 = vpop.permute.xlu0 %2100
    %v2103 = vsel %vm114, %v2101, %v2007
    %2104 = vmatprep.subr.mxu0 %v329
    %2105 = vmatpush1.msra.mxu0 %v328
    %2106 = vmatprep.subr.mxu0 %v331
    %2107 = vmatpush1.msra.mxu0 %v330
    %2108 = vmatprep.subr.mxu0 %v333
    %2109 = vmatpush1.msra.mxu0 %v332
    %2110 = vmatprep.subr.mxu0 %v335
    %2111 = vmatpush1.msra.mxu0 %v334
    %2112 = vmatprep.subr.mxu0 %v337
    %2113 = vmatpush1.msra.mxu0 %v336
    %2114 = vmatprep.subr.mxu0 %v339
    %2115 = vmatpush1.msra.mxu0 %v338
    %2116 = vmatprep.subr.mxu0 %v341
    %2117 = vmatpush1.msra.mxu0 %v340
    %2118 = vmatprep.subr.mxu0 %v343
    %2119 = vmatpush1.msra.mxu0 %v342
    %2120 = vmatprep.subr.mxu0 %v345
    %2121 = vmatpush1.msra.mxu0 %v344
    %2122 = vmatprep.subr.mxu0 %v347
    %2123 = vmatpush1.msra.mxu0 %v346
    %2124 = vmatprep.subr.mxu0 %v349
    %2125 = vmatpush1.msra.mxu0 %v348
    %2126 = vmatprep.subr.mxu0 %v351
    %2127 = vmatpush1.msra.mxu0 %v350
    %2128 = vmatprep.subr.mxu0 %v353
    %2129 = vmatpush1.msra.mxu0 %v352
    %2130 = vmatprep.subr.mxu0 %v355
    %2131 = vmatpush1.msra.mxu0 %v354
    %2132 = vmatprep.subr.mxu0 %v357
    %2133 = vmatpush1.msra.mxu0 %v356
    %2134 = vmatprep.subr.mxu0 %v359
    %2135 = vmatpush1.msra.mxu0 %v358
    %2136 = vmatprep.subr.mxu0 0.0
    %2137 = vmatpush1.msra.mxu0 0.0
    %2138 = vmatprep.subr.mxu0 0.0
    %2139 = vmatpush1.msra.mxu0 0.0
    %2140 = vmatprep.subr.mxu0 0.0
    %2141 = vmatpush1.msra.mxu0 0.0
    %2142 = vmatprep.subr.mxu0 0.0
    %2143 = vmatpush1.msra.mxu0 0.0
    %2144 = vmatprep.subr.mxu0 0.0
    %2145 = vmatpush1.msra.mxu0 0.0
    %2146 = vmatprep.subr.mxu0 0.0
    %2147 = vmatpush1.msra.mxu0 0.0
    %2148 = vmatprep.subr.mxu0 0.0
    %2149 = vmatpush1.msra.mxu0 0.0
    %2150 = vmatprep.subr.mxu0 0.0
    %2151 = vmatpush1.msra.mxu0 0.0
    %2152 = vmatprep.subr.mxu0 0.0
    %2153 = vmatpush1.msra.mxu0 0.0
    %2154 = vmatprep.subr.mxu0 0.0
    %2155 = vmatpush1.msra.mxu0 0.0
    %2156 = vmatprep.subr.mxu0 0.0
    %2157 = vmatpush1.msra.mxu0 0.0
    %2158 = vmatprep.subr.mxu0 0.0
    %2159 = vmatpush1.msra.mxu0 0.0
    %2160 = vmatprep.subr.mxu0 0.0
    %2161 = vmatpush1.msra.mxu0 0.0
    %2162 = vmatprep.subr.mxu0 0.0
    %2163 = vmatpush1.msra.mxu0 0.0
    %2164 = vmatprep.subr.mxu0 0.0
    %2165 = vmatpush1.msra.mxu0 0.0
    %2166 = vmatprep.subr.mxu0 0.0
    %2167 = vmatpush1.msra.mxu0 0.0
    %2168 = vmatprep.mubr.f32.mxu0 0.0
    %2169 = vmatmul.mubr.f32.gmra.mrb[0].mxu0 %v2103
    %v2170 = vpop.f32.mrb[0].mxu0
    %v2171 = vadd.f32 %v93, %v2170
    %v2172 = vpop.f32.mrb[0].mxu0
    %v2173 = vadd.f32 %v97, %v2172
    %2174 = vdwg.mxu0
    %v2175 = vtanh.pop %v2171
    %v2176 = vtanh.pop %v2173
    %v2177 = vmul.f32 %v2175, %v71
    %v2178 = vmul.f32 %v2176, %v72
    %v2179 = vadd.f32 %v2177, %v73
    %v2180 = vadd.f32 %v2178, %v74
    %v2181 = vmul.f32 %v2179, %v2005
    %v2182 = vmul.f32 %v2179, %v2180
    %2184 = vrot.lane.b32.xlu0 %v2182, 64
    %v2185 = vpop.permute.xlu0 %2184
    %v2187 = vadd.f32 %v2181, %v2185
    %v2188 = vtanh.pop %v2187
    %v2189 = vmul.f32 %v2180, %v2188
    %2191 = vrot.lane.b32.xlu0 %v2007, 64
    %v2192 = vpop.permute.xlu0 %2191
    %v2194 = vsel %vm114, %v2192, %v2098
    %2195 = vmatprep.subr.mxu0 %v632
    %2196 = vmatpush1.msra.mxu0 %v631
    %2197 = vmatprep.subr.mxu0 %v634
    %2198 = vmatpush1.msra.mxu0 %v633
    %2199 = vmatprep.subr.mxu0 %v636
    %2200 = vmatpush1.msra.mxu0 %v635
    %2201 = vmatprep.subr.mxu0 %v638
    %2202 = vmatpush1.msra.mxu0 %v637
    %2203 = vmatprep.subr.mxu0 %v640
    %2204 = vmatpush1.msra.mxu0 %v639
    %2205 = vmatprep.subr.mxu0 %v642
    %2206 = vmatpush1.msra.mxu0 %v641
    %2207 = vmatprep.subr.mxu0 %v644
    %2208 = vmatpush1.msra.mxu0 %v643
    %2209 = vmatprep.subr.mxu0 %v646
    %2210 = vmatpush1.msra.mxu0 %v645
    %2211 = vmatprep.subr.mxu0 %v648
    %2212 = vmatpush1.msra.mxu0 %v647
    %2213 = vmatprep.subr.mxu0 %v650
    %2214 = vmatpush1.msra.mxu0 %v649
    %2215 = vmatprep.subr.mxu0 %v652
    %2216 = vmatpush1.msra.mxu0 %v651
    %2217 = vmatprep.subr.mxu0 %v654
    %2218 = vmatpush1.msra.mxu0 %v653
    %2219 = vmatprep.subr.mxu0 %v656
    %2220 = vmatpush1.msra.mxu0 %v655
    %2221 = vmatprep.subr.mxu0 %v658
    %2222 = vmatpush1.msra.mxu0 %v657
    %2223 = vmatprep.subr.mxu0 %v660
    %2224 = vmatpush1.msra.mxu0 %v659
    %2225 = vmatprep.subr.mxu0 %v662
    %2226 = vmatpush1.msra.mxu0 %v661
    %2227 = vmatprep.subr.mxu0 0.0
    %2228 = vmatpush1.msra.mxu0 0.0
    %2229 = vmatprep.subr.mxu0 0.0
    %2230 = vmatpush1.msra.mxu0 0.0
    %2231 = vmatprep.subr.mxu0 0.0
    %2232 = vmatpush1.msra.mxu0 0.0
    %2233 = vmatprep.subr.mxu0 0.0
    %2234 = vmatpush1.msra.mxu0 0.0
    %2235 = vmatprep.subr.mxu0 0.0
    %2236 = vmatpush1.msra.mxu0 0.0
    %2237 = vmatprep.subr.mxu0 0.0
    %2238 = vmatpush1.msra.mxu0 0.0
    %2239 = vmatprep.subr.mxu0 0.0
    %2240 = vmatpush1.msra.mxu0 0.0
    %2241 = vmatprep.subr.mxu0 0.0
    %2242 = vmatpush1.msra.mxu0 0.0
    %2243 = vmatprep.subr.mxu0 0.0
    %2244 = vmatpush1.msra.mxu0 0.0
    %2245 = vmatprep.subr.mxu0 0.0
    %2246 = vmatpush1.msra.mxu0 0.0
    %2247 = vmatprep.subr.mxu0 0.0
    %2248 = vmatpush1.msra.mxu0 0.0
    %2249 = vmatprep.subr.mxu0 0.0
    %2250 = vmatpush1.msra.mxu0 0.0
    %2251 = vmatprep.subr.mxu0 0.0
    %2252 = vmatpush1.msra.mxu0 0.0
    %2253 = vmatprep.subr.mxu0 0.0
    %2254 = vmatpush1.msra.mxu0 0.0
    %2255 = vmatprep.subr.mxu0 0.0
    %2256 = vmatpush1.msra.mxu0 0.0
    %2257 = vmatprep.subr.mxu0 0.0
    %2258 = vmatpush1.msra.mxu0 0.0
    %2259 = vmatprep.mubr.f32.mxu0 0.0
    %2260 = vmatmul.mubr.f32.gmra.mrb[0].mxu0 %v2194
    %v2261 = vpop.f32.mrb[0].mxu0
    %v2262 = vadd.f32 %v106, %v2261
    %v2263 = vpop.f32.mrb[0].mxu0
    %v2264 = vadd.f32 %v110, %v2263
    %2265 = vdwg.mxu0
    %v2266 = vtanh.pop %v2262
    %v2267 = vtanh.pop %v2264
    %v2268 = vmul.f32 %v2266, %v71
    %v2269 = vmul.f32 %v2267, %v72
    %v2270 = vadd.f32 %v2268, %v73
    %v2271 = vadd.f32 %v2269, %v74
    %v2272 = vmul.f32 %v2270, %v2096
    %v2273 = vmul.f32 %v2270, %v2271
    %2275 = vrot.lane.b32.xlu0 %v2273, 64
    %v2276 = vpop.permute.xlu0 %2275
    %v2278 = vadd.f32 %v2272, %v2276
    %v2279 = vtanh.pop %v2278
    %v2280 = vmul.f32 %v2271, %v2279
    %2282 = vrot.lane.b32.xlu0 %v2189, 64
    %v2283 = vpop.permute.xlu0 %2282
    %v2285 = vsel %vm114, %v2283, %v2280
    %2286 = vmatprep.subr.mxu0 %v632
    %2287 = vmatpush1.msra.mxu0 %v631
    %2288 = vmatprep.subr.mxu0 %v634
    %2289 = vmatpush1.msra.mxu0 %v633
    %2290 = vmatprep.subr.mxu0 %v636
    %2291 = vmatpush1.msra.mxu0 %v635
    %2292 = vmatprep.subr.mxu0 %v638
    %2293 = vmatpush1.msra.mxu0 %v637
    %2294 = vmatprep.subr.mxu0 %v640
    %2295 = vmatpush1.msra.mxu0 %v639
    %2296 = vmatprep.subr.mxu0 %v642
    %2297 = vmatpush1.msra.mxu0 %v641
    %2298 = vmatprep.subr.mxu0 %v644
    %2299 = vmatpush1.msra.mxu0 %v643
    %2300 = vmatprep.subr.mxu0 %v646
    %2301 = vmatpush1.msra.mxu0 %v645
    %2302 = vmatprep.subr.mxu0 %v648
    %2303 = vmatpush1.msra.mxu0 %v647
    %2304 = vmatprep.subr.mxu0 %v650
    %2305 = vmatpush1.msra.mxu0 %v649
    %2306 = vmatprep.subr.mxu0 %v652
    %2307 = vmatpush1.msra.mxu0 %v651
    %2308 = vmatprep.subr.mxu0 %v654
    %2309 = vmatpush1.msra.mxu0 %v653
    %2310 = vmatprep.subr.mxu0 %v656
    %2311 = vmatpush1.msra.mxu0 %v655
    %2312 = vmatprep.subr.mxu0 %v658
    %2313 = vmatpush1.msra.mxu0 %v657
    %2314 = vmatprep.subr.mxu0 %v660
    %2315 = vmatpush1.msra.mxu0 %v659
    %2316 = vmatprep.subr.mxu0 %v662
    %2317 = vmatpush1.msra.mxu0 %v661
    %2318 = vmatprep.subr.mxu0 0.0
    %2319 = vmatpush1.msra.mxu0 0.0
    %2320 = vmatprep.subr.mxu0 0.0
    %2321 = vmatpush1.msra.mxu0 0.0
    %2322 = vmatprep.subr.mxu0 0.0
    %2323 = vmatpush1.msra.mxu0 0.0
    %2324 = vmatprep.subr.mxu0 0.0
    %2325 = vmatpush1.msra.mxu0 0.0
    %2326 = vmatprep.subr.mxu0 0.0
    %2327 = vmatpush1.msra.mxu0 0.0
    %2328 = vmatprep.subr.mxu0 0.0
    %2329 = vmatpush1.msra.mxu0 0.0
    %2330 = vmatprep.subr.mxu0 0.0
    %2331 = vmatpush1.msra.mxu0 0.0
    %2332 = vmatprep.subr.mxu0 0.0
    %2333 = vmatpush1.msra.mxu0 0.0
    %2334 = vmatprep.subr.mxu0 0.0
    %2335 = vmatpush1.msra.mxu0 0.0
    %2336 = vmatprep.subr.mxu0 0.0
    %2337 = vmatpush1.msra.mxu0 0.0
    %2338 = vmatprep.subr.mxu0 0.0
    %2339 = vmatpush1.msra.mxu0 0.0
    %2340 = vmatprep.subr.mxu0 0.0
    %2341 = vmatpush1.msra.mxu0 0.0
    %2342 = vmatprep.subr.mxu0 0.0
    %2343 = vmatpush1.msra.mxu0 0.0
    %2344 = vmatprep.subr.mxu0 0.0
    %2345 = vmatpush1.msra.mxu0 0.0
    %2346 = vmatprep.subr.mxu0 0.0
    %2347 = vmatpush1.msra.mxu0 0.0
    %2348 = vmatprep.subr.mxu0 0.0
    %2349 = vmatpush1.msra.mxu0 0.0
    %2350 = vmatprep.mubr.f32.mxu0 0.0
    %2351 = vmatmul.mubr.f32.gmra.mrb[0].mxu0 %v2285
    %v2352 = vpop.f32.mrb[0].mxu0
    %v2353 = vadd.f32 %v106, %v2352
    %v2354 = vpop.f32.mrb[0].mxu0
    %v2355 = vadd.f32 %v110, %v2354
    %2356 = vdwg.mxu0
    %v2357 = vtanh.pop %v2353
    %v2358 = vtanh.pop %v2355
    %v2359 = vmul.f32 %v2357, %v71
    %v2360 = vmul.f32 %v2358, %v72
    %v2361 = vadd.f32 %v2359, %v73
    %v2362 = vadd.f32 %v2360, %v74
    %v2363 = vmul.f32 %v2361, %v2278
    %v2364 = vmul.f32 %v2361, %v2362
    %2366 = vrot.lane.b32.xlu0 %v2364, 64
    %v2367 = vpop.permute.xlu0 %2366
    %v2369 = vadd.f32 %v2363, %v2367
    %v2370 = vtanh.pop %v2369
    %v2371 = vmul.f32 %v2362, %v2370
    %v2372 = vld [vmem:[#allocation7] sm:$0xff]
    %v2373 = vld [vmem:[#allocation7 + $0x8] sm:$0xff]
    %v2374 = vld [vmem:[#allocation7 + $0x10] sm:$0xff]
    %v2375 = vld [vmem:[#allocation7 + $0x18] sm:$0xff]
    %v2376 = vld [vmem:[#allocation7 + $0x20] sm:$0xff]
    %v2377 = vld [vmem:[#allocation7 + $0x28] sm:$0xff]
    %v2378 = vld [vmem:[#allocation7 + $0x30] sm:$0xff]
    %v2379 = vld [vmem:[#allocation7 + $0x38] sm:$0xff]
    %v2380 = vld [vmem:[%s4] sm:$0x1]
    %v2382 = vlaneseq
    %v2383 = vshrl.u32 %v2382, 7
    %v2384 = vsub.s32 0, %v2383
    %v2385 = vrot.slane %v2380, %v2384
    %2388 = vrot.lane.b32.xlu0 %v2371, 64
    %v2389 = vpop.permute.xlu0 %2388
    %v2390 = vsel %vm114, %v2389, 0
    %2392 = vmatprep.subr.mxu0 0.0
    %2393 = vmatpush1.msra.mxu0 %v2372
    %2394 = vmatprep.subr.mxu0 0.0
    %2395 = vmatpush1.msra.mxu0 %v2373
    %2396 = vmatprep.subr.mxu0 0.0
    %2397 = vmatpush1.msra.mxu0 %v2374
    %2398 = vmatprep.subr.mxu0 0.0
    %2399 = vmatpush1.msra.mxu0 %v2375
    %2400 = vmatprep.subr.mxu0 0.0
    %2401 = vmatpush1.msra.mxu0 %v2376
    %2402 = vmatprep.subr.mxu0 0.0
    %2403 = vmatpush1.msra.mxu0 %v2377
    %2404 = vmatprep.subr.mxu0 0.0
    %2405 = vmatpush1.msra.mxu0 %v2378
    %2406 = vmatprep.subr.mxu0 0.0
    %2407 = vmatpush1.msra.mxu0 %v2379
    %2408 = vmatprep.subr.mxu0 0.0
    %2409 = vmatpush1.msra.mxu0 0.0
    %2410 = vmatprep.subr.mxu0 0.0
    %2411 = vmatpush1.msra.mxu0 0.0
    %2412 = vmatprep.subr.mxu0 0.0
    %2413 = vmatpush1.msra.mxu0 0.0
    %2414 = vmatprep.subr.mxu0 0.0
    %2415 = vmatpush1.msra.mxu0 0.0
    %2416 = vmatprep.subr.mxu0 0.0
    %2417 = vmatpush1.msra.mxu0 0.0
    %2418 = vmatprep.subr.mxu0 0.0
    %2419 = vmatpush1.msra.mxu0 0.0
    %2420 = vmatprep.subr.mxu0 0.0
    %2421 = vmatpush1.msra.mxu0 0.0
    %2422 = vmatprep.subr.mxu0 0.0
    %2423 = vmatpush1.msra.mxu0 0.0
    %2424 = vmatprep.subr.mxu0 0.0
    %2425 = vmatpush1.msra.mxu0 0.0
    %2426 = vmatprep.subr.mxu0 0.0
    %2427 = vmatpush1.msra.mxu0 0.0
    %2428 = vmatprep.subr.mxu0 0.0
    %2429 = vmatpush1.msra.mxu0 0.0
    %2430 = vmatprep.subr.mxu0 0.0
    %2431 = vmatpush1.msra.mxu0 0.0
    %2432 = vmatprep.subr.mxu0 0.0
    %2433 = vmatpush1.msra.mxu0 0.0
    %2434 = vmatprep.subr.mxu0 0.0
    %2435 = vmatpush1.msra.mxu0 0.0
    %2436 = vmatprep.subr.mxu0 0.0
    %2437 = vmatpush1.msra.mxu0 0.0
    %2438 = vmatprep.subr.mxu0 0.0
    %2439 = vmatpush1.msra.mxu0 0.0
    %2440 = vmatprep.subr.mxu0 0.0
    %2441 = vmatpush1.msra.mxu0 0.0
    %2442 = vmatprep.subr.mxu0 0.0
    %2443 = vmatpush1.msra.mxu0 0.0
    %2444 = vmatprep.subr.mxu0 0.0
    %2445 = vmatpush1.msra.mxu0 0.0
    %2446 = vmatprep.subr.mxu0 0.0
    %2447 = vmatpush1.msra.mxu0 0.0
    %2448 = vmatprep.subr.mxu0 0.0
    %2449 = vmatpush1.msra.mxu0 0.0
    %2450 = vmatprep.subr.mxu0 0.0
    %2451 = vmatpush1.msra.mxu0 0.0
    %2452 = vmatprep.subr.mxu0 0.0
    %2453 = vmatpush1.msra.mxu0 0.0
    %2454 = vmatprep.subr.mxu0 0.0
    %2455 = vmatpush1.msra.mxu0 0.0
    %2456 = vmatprep.mubr.f32.mxu0 0.0
    %2457 = vmatmul.mubr.f32.gmra.mrb[0].mxu0 %v2390
    %v2458 = vpop.f32.mrb[0].mxu0
    %v2459 = vadd.f32 %v2385, %v2458
    %v2460 = vpop.f32.mrb[0].mxu0
    %2461 = vdwg.mxu0
    %2462 = vst [vmem:[#allocation8] sm:$0xff] %v2459
    // Predicated region
    $region34: #{tpu_custom_call.1} parent=1 // pred_check
      _
    $region35: #{tpu_custom_call.1} parent=1 // pred_check_branch
      %2464 = sbr.rel (0) target = $region37
    $region36: #{tpu_custom_call.1} parent=1 // pred_region
      %s2466 = ssub.s32 128, 128
      %2467 = vsyncadd [#allocation4], %s2466
      %s2469 = sshll.u32 [#allocation8], 4
      %s2470 = int_to_ptr.vmem [resolvable:$true] %s2469
      %2472 = dma.vmem_to_hbm [thread:$0]  %s2470, 128, %s5, [#allocation4]
    $region37: #{tpu_custom_call.1} parent=1 // pred_fallthru
      _
    // Predicated region
    $region38: #{tpu_custom_call.1} parent=1 // pred_check
      _
    $region39: #{tpu_custom_call.1} parent=1 // pred_check_branch
      %2474 = sbr.rel (0) target = $region41
    $region40: #{tpu_custom_call.1} parent=1 // pred_region
      %2475 = dma.done [#allocation4], 128
    $region41: #{tpu_custom_call.1} parent=1 // pred_fallthru
      _
    %2476 = vsyncpa [#allocation3], 1
    %2477 = vsyncpa [#allocation6], 1
    %2478 = vsyncpa [#allocation4], 1

</llo_original>
